<compile_context>
chip_gen: v5e
topology: v5e:2x2
jax: 0.10.0
libtpu: 0.0.40
codegen_flags: <defaults>
</compile_context>

<pallas_src>
import functools
import numpy as np
import jax
import jax.numpy as jnp
from jax.experimental import pallas as pl
from jax.experimental.pallas import tpu as pltpu


# ----------------------------------------------------------------------------
# Host-side constant builders (pure numpy).
# ----------------------------------------------------------------------------
def _build_shift_matrices(depth, T, F):
    """S[i, r] implements the (kt, kf) tap of layer i on flattened (t*F+f) lanes.

    (p @ S[i, r])[c, t*F+f] = p[c, (t-dt)*F + (f+df)]  (0 outside the valid range)
    with dt = (1-kt)*dil_i (causal time shift) and df = kf-1 (freq shift).
    """
    TF = T * F
    s = np.zeros((depth, 6, TF, TF), np.float32)
    for i in range(depth):
        dil = 2 ** i
        for kt in range(2):
            dt = (1 - kt) * dil
            for kf in range(3):
                df = kf - 1
                m = s[i, kt * 3 + kf]
                for t in range(T):
                    ts = t - dt
                    if ts < 0 or ts >= T:
                        continue
                    for f in range(F):
                        fs = f + df
                        if 0 <= fs < F:
                            m[ts * F + fs, t * F + f] = 1.0
    return s


def _build_avg_matrix(T, F):
    """Block-diagonal averaging matrix: (y @ A)[c, t*F+f] = mean_f y[c, t, :]."""
    TF = T * F
    seg = np.arange(TF) // F
    return (seg[:, None] == seg[None, :]).astype(np.float32) / float(F)


# ----------------------------------------------------------------------------
# Fused kernel: all `depth` layers for one batch element.
# ----------------------------------------------------------------------------
def _dense_block_kernel(x_ref, w_ref, ca_ref, gb_ref, s_ref, avg_ref,
                        o_ref, skip_ref, *, C, depth, c_stride, eps):
    """Block shapes:
      x_ref   : (1, C, TF)            input, lanes = t*F + f
      w_ref   : (depth, 6, C, CT)     conv weights per tap, buffer channel order
      ca_ref  : (depth, 2, C, 1)      [bias, prelu-alpha] per channel
      gb_ref  : (depth, 2, 1, TF)     [gamma, beta] tiled over T
      s_ref   : (depth, 6, TF, TF)    constant 0/1 shift matrices
      avg_ref : (TF, TF)              constant block-diag averaging matrix
      o_ref   : (1, C, TF)            last layer output
      skip_ref: (CT, TF) VMEM scratch, channel blocks at rows [k*c_stride, +C)
    """
    TF = x_ref.shape[-1]

    # Skip buffer: block 0 = x, block k = layer-k output. Zero-fill so that the
    # zero-padded weight columns never multiply uninitialized VMEM.
    skip_ref[...] = jnp.zeros_like(skip_ref)
    skip_ref[0:C, :] = x_ref[0]

    avg = avg_ref[...]
    out = None
    for i in range(depth):                      # static unroll over layers
        skip = skip_ref[...]                    # (CT, TF), lane-dense

        # Dilated causal conv: per-tap channel contraction + shift (both MXU).
        acc = jnp.zeros((C, TF), jnp.float32)
        for r in range(6):                      # r = kt*3 + kf
            p = jnp.dot(w_ref[i, r], skip, preferred_element_type=jnp.float32)
            if r == 4:                          # kt=1, kf=1 -> identity tap
                acc = acc + p
            else:
                acc = acc + jnp.dot(p, s_ref[i, r],
                                    preferred_element_type=jnp.float32)
        y = acc + ca_ref[i, 0]                  # + conv bias (C, 1)

        # LayerNorm over F (segmented, two-pass, biased variance, eps=1e-5).
        mean = jnp.dot(y, avg, preferred_element_type=jnp.float32)
        cen = y - mean
        var = jnp.dot(cen * cen, avg, preferred_element_type=jnp.float32)
        yn = cen * jax.lax.rsqrt(var + eps)
        yn = yn * gb_ref[i, 0] + gb_ref[i, 1]   # gamma, beta (1, TF)

        # Per-channel PReLU.
        out = jnp.where(yn >= 0.0, yn, ca_ref[i, 1] * yn)

        if i + 1 < depth:                       # append to skip (aligned block)
            base = (i + 1) * c_stride
            skip_ref[base:base + C, :] = out

    o_ref[0] = out.astype(o_ref.dtype)          # single lane-dense store


# ----------------------------------------------------------------------------
# Wrapper: parameter packing + pallas_call.
# ----------------------------------------------------------------------------
def dense_block_forward(x, params, *, eps=1e-5):
    """Pallas implementation of DenseBlock.forward.  x: (B, C, T, F)."""
    B, C, T, F = x.shape
    depth = len(params)
    TF = T * F
    c_stride = ((C + 7) // 8) * 8               # 8-aligned channel blocks
    CT = depth * c_stride

    # Pack conv weights into buffer channel order [x, out_1, ..., out_{i-1}]
    # (PyTorch skip order is [out_{i-1}, ..., out_1, x] -> reverse the blocks).
    w_pack = jnp.zeros((depth, 6, C, CT), jnp.float32)
    ca_pack = jnp.zeros((depth, 2, C, 1), jnp.float32)
    gb_pack = jnp.zeros((depth, 2, 1, TF), jnp.float32)
    for i, p in enumerate(params):
        nblk = i + 1
        w = p["w"].astype(jnp.float32)                          # (C, C*nblk, 2, 3)
        w_blk = w.reshape(C, nblk, C, 2, 3)[:, ::-1]            # -> buffer order
        w_t = jnp.transpose(w_blk, (3, 4, 0, 1, 2)).reshape(6, C, nblk, C)
        w_t = jnp.pad(w_t, ((0, 0), (0, 0), (0, 0), (0, c_stride - C)))
        w_pack = w_pack.at[i, :, :, :nblk * c_stride].set(
            w_t.reshape(6, C, nblk * c_stride))
        ca_pack = ca_pack.at[i, 0, :, 0].set(p["b"].astype(jnp.float32))
        ca_pack = ca_pack.at[i, 1, :, 0].set(p["a"].astype(jnp.float32))
        gb_pack = gb_pack.at[i, 0, 0, :].set(jnp.tile(p["g"].astype(jnp.float32), T))
        gb_pack = gb_pack.at[i, 1, 0, :].set(jnp.tile(p["bt"].astype(jnp.float32), T))

    s_pack = jnp.asarray(_build_shift_matrices(depth, T, F))
    avg = jnp.asarray(_build_avg_matrix(T, F))

    kernel = functools.partial(_dense_block_kernel, C=C, depth=depth,
                               c_stride=c_stride, eps=eps)
    out_flat = pl.pallas_call(
        kernel,
        out_shape=jax.ShapeDtypeStruct((B, C, TF), x.dtype),
        grid=(B,),
        in_specs=[
            pl.BlockSpec((1, C, TF), lambda b: (b, 0, 0)),
            pl.BlockSpec((depth, 6, C, CT), lambda b: (0, 0, 0, 0)),
            pl.BlockSpec((depth, 2, C, 1), lambda b: (0, 0, 0, 0)),
            pl.BlockSpec((depth, 2, 1, TF), lambda b: (0, 0, 0, 0)),
            pl.BlockSpec((depth, 6, TF, TF), lambda b: (0, 0, 0, 0)),
            pl.BlockSpec((TF, TF), lambda b: (0, 0)),
        ],
        out_specs=pl.BlockSpec((1, C, TF), lambda b: (b, 0, 0)),
        scratch_shapes=[pltpu.VMEM((CT, TF), jnp.float32)],
        compiler_params=pltpu.CompilerParams(dimension_semantics=("parallel",)),
    )(x.reshape(B, C, TF), w_pack, ca_pack, gb_pack, s_pack, avg)
    return out_flat.reshape(B, C, T, F)


# ----------------------------------------------------------------------------
# Pure-JAX reference (mirrors the PyTorch module) and synthetic params.
# ----------------------------------------------------------------------------
def dense_block_ref(x, params):
    skip = x
    out = None
    for i, p in enumerate(params):
        dil = 2 ** i
        xp = jnp.pad(skip, ((0, 0), (0, 0), (dil, 0), (1, 1)))
        out = jax.lax.conv_general_dilated(
            xp, p["w"], window_strides=(1, 1), padding="VALID",
            rhs_dilation=(dil, 1),
            dimension_numbers=("NCHW", "OIHW", "NCHW"),
        ) + p["b"][None, :, None, None]
        mean = out.mean(-1, keepdims=True)
        var = ((out - mean) ** 2).mean(-1, keepdims=True)
        out = (out - mean) * jax.lax.rsqrt(var + 1e-5) * p["g"] + p["bt"]
        out = jnp.where(out >= 0.0, out, p["a"][None, :, None, None] * out)
        skip = jnp.concatenate([out, skip], axis=1)
    return out


def init_params(key, depth, in_channels, input_size):
    params = []
    for i in range(depth):
        k1, k2, k3, k4, key = jax.random.split(key, 5)
        cin = in_channels * (i + 1)
        fan_in = cin * 2 * 3
        bound = 1.0 / np.sqrt(fan_in)
        params.append(dict(
            w=jax.random.uniform(k1, (in_channels, cin, 2, 3), jnp.float32, -bound, bound),
            b=jax.random.uniform(k2, (in_channels,), jnp.float32, -bound, bound),
            g=1.0 + 0.1 * jax.random.normal(k3, (input_size,), jnp.float32),
            bt=0.1 * jax.random.normal(k4, (input_size,), jnp.float32),
            a=jnp.full((in_channels,), 0.25, jnp.float32),   # PReLU default slope
        ))
    return params


if __name__ == "__main__":
    # Small shapes: batch=2, in_channels=4, time=8, freq(input_size)=16, depth=5.
    B, C, T, F = 2, 4, 8, 16
    depth = 5

    key = jax.random.PRNGKey(0)
    kx, kp = jax.random.split(key)
    x = jax.random.normal(kx, (B, C, T, F), jnp.float32)
    params = init_params(kp, depth, C, F)

    out = dense_block_forward(x, params)
    out = jax.block_until_ready(out)

    ref = dense_block_ref(x, params)
    np.testing.assert_allclose(np.asarray(out), np.asarray(ref), rtol=1e-4, atol=1e-4)

    print("KERNEL_OK")
</pallas_src>

<mosaic_0001>
module attributes {stable_mosaic.version = 11 : i64} {
  func.func @_dense_block_kernel(%arg0: i32, %arg1: memref<1x4x128xf32, #tpu.memory_space<vmem>>, %arg2: memref<5x6x4x40xf32, #tpu.memory_space<vmem>>, %arg3: memref<5x2x4x1xf32, #tpu.memory_space<vmem>>, %arg4: memref<5x2x1x128xf32, #tpu.memory_space<vmem>>, %arg5: memref<5x6x128x128xf32, #tpu.memory_space<vmem>>, %arg6: memref<128x128xf32, #tpu.memory_space<vmem>>, %arg7: memref<1x4x128xf32, #tpu.memory_space<vmem>>, %arg8: memref<40x128xf32, #tpu.memory_space<vmem>>) attributes {dimension_semantics = [#tpu.dimension_semantics<parallel>], iteration_bounds = array<i64: 2>, scalar_prefetch = 0 : i64, scratch_operands = 1 : i64, tpu.core_type = #tpu.core_type<tc>, window_params = [{transform_indices = @transform_0, window_bounds = array<i64: 1, 4, 128>}, {pipeline_mode = #tpu.pipeline_mode<synchronous>, transform_indices = @transform_1, window_bounds = array<i64: 5, 6, 4, 40>}, {pipeline_mode = #tpu.pipeline_mode<synchronous>, transform_indices = @transform_2, window_bounds = array<i64: 5, 2, 4, 1>}, {pipeline_mode = #tpu.pipeline_mode<synchronous>, transform_indices = @transform_3, window_bounds = array<i64: 5, 2, 1, 128>}, {pipeline_mode = #tpu.pipeline_mode<synchronous>, transform_indices = @transform_4, window_bounds = array<i64: 5, 6, 128, 128>}, {pipeline_mode = #tpu.pipeline_mode<synchronous>, transform_indices = @transform_5, window_bounds = array<i64: 128, 128>}, {transform_indices = @transform_6, window_bounds = array<i64: 1, 4, 128>}]} {
    %cst = arith.constant 0.000000e+00 : f32
    %0 = vector.broadcast %cst : f32 to vector<40x128xf32>
    %c0 = arith.constant 0 : index
    %c0_0 = arith.constant 0 : index
    %1 = vector.load %arg8[%c0, %c0_0] : memref<40x128xf32, #tpu.memory_space<vmem>>, vector<40x128xf32>
    tpu.vector_store %arg8[%c0, %c0_0], %0 {strides = array<i32>} : memref<40x128xf32, #tpu.memory_space<vmem>>, vector<40x128xf32>,
    %c0_1 = arith.constant 0 : index
    %c0_2 = arith.constant 0 : index
    %c0_3 = arith.constant 0 : index
    %2 = vector.load %arg1[%c0_1, %c0_2, %c0_3] : memref<1x4x128xf32, #tpu.memory_space<vmem>>, vector<1x4x128xf32>
    %3 = vector.shape_cast %2 : vector<1x4x128xf32> to vector<4x128xf32>
    %c0_4 = arith.constant 0 : index
    %c0_5 = arith.constant 0 : index
    %4 = vector.load %arg8[%c0_4, %c0_5] : memref<40x128xf32, #tpu.memory_space<vmem>>, vector<4x128xf32>
    tpu.vector_store %arg8[%c0_4, %c0_5], %3 {strides = array<i32>} : memref<40x128xf32, #tpu.memory_space<vmem>>, vector<4x128xf32>,
    %c0_6 = arith.constant 0 : index
    %c0_7 = arith.constant 0 : index
    %5 = vector.load %arg6[%c0_6, %c0_7] : memref<128x128xf32, #tpu.memory_space<vmem>>, vector<128x128xf32>
    %c0_8 = arith.constant 0 : index
    %c0_9 = arith.constant 0 : index
    %6 = vector.load %arg8[%c0_8, %c0_9] : memref<40x128xf32, #tpu.memory_space<vmem>>, vector<40x128xf32>
    %cst_10 = arith.constant 0.000000e+00 : f32
    %7 = vector.broadcast %cst_10 : f32 to vector<4x128xf32>
    %c0_11 = arith.constant 0 : index
    %c0_12 = arith.constant 0 : index
    %c0_13 = arith.constant 0 : index
    %c0_14 = arith.constant 0 : index
    %8 = vector.load %arg2[%c0_11, %c0_12, %c0_13, %c0_14] : memref<5x6x4x40xf32, #tpu.memory_space<vmem>>, vector<1x1x4x40xf32>
    %9 = vector.shape_cast %8 : vector<1x1x4x40xf32> to vector<4x40xf32>
    %cst_15 = arith.constant dense<0.000000e+00> : vector<4x128xf32>
    %10 = tpu.matmul %9, %6, %cst_15 {dimension_numbers = #tpu.dot_dimension_numbers<[1], [0], [0], [1], [0, 0, 1, 1], [], []>} : vector<4x40xf32>, vector<40x128xf32>, vector<4x128xf32> -> vector<4x128xf32>
    %c0_16 = arith.constant 0 : index
    %c0_17 = arith.constant 0 : index
    %c0_18 = arith.constant 0 : index
    %c0_19 = arith.constant 0 : index
    %11 = vector.load %arg5[%c0_16, %c0_17, %c0_18, %c0_19] : memref<5x6x128x128xf32, #tpu.memory_space<vmem>>, vector<1x1x128x128xf32>
    %12 = vector.shape_cast %11 : vector<1x1x128x128xf32> to vector<128x128xf32>
    %cst_20 = arith.constant dense<0.000000e+00> : vector<4x128xf32>
    %13 = tpu.matmul %10, %12, %cst_20 {dimension_numbers = #tpu.dot_dimension_numbers<[1], [0], [0], [1], [0, 0, 1, 1], [], []>} : vector<4x128xf32>, vector<128x128xf32>, vector<4x128xf32> -> vector<4x128xf32>
    %14 = arith.addf %7, %13 : vector<4x128xf32>
    %c0_21 = arith.constant 0 : index
    %c1 = arith.constant 1 : index
    %c0_22 = arith.constant 0 : index
    %c0_23 = arith.constant 0 : index
    %15 = vector.load %arg2[%c0_21, %c1, %c0_22, %c0_23] : memref<5x6x4x40xf32, #tpu.memory_space<vmem>>, vector<1x1x4x40xf32>
    %16 = vector.shape_cast %15 : vector<1x1x4x40xf32> to vector<4x40xf32>
    %cst_24 = arith.constant dense<0.000000e+00> : vector<4x128xf32>
    %17 = tpu.matmul %16, %6, %cst_24 {dimension_numbers = #tpu.dot_dimension_numbers<[1], [0], [0], [1], [0, 0, 1, 1], [], []>} : vector<4x40xf32>, vector<40x128xf32>, vector<4x128xf32> -> vector<4x128xf32>
    %c0_25 = arith.constant 0 : index
    %c1_26 = arith.constant 1 : index
    %c0_27 = arith.constant 0 : index
    %c0_28 = arith.constant 0 : index
    %18 = vector.load %arg5[%c0_25, %c1_26, %c0_27, %c0_28] : memref<5x6x128x128xf32, #tpu.memory_space<vmem>>, vector<1x1x128x128xf32>
    %19 = vector.shape_cast %18 : vector<1x1x128x128xf32> to vector<128x128xf32>
    %cst_29 = arith.constant dense<0.000000e+00> : vector<4x128xf32>
    %20 = tpu.matmul %17, %19, %cst_29 {dimension_numbers = #tpu.dot_dimension_numbers<[1], [0], [0], [1], [0, 0, 1, 1], [], []>} : vector<4x128xf32>, vector<128x128xf32>, vector<4x128xf32> -> vector<4x128xf32>
    %21 = arith.addf %14, %20 : vector<4x128xf32>
    %c0_30 = arith.constant 0 : index
    %c2 = arith.constant 2 : index
    %c0_31 = arith.constant 0 : index
    %c0_32 = arith.constant 0 : index
    %22 = vector.load %arg2[%c0_30, %c2, %c0_31, %c0_32] : memref<5x6x4x40xf32, #tpu.memory_space<vmem>>, vector<1x1x4x40xf32>
    %23 = vector.shape_cast %22 : vector<1x1x4x40xf32> to vector<4x40xf32>
    %cst_33 = arith.constant dense<0.000000e+00> : vector<4x128xf32>
    %24 = tpu.matmul %23, %6, %cst_33 {dimension_numbers = #tpu.dot_dimension_numbers<[1], [0], [0], [1], [0, 0, 1, 1], [], []>} : vector<4x40xf32>, vector<40x128xf32>, vector<4x128xf32> -> vector<4x128xf32>
    %c0_34 = arith.constant 0 : index
    %c2_35 = arith.constant 2 : index
    %c0_36 = arith.constant 0 : index
    %c0_37 = arith.constant 0 : index
    %25 = vector.load %arg5[%c0_34, %c2_35, %c0_36, %c0_37] : memref<5x6x128x128xf32, #tpu.memory_space<vmem>>, vector<1x1x128x128xf32>
    %26 = vector.shape_cast %25 : vector<1x1x128x128xf32> to vector<128x128xf32>
    %cst_38 = arith.constant dense<0.000000e+00> : vector<4x128xf32>
    %27 = tpu.matmul %24, %26, %cst_38 {dimension_numbers = #tpu.dot_dimension_numbers<[1], [0], [0], [1], [0, 0, 1, 1], [], []>} : vector<4x128xf32>, vector<128x128xf32>, vector<4x128xf32> -> vector<4x128xf32>
    %28 = arith.addf %21, %27 : vector<4x128xf32>
    %c0_39 = arith.constant 0 : index
    %c3 = arith.constant 3 : index
    %c0_40 = arith.constant 0 : index
    %c0_41 = arith.constant 0 : index
    %29 = vector.load %arg2[%c0_39, %c3, %c0_40, %c0_41] : memref<5x6x4x40xf32, #tpu.memory_space<vmem>>, vector<1x1x4x40xf32>
    %30 = vector.shape_cast %29 : vector<1x1x4x40xf32> to vector<4x40xf32>
    %cst_42 = arith.constant dense<0.000000e+00> : vector<4x128xf32>
    %31 = tpu.matmul %30, %6, %cst_42 {dimension_numbers = #tpu.dot_dimension_numbers<[1], [0], [0], [1], [0, 0, 1, 1], [], []>} : vector<4x40xf32>, vector<40x128xf32>, vector<4x128xf32> -> vector<4x128xf32>
    %c0_43 = arith.constant 0 : index
    %c3_44 = arith.constant 3 : index
    %c0_45 = arith.constant 0 : index
    %c0_46 = arith.constant 0 : index
    %32 = vector.load %arg5[%c0_43, %c3_44, %c0_45, %c0_46] : memref<5x6x128x128xf32, #tpu.memory_space<vmem>>, vector<1x1x128x128xf32>
    %33 = vector.shape_cast %32 : vector<1x1x128x128xf32> to vector<128x128xf32>
    %cst_47 = arith.constant dense<0.000000e+00> : vector<4x128xf32>
    %34 = tpu.matmul %31, %33, %cst_47 {dimension_numbers = #tpu.dot_dimension_numbers<[1], [0], [0], [1], [0, 0, 1, 1], [], []>} : vector<4x128xf32>, vector<128x128xf32>, vector<4x128xf32> -> vector<4x128xf32>
    %35 = arith.addf %28, %34 : vector<4x128xf32>
    %c0_48 = arith.constant 0 : index
    %c4 = arith.constant 4 : index
    %c0_49 = arith.constant 0 : index
    %c0_50 = arith.constant 0 : index
    %36 = vector.load %arg2[%c0_48, %c4, %c0_49, %c0_50] : memref<5x6x4x40xf32, #tpu.memory_space<vmem>>, vector<1x1x4x40xf32>
    %37 = vector.shape_cast %36 : vector<1x1x4x40xf32> to vector<4x40xf32>
    %cst_51 = arith.constant dense<0.000000e+00> : vector<4x128xf32>
    %38 = tpu.matmul %37, %6, %cst_51 {dimension_numbers = #tpu.dot_dimension_numbers<[1], [0], [0], [1], [0, 0, 1, 1], [], []>} : vector<4x40xf32>, vector<40x128xf32>, vector<4x128xf32> -> vector<4x128xf32>
    %39 = arith.addf %35, %38 : vector<4x128xf32>
    %c0_52 = arith.constant 0 : index
    %c5 = arith.constant 5 : index
    %c0_53 = arith.constant 0 : index
    %c0_54 = arith.constant 0 : index
    %40 = vector.load %arg2[%c0_52, %c5, %c0_53, %c0_54] : memref<5x6x4x40xf32, #tpu.memory_space<vmem>>, vector<1x1x4x40xf32>
    %41 = vector.shape_cast %40 : vector<1x1x4x40xf32> to vector<4x40xf32>
    %cst_55 = arith.constant dense<0.000000e+00> : vector<4x128xf32>
    %42 = tpu.matmul %41, %6, %cst_55 {dimension_numbers = #tpu.dot_dimension_numbers<[1], [0], [0], [1], [0, 0, 1, 1], [], []>} : vector<4x40xf32>, vector<40x128xf32>, vector<4x128xf32> -> vector<4x128xf32>
    %c0_56 = arith.constant 0 : index
    %c5_57 = arith.constant 5 : index
    %c0_58 = arith.constant 0 : index
    %c0_59 = arith.constant 0 : index
    %43 = vector.load %arg5[%c0_56, %c5_57, %c0_58, %c0_59] : memref<5x6x128x128xf32, #tpu.memory_space<vmem>>, vector<1x1x128x128xf32>
    %44 = vector.shape_cast %43 : vector<1x1x128x128xf32> to vector<128x128xf32>
    %cst_60 = arith.constant dense<0.000000e+00> : vector<4x128xf32>
    %45 = tpu.matmul %42, %44, %cst_60 {dimension_numbers = #tpu.dot_dimension_numbers<[1], [0], [0], [1], [0, 0, 1, 1], [], []>} : vector<4x128xf32>, vector<128x128xf32>, vector<4x128xf32> -> vector<4x128xf32>
    %46 = arith.addf %39, %45 : vector<4x128xf32>
    %c0_61 = arith.constant 0 : index
    %c0_62 = arith.constant 0 : index
    %c0_63 = arith.constant 0 : index
    %c0_64 = arith.constant 0 : index
    %47 = vector.load %arg3[%c0_61, %c0_62, %c0_63, %c0_64] : memref<5x2x4x1xf32, #tpu.memory_space<vmem>>, vector<1x1x4x1xf32>
    %48 = vector.shape_cast %47 : vector<1x1x4x1xf32> to vector<4x1xf32>
    %49 = vector.broadcast %48 : vector<4x1xf32> to vector<4x128xf32>
    %50 = arith.addf %46, %49 : vector<4x128xf32>
    %cst_65 = arith.constant dense<0.000000e+00> : vector<4x128xf32>
    %51 = tpu.matmul %50, %5, %cst_65 {dimension_numbers = #tpu.dot_dimension_numbers<[1], [0], [0], [1], [0, 0, 1, 1], [], []>} : vector<4x128xf32>, vector<128x128xf32>, vector<4x128xf32> -> vector<4x128xf32>
    %52 = arith.subf %50, %51 : vector<4x128xf32>
    %53 = arith.mulf %52, %52 : vector<4x128xf32>
    %cst_66 = arith.constant dense<0.000000e+00> : vector<4x128xf32>
    %54 = tpu.matmul %53, %5, %cst_66 {dimension_numbers = #tpu.dot_dimension_numbers<[1], [0], [0], [1], [0, 0, 1, 1], [], []>} : vector<4x128xf32>, vector<128x128xf32>, vector<4x128xf32> -> vector<4x128xf32>
    %cst_67 = arith.constant 9.99999974E-6 : f32
    %55 = vector.broadcast %cst_67 : f32 to vector<4x128xf32>
    %56 = arith.addf %54, %55 : vector<4x128xf32>
    %57 = math.rsqrt %56 : vector<4x128xf32>
    %58 = arith.mulf %52, %57 : vector<4x128xf32>
    %c0_68 = arith.constant 0 : index
    %c0_69 = arith.constant 0 : index
    %c0_70 = arith.constant 0 : index
    %c0_71 = arith.constant 0 : index
    %59 = vector.load %arg4[%c0_68, %c0_69, %c0_70, %c0_71] : memref<5x2x1x128xf32, #tpu.memory_space<vmem>>, vector<1x1x1x128xf32>
    %60 = vector.shape_cast %59 : vector<1x1x1x128xf32> to vector<1x128xf32>
    %61 = vector.broadcast %60 : vector<1x128xf32> to vector<4x128xf32>
    %62 = arith.mulf %58, %61 : vector<4x128xf32>
    %c0_72 = arith.constant 0 : index
    %c1_73 = arith.constant 1 : index
    %c0_74 = arith.constant 0 : index
    %c0_75 = arith.constant 0 : index
    %63 = vector.load %arg4[%c0_72, %c1_73, %c0_74, %c0_75] : memref<5x2x1x128xf32, #tpu.memory_space<vmem>>, vector<1x1x1x128xf32>
    %64 = vector.shape_cast %63 : vector<1x1x1x128xf32> to vector<1x128xf32>
    %65 = vector.broadcast %64 : vector<1x128xf32> to vector<4x128xf32>
    %66 = arith.addf %62, %65 : vector<4x128xf32>
    %cst_76 = arith.constant 0.000000e+00 : f32
    %67 = vector.broadcast %cst_76 : f32 to vector<4x128xf32>
    %68 = arith.cmpf oge, %66, %67 : vector<4x128xf32>
    %c0_77 = arith.constant 0 : index
    %c1_78 = arith.constant 1 : index
    %c0_79 = arith.constant 0 : index
    %c0_80 = arith.constant 0 : index
    %69 = vector.load %arg3[%c0_77, %c1_78, %c0_79, %c0_80] : memref<5x2x4x1xf32, #tpu.memory_space<vmem>>, vector<1x1x4x1xf32>
    %70 = vector.shape_cast %69 : vector<1x1x4x1xf32> to vector<4x1xf32>
    %71 = vector.broadcast %70 : vector<4x1xf32> to vector<4x128xf32>
    %72 = arith.mulf %71, %66 : vector<4x128xf32>
    %73 = arith.select %68, %66, %72 : vector<4x128xi1>, vector<4x128xf32>
    %c8 = arith.constant 8 : index
    %c0_81 = arith.constant 0 : index
    %74 = vector.load %arg8[%c8, %c0_81] : memref<40x128xf32, #tpu.memory_space<vmem>>, vector<4x128xf32>
    tpu.vector_store %arg8[%c8, %c0_81], %73 {strides = array<i32>} : memref<40x128xf32, #tpu.memory_space<vmem>>, vector<4x128xf32>,
    %c0_82 = arith.constant 0 : index
    %c0_83 = arith.constant 0 : index
    %75 = vector.load %arg8[%c0_82, %c0_83] : memref<40x128xf32, #tpu.memory_space<vmem>>, vector<40x128xf32>
    %cst_84 = arith.constant 0.000000e+00 : f32
    %76 = vector.broadcast %cst_84 : f32 to vector<4x128xf32>
    %c1_85 = arith.constant 1 : index
    %c0_86 = arith.constant 0 : index
    %c0_87 = arith.constant 0 : index
    %c0_88 = arith.constant 0 : index
    %77 = vector.load %arg2[%c1_85, %c0_86, %c0_87, %c0_88] : memref<5x6x4x40xf32, #tpu.memory_space<vmem>>, vector<1x1x4x40xf32>
    %78 = vector.shape_cast %77 : vector<1x1x4x40xf32> to vector<4x40xf32>
    %cst_89 = arith.constant dense<0.000000e+00> : vector<4x128xf32>
    %79 = tpu.matmul %78, %75, %cst_89 {dimension_numbers = #tpu.dot_dimension_numbers<[1], [0], [0], [1], [0, 0, 1, 1], [], []>} : vector<4x40xf32>, vector<40x128xf32>, vector<4x128xf32> -> vector<4x128xf32>
    %c1_90 = arith.constant 1 : index
    %c0_91 = arith.constant 0 : index
    %c0_92 = arith.constant 0 : index
    %c0_93 = arith.constant 0 : index
    %80 = vector.load %arg5[%c1_90, %c0_91, %c0_92, %c0_93] : memref<5x6x128x128xf32, #tpu.memory_space<vmem>>, vector<1x1x128x128xf32>
    %81 = vector.shape_cast %80 : vector<1x1x128x128xf32> to vector<128x128xf32>
    %cst_94 = arith.constant dense<0.000000e+00> : vector<4x128xf32>
    %82 = tpu.matmul %79, %81, %cst_94 {dimension_numbers = #tpu.dot_dimension_numbers<[1], [0], [0], [1], [0, 0, 1, 1], [], []>} : vector<4x128xf32>, vector<128x128xf32>, vector<4x128xf32> -> vector<4x128xf32>
    %83 = arith.addf %76, %82 : vector<4x128xf32>
    %c1_95 = arith.constant 1 : index
    %c1_96 = arith.constant 1 : index
    %c0_97 = arith.constant 0 : index
    %c0_98 = arith.constant 0 : index
    %84 = vector.load %arg2[%c1_95, %c1_96, %c0_97, %c0_98] : memref<5x6x4x40xf32, #tpu.memory_space<vmem>>, vector<1x1x4x40xf32>
    %85 = vector.shape_cast %84 : vector<1x1x4x40xf32> to vector<4x40xf32>
    %cst_99 = arith.constant dense<0.000000e+00> : vector<4x128xf32>
    %86 = tpu.matmul %85, %75, %cst_99 {dimension_numbers = #tpu.dot_dimension_numbers<[1], [0], [0], [1], [0, 0, 1, 1], [], []>} : vector<4x40xf32>, vector<40x128xf32>, vector<4x128xf32> -> vector<4x128xf32>
    %c1_100 = arith.constant 1 : index
    %c1_101 = arith.constant 1 : index
    %c0_102 = arith.constant 0 : index
    %c0_103 = arith.constant 0 : index
    %87 = vector.load %arg5[%c1_100, %c1_101, %c0_102, %c0_103] : memref<5x6x128x128xf32, #tpu.memory_space<vmem>>, vector<1x1x128x128xf32>
    %88 = vector.shape_cast %87 : vector<1x1x128x128xf32> to vector<128x128xf32>
    %cst_104 = arith.constant dense<0.000000e+00> : vector<4x128xf32>
    %89 = tpu.matmul %86, %88, %cst_104 {dimension_numbers = #tpu.dot_dimension_numbers<[1], [0], [0], [1], [0, 0, 1, 1], [], []>} : vector<4x128xf32>, vector<128x128xf32>, vector<4x128xf32> -> vector<4x128xf32>
    %90 = arith.addf %83, %89 : vector<4x128xf32>
    %c1_105 = arith.constant 1 : index
    %c2_106 = arith.constant 2 : index
    %c0_107 = arith.constant 0 : index
    %c0_108 = arith.constant 0 : index
    %91 = vector.load %arg2[%c1_105, %c2_106, %c0_107, %c0_108] : memref<5x6x4x40xf32, #tpu.memory_space<vmem>>, vector<1x1x4x40xf32>
    %92 = vector.shape_cast %91 : vector<1x1x4x40xf32> to vector<4x40xf32>
    %cst_109 = arith.constant dense<0.000000e+00> : vector<4x128xf32>
    %93 = tpu.matmul %92, %75, %cst_109 {dimension_numbers = #tpu.dot_dimension_numbers<[1], [0], [0], [1], [0, 0, 1, 1], [], []>} : vector<4x40xf32>, vector<40x128xf32>, vector<4x128xf32> -> vector<4x128xf32>
    %c1_110 = arith.constant 1 : index
    %c2_111 = arith.constant 2 : index
    %c0_112 = arith.constant 0 : index
    %c0_113 = arith.constant 0 : index
    %94 = vector.load %arg5[%c1_110, %c2_111, %c0_112, %c0_113] : memref<5x6x128x128xf32, #tpu.memory_space<vmem>>, vector<1x1x128x128xf32>
    %95 = vector.shape_cast %94 : vector<1x1x128x128xf32> to vector<128x128xf32>
    %cst_114 = arith.constant dense<0.000000e+00> : vector<4x128xf32>
    %96 = tpu.matmul %93, %95, %cst_114 {dimension_numbers = #tpu.dot_dimension_numbers<[1], [0], [0], [1], [0, 0, 1, 1], [], []>} : vector<4x128xf32>, vector<128x128xf32>, vector<4x128xf32> -> vector<4x128xf32>
    %97 = arith.addf %90, %96 : vector<4x128xf32>
    %c1_115 = arith.constant 1 : index
    %c3_116 = arith.constant 3 : index
    %c0_117 = arith.constant 0 : index
    %c0_118 = arith.constant 0 : index
    %98 = vector.load %arg2[%c1_115, %c3_116, %c0_117, %c0_118] : memref<5x6x4x40xf32, #tpu.memory_space<vmem>>, vector<1x1x4x40xf32>
    %99 = vector.shape_cast %98 : vector<1x1x4x40xf32> to vector<4x40xf32>
    %cst_119 = arith.constant dense<0.000000e+00> : vector<4x128xf32>
    %100 = tpu.matmul %99, %75, %cst_119 {dimension_numbers = #tpu.dot_dimension_numbers<[1], [0], [0], [1], [0, 0, 1, 1], [], []>} : vector<4x40xf32>, vector<40x128xf32>, vector<4x128xf32> -> vector<4x128xf32>
    %c1_120 = arith.constant 1 : index
    %c3_121 = arith.constant 3 : index
    %c0_122 = arith.constant 0 : index
    %c0_123 = arith.constant 0 : index
    %101 = vector.load %arg5[%c1_120, %c3_121, %c0_122, %c0_123] : memref<5x6x128x128xf32, #tpu.memory_space<vmem>>, vector<1x1x128x128xf32>
    %102 = vector.shape_cast %101 : vector<1x1x128x128xf32> to vector<128x128xf32>
    %cst_124 = arith.constant dense<0.000000e+00> : vector<4x128xf32>
    %103 = tpu.matmul %100, %102, %cst_124 {dimension_numbers = #tpu.dot_dimension_numbers<[1], [0], [0], [1], [0, 0, 1, 1], [], []>} : vector<4x128xf32>, vector<128x128xf32>, vector<4x128xf32> -> vector<4x128xf32>
    %104 = arith.addf %97, %103 : vector<4x128xf32>
    %c1_125 = arith.constant 1 : index
    %c4_126 = arith.constant 4 : index
    %c0_127 = arith.constant 0 : index
    %c0_128 = arith.constant 0 : index
    %105 = vector.load %arg2[%c1_125, %c4_126, %c0_127, %c0_128] : memref<5x6x4x40xf32, #tpu.memory_space<vmem>>, vector<1x1x4x40xf32>
    %106 = vector.shape_cast %105 : vector<1x1x4x40xf32> to vector<4x40xf32>
    %cst_129 = arith.constant dense<0.000000e+00> : vector<4x128xf32>
    %107 = tpu.matmul %106, %75, %cst_129 {dimension_numbers = #tpu.dot_dimension_numbers<[1], [0], [0], [1], [0, 0, 1, 1], [], []>} : vector<4x40xf32>, vector<40x128xf32>, vector<4x128xf32> -> vector<4x128xf32>
    %108 = arith.addf %104, %107 : vector<4x128xf32>
    %c1_130 = arith.constant 1 : index
    %c5_131 = arith.constant 5 : index
    %c0_132 = arith.constant 0 : index
    %c0_133 = arith.constant 0 : index
    %109 = vector.load %arg2[%c1_130, %c5_131, %c0_132, %c0_133] : memref<5x6x4x40xf32, #tpu.memory_space<vmem>>, vector<1x1x4x40xf32>
    %110 = vector.shape_cast %109 : vector<1x1x4x40xf32> to vector<4x40xf32>
    %cst_134 = arith.constant dense<0.000000e+00> : vector<4x128xf32>
    %111 = tpu.matmul %110, %75, %cst_134 {dimension_numbers = #tpu.dot_dimension_numbers<[1], [0], [0], [1], [0, 0, 1, 1], [], []>} : vector<4x40xf32>, vector<40x128xf32>, vector<4x128xf32> -> vector<4x128xf32>
    %c1_135 = arith.constant 1 : index
    %c5_136 = arith.constant 5 : index
    %c0_137 = arith.constant 0 : index
    %c0_138 = arith.constant 0 : index
    %112 = vector.load %arg5[%c1_135, %c5_136, %c0_137, %c0_138] : memref<5x6x128x128xf32, #tpu.memory_space<vmem>>, vector<1x1x128x128xf32>
    %113 = vector.shape_cast %112 : vector<1x1x128x128xf32> to vector<128x128xf32>
    %cst_139 = arith.constant dense<0.000000e+00> : vector<4x128xf32>
    %114 = tpu.matmul %111, %113, %cst_139 {dimension_numbers = #tpu.dot_dimension_numbers<[1], [0], [0], [1], [0, 0, 1, 1], [], []>} : vector<4x128xf32>, vector<128x128xf32>, vector<4x128xf32> -> vector<4x128xf32>
    %115 = arith.addf %108, %114 : vector<4x128xf32>
    %c1_140 = arith.constant 1 : index
    %c0_141 = arith.constant 0 : index
    %c0_142 = arith.constant 0 : index
    %c0_143 = arith.constant 0 : index
    %116 = vector.load %arg3[%c1_140, %c0_141, %c0_142, %c0_143] : memref<5x2x4x1xf32, #tpu.memory_space<vmem>>, vector<1x1x4x1xf32>
    %117 = vector.shape_cast %116 : vector<1x1x4x1xf32> to vector<4x1xf32>
    %118 = vector.broadcast %117 : vector<4x1xf32> to vector<4x128xf32>
    %119 = arith.addf %115, %118 : vector<4x128xf32>
    %cst_144 = arith.constant dense<0.000000e+00> : vector<4x128xf32>
    %120 = tpu.matmul %119, %5, %cst_144 {dimension_numbers = #tpu.dot_dimension_numbers<[1], [0], [0], [1], [0, 0, 1, 1], [], []>} : vector<4x128xf32>, vector<128x128xf32>, vector<4x128xf32> -> vector<4x128xf32>
    %121 = arith.subf %119, %120 : vector<4x128xf32>
    %122 = arith.mulf %121, %121 : vector<4x128xf32>
    %cst_145 = arith.constant dense<0.000000e+00> : vector<4x128xf32>
    %123 = tpu.matmul %122, %5, %cst_145 {dimension_numbers = #tpu.dot_dimension_numbers<[1], [0], [0], [1], [0, 0, 1, 1], [], []>} : vector<4x128xf32>, vector<128x128xf32>, vector<4x128xf32> -> vector<4x128xf32>
    %cst_146 = arith.constant 9.99999974E-6 : f32
    %124 = vector.broadcast %cst_146 : f32 to vector<4x128xf32>
    %125 = arith.addf %123, %124 : vector<4x128xf32>
    %126 = math.rsqrt %125 : vector<4x128xf32>
    %127 = arith.mulf %121, %126 : vector<4x128xf32>
    %c1_147 = arith.constant 1 : index
    %c0_148 = arith.constant 0 : index
    %c0_149 = arith.constant 0 : index
    %c0_150 = arith.constant 0 : index
    %128 = vector.load %arg4[%c1_147, %c0_148, %c0_149, %c0_150] : memref<5x2x1x128xf32, #tpu.memory_space<vmem>>, vector<1x1x1x128xf32>
    %129 = vector.shape_cast %128 : vector<1x1x1x128xf32> to vector<1x128xf32>
    %130 = vector.broadcast %129 : vector<1x128xf32> to vector<4x128xf32>
    %131 = arith.mulf %127, %130 : vector<4x128xf32>
    %c1_151 = arith.constant 1 : index
    %c1_152 = arith.constant 1 : index
    %c0_153 = arith.constant 0 : index
    %c0_154 = arith.constant 0 : index
    %132 = vector.load %arg4[%c1_151, %c1_152, %c0_153, %c0_154] : memref<5x2x1x128xf32, #tpu.memory_space<vmem>>, vector<1x1x1x128xf32>
    %133 = vector.shape_cast %132 : vector<1x1x1x128xf32> to vector<1x128xf32>
    %134 = vector.broadcast %133 : vector<1x128xf32> to vector<4x128xf32>
    %135 = arith.addf %131, %134 : vector<4x128xf32>
    %cst_155 = arith.constant 0.000000e+00 : f32
    %136 = vector.broadcast %cst_155 : f32 to vector<4x128xf32>
    %137 = arith.cmpf oge, %135, %136 : vector<4x128xf32>
    %c1_156 = arith.constant 1 : index
    %c1_157 = arith.constant 1 : index
    %c0_158 = arith.constant 0 : index
    %c0_159 = arith.constant 0 : index
    %138 = vector.load %arg3[%c1_156, %c1_157, %c0_158, %c0_159] : memref<5x2x4x1xf32, #tpu.memory_space<vmem>>, vector<1x1x4x1xf32>
    %139 = vector.shape_cast %138 : vector<1x1x4x1xf32> to vector<4x1xf32>
    %140 = vector.broadcast %139 : vector<4x1xf32> to vector<4x128xf32>
    %141 = arith.mulf %140, %135 : vector<4x128xf32>
    %142 = arith.select %137, %135, %141 : vector<4x128xi1>, vector<4x128xf32>
    %c16 = arith.constant 16 : index
    %c0_160 = arith.constant 0 : index
    %143 = vector.load %arg8[%c16, %c0_160] : memref<40x128xf32, #tpu.memory_space<vmem>>, vector<4x128xf32>
    tpu.vector_store %arg8[%c16, %c0_160], %142 {strides = array<i32>} : memref<40x128xf32, #tpu.memory_space<vmem>>, vector<4x128xf32>,
    %c0_161 = arith.constant 0 : index
    %c0_162 = arith.constant 0 : index
    %144 = vector.load %arg8[%c0_161, %c0_162] : memref<40x128xf32, #tpu.memory_space<vmem>>, vector<40x128xf32>
    %cst_163 = arith.constant 0.000000e+00 : f32
    %145 = vector.broadcast %cst_163 : f32 to vector<4x128xf32>
    %c2_164 = arith.constant 2 : index
    %c0_165 = arith.constant 0 : index
    %c0_166 = arith.constant 0 : index
    %c0_167 = arith.constant 0 : index
    %146 = vector.load %arg2[%c2_164, %c0_165, %c0_166, %c0_167] : memref<5x6x4x40xf32, #tpu.memory_space<vmem>>, vector<1x1x4x40xf32>
    %147 = vector.shape_cast %146 : vector<1x1x4x40xf32> to vector<4x40xf32>
    %cst_168 = arith.constant dense<0.000000e+00> : vector<4x128xf32>
    %148 = tpu.matmul %147, %144, %cst_168 {dimension_numbers = #tpu.dot_dimension_numbers<[1], [0], [0], [1], [0, 0, 1, 1], [], []>} : vector<4x40xf32>, vector<40x128xf32>, vector<4x128xf32> -> vector<4x128xf32>
    %c2_169 = arith.constant 2 : index
    %c0_170 = arith.constant 0 : index
    %c0_171 = arith.constant 0 : index
    %c0_172 = arith.constant 0 : index
    %149 = vector.load %arg5[%c2_169, %c0_170, %c0_171, %c0_172] : memref<5x6x128x128xf32, #tpu.memory_space<vmem>>, vector<1x1x128x128xf32>
    %150 = vector.shape_cast %149 : vector<1x1x128x128xf32> to vector<128x128xf32>
    %cst_173 = arith.constant dense<0.000000e+00> : vector<4x128xf32>
    %151 = tpu.matmul %148, %150, %cst_173 {dimension_numbers = #tpu.dot_dimension_numbers<[1], [0], [0], [1], [0, 0, 1, 1], [], []>} : vector<4x128xf32>, vector<128x128xf32>, vector<4x128xf32> -> vector<4x128xf32>
    %152 = arith.addf %145, %151 : vector<4x128xf32>
    %c2_174 = arith.constant 2 : index
    %c1_175 = arith.constant 1 : index
    %c0_176 = arith.constant 0 : index
    %c0_177 = arith.constant 0 : index
    %153 = vector.load %arg2[%c2_174, %c1_175, %c0_176, %c0_177] : memref<5x6x4x40xf32, #tpu.memory_space<vmem>>, vector<1x1x4x40xf32>
    %154 = vector.shape_cast %153 : vector<1x1x4x40xf32> to vector<4x40xf32>
    %cst_178 = arith.constant dense<0.000000e+00> : vector<4x128xf32>
    %155 = tpu.matmul %154, %144, %cst_178 {dimension_numbers = #tpu.dot_dimension_numbers<[1], [0], [0], [1], [0, 0, 1, 1], [], []>} : vector<4x40xf32>, vector<40x128xf32>, vector<4x128xf32> -> vector<4x128xf32>
    %c2_179 = arith.constant 2 : index
    %c1_180 = arith.constant 1 : index
    %c0_181 = arith.constant 0 : index
    %c0_182 = arith.constant 0 : index
    %156 = vector.load %arg5[%c2_179, %c1_180, %c0_181, %c0_182] : memref<5x6x128x128xf32, #tpu.memory_space<vmem>>, vector<1x1x128x128xf32>
    %157 = vector.shape_cast %156 : vector<1x1x128x128xf32> to vector<128x128xf32>
    %cst_183 = arith.constant dense<0.000000e+00> : vector<4x128xf32>
    %158 = tpu.matmul %155, %157, %cst_183 {dimension_numbers = #tpu.dot_dimension_numbers<[1], [0], [0], [1], [0, 0, 1, 1], [], []>} : vector<4x128xf32>, vector<128x128xf32>, vector<4x128xf32> -> vector<4x128xf32>
    %159 = arith.addf %152, %158 : vector<4x128xf32>
    %c2_184 = arith.constant 2 : index
    %c2_185 = arith.constant 2 : index
    %c0_186 = arith.constant 0 : index
    %c0_187 = arith.constant 0 : index
    %160 = vector.load %arg2[%c2_184, %c2_185, %c0_186, %c0_187] : memref<5x6x4x40xf32, #tpu.memory_space<vmem>>, vector<1x1x4x40xf32>
    %161 = vector.shape_cast %160 : vector<1x1x4x40xf32> to vector<4x40xf32>
    %cst_188 = arith.constant dense<0.000000e+00> : vector<4x128xf32>
    %162 = tpu.matmul %161, %144, %cst_188 {dimension_numbers = #tpu.dot_dimension_numbers<[1], [0], [0], [1], [0, 0, 1, 1], [], []>} : vector<4x40xf32>, vector<40x128xf32>, vector<4x128xf32> -> vector<4x128xf32>
    %c2_189 = arith.constant 2 : index
    %c2_190 = arith.constant 2 : index
    %c0_191 = arith.constant 0 : index
    %c0_192 = arith.constant 0 : index
    %163 = vector.load %arg5[%c2_189, %c2_190, %c0_191, %c0_192] : memref<5x6x128x128xf32, #tpu.memory_space<vmem>>, vector<1x1x128x128xf32>
    %164 = vector.shape_cast %163 : vector<1x1x128x128xf32> to vector<128x128xf32>
    %cst_193 = arith.constant dense<0.000000e+00> : vector<4x128xf32>
    %165 = tpu.matmul %162, %164, %cst_193 {dimension_numbers = #tpu.dot_dimension_numbers<[1], [0], [0], [1], [0, 0, 1, 1], [], []>} : vector<4x128xf32>, vector<128x128xf32>, vector<4x128xf32> -> vector<4x128xf32>
    %166 = arith.addf %159, %165 : vector<4x128xf32>
    %c2_194 = arith.constant 2 : index
    %c3_195 = arith.constant 3 : index
    %c0_196 = arith.constant 0 : index
    %c0_197 = arith.constant 0 : index
    %167 = vector.load %arg2[%c2_194, %c3_195, %c0_196, %c0_197] : memref<5x6x4x40xf32, #tpu.memory_space<vmem>>, vector<1x1x4x40xf32>
    %168 = vector.shape_cast %167 : vector<1x1x4x40xf32> to vector<4x40xf32>
    %cst_198 = arith.constant dense<0.000000e+00> : vector<4x128xf32>
    %169 = tpu.matmul %168, %144, %cst_198 {dimension_numbers = #tpu.dot_dimension_numbers<[1], [0], [0], [1], [0, 0, 1, 1], [], []>} : vector<4x40xf32>, vector<40x128xf32>, vector<4x128xf32> -> vector<4x128xf32>
    %c2_199 = arith.constant 2 : index
    %c3_200 = arith.constant 3 : index
    %c0_201 = arith.constant 0 : index
    %c0_202 = arith.constant 0 : index
    %170 = vector.load %arg5[%c2_199, %c3_200, %c0_201, %c0_202] : memref<5x6x128x128xf32, #tpu.memory_space<vmem>>, vector<1x1x128x128xf32>
    %171 = vector.shape_cast %170 : vector<1x1x128x128xf32> to vector<128x128xf32>
    %cst_203 = arith.constant dense<0.000000e+00> : vector<4x128xf32>
    %172 = tpu.matmul %169, %171, %cst_203 {dimension_numbers = #tpu.dot_dimension_numbers<[1], [0], [0], [1], [0, 0, 1, 1], [], []>} : vector<4x128xf32>, vector<128x128xf32>, vector<4x128xf32> -> vector<4x128xf32>
    %173 = arith.addf %166, %172 : vector<4x128xf32>
    %c2_204 = arith.constant 2 : index
    %c4_205 = arith.constant 4 : index
    %c0_206 = arith.constant 0 : index
    %c0_207 = arith.constant 0 : index
    %174 = vector.load %arg2[%c2_204, %c4_205, %c0_206, %c0_207] : memref<5x6x4x40xf32, #tpu.memory_space<vmem>>, vector<1x1x4x40xf32>
    %175 = vector.shape_cast %174 : vector<1x1x4x40xf32> to vector<4x40xf32>
    %cst_208 = arith.constant dense<0.000000e+00> : vector<4x128xf32>
    %176 = tpu.matmul %175, %144, %cst_208 {dimension_numbers = #tpu.dot_dimension_numbers<[1], [0], [0], [1], [0, 0, 1, 1], [], []>} : vector<4x40xf32>, vector<40x128xf32>, vector<4x128xf32> -> vector<4x128xf32>
    %177 = arith.addf %173, %176 : vector<4x128xf32>
    %c2_209 = arith.constant 2 : index
    %c5_210 = arith.constant 5 : index
    %c0_211 = arith.constant 0 : index
    %c0_212 = arith.constant 0 : index
    %178 = vector.load %arg2[%c2_209, %c5_210, %c0_211, %c0_212] : memref<5x6x4x40xf32, #tpu.memory_space<vmem>>, vector<1x1x4x40xf32>
    %179 = vector.shape_cast %178 : vector<1x1x4x40xf32> to vector<4x40xf32>
    %cst_213 = arith.constant dense<0.000000e+00> : vector<4x128xf32>
    %180 = tpu.matmul %179, %144, %cst_213 {dimension_numbers = #tpu.dot_dimension_numbers<[1], [0], [0], [1], [0, 0, 1, 1], [], []>} : vector<4x40xf32>, vector<40x128xf32>, vector<4x128xf32> -> vector<4x128xf32>
    %c2_214 = arith.constant 2 : index
    %c5_215 = arith.constant 5 : index
    %c0_216 = arith.constant 0 : index
    %c0_217 = arith.constant 0 : index
    %181 = vector.load %arg5[%c2_214, %c5_215, %c0_216, %c0_217] : memref<5x6x128x128xf32, #tpu.memory_space<vmem>>, vector<1x1x128x128xf32>
    %182 = vector.shape_cast %181 : vector<1x1x128x128xf32> to vector<128x128xf32>
    %cst_218 = arith.constant dense<0.000000e+00> : vector<4x128xf32>
    %183 = tpu.matmul %180, %182, %cst_218 {dimension_numbers = #tpu.dot_dimension_numbers<[1], [0], [0], [1], [0, 0, 1, 1], [], []>} : vector<4x128xf32>, vector<128x128xf32>, vector<4x128xf32> -> vector<4x128xf32>
    %184 = arith.addf %177, %183 : vector<4x128xf32>
    %c2_219 = arith.constant 2 : index
    %c0_220 = arith.constant 0 : index
    %c0_221 = arith.constant 0 : index
    %c0_222 = arith.constant 0 : index
    %185 = vector.load %arg3[%c2_219, %c0_220, %c0_221, %c0_222] : memref<5x2x4x1xf32, #tpu.memory_space<vmem>>, vector<1x1x4x1xf32>
    %186 = vector.shape_cast %185 : vector<1x1x4x1xf32> to vector<4x1xf32>
    %187 = vector.broadcast %186 : vector<4x1xf32> to vector<4x128xf32>
    %188 = arith.addf %184, %187 : vector<4x128xf32>
    %cst_223 = arith.constant dense<0.000000e+00> : vector<4x128xf32>
    %189 = tpu.matmul %188, %5, %cst_223 {dimension_numbers = #tpu.dot_dimension_numbers<[1], [0], [0], [1], [0, 0, 1, 1], [], []>} : vector<4x128xf32>, vector<128x128xf32>, vector<4x128xf32> -> vector<4x128xf32>
    %190 = arith.subf %188, %189 : vector<4x128xf32>
    %191 = arith.mulf %190, %190 : vector<4x128xf32>
    %cst_224 = arith.constant dense<0.000000e+00> : vector<4x128xf32>
    %192 = tpu.matmul %191, %5, %cst_224 {dimension_numbers = #tpu.dot_dimension_numbers<[1], [0], [0], [1], [0, 0, 1, 1], [], []>} : vector<4x128xf32>, vector<128x128xf32>, vector<4x128xf32> -> vector<4x128xf32>
    %cst_225 = arith.constant 9.99999974E-6 : f32
    %193 = vector.broadcast %cst_225 : f32 to vector<4x128xf32>
    %194 = arith.addf %192, %193 : vector<4x128xf32>
    %195 = math.rsqrt %194 : vector<4x128xf32>
    %196 = arith.mulf %190, %195 : vector<4x128xf32>
    %c2_226 = arith.constant 2 : index
    %c0_227 = arith.constant 0 : index
    %c0_228 = arith.constant 0 : index
    %c0_229 = arith.constant 0 : index
    %197 = vector.load %arg4[%c2_226, %c0_227, %c0_228, %c0_229] : memref<5x2x1x128xf32, #tpu.memory_space<vmem>>, vector<1x1x1x128xf32>
    %198 = vector.shape_cast %197 : vector<1x1x1x128xf32> to vector<1x128xf32>
    %199 = vector.broadcast %198 : vector<1x128xf32> to vector<4x128xf32>
    %200 = arith.mulf %196, %199 : vector<4x128xf32>
    %c2_230 = arith.constant 2 : index
    %c1_231 = arith.constant 1 : index
    %c0_232 = arith.constant 0 : index
    %c0_233 = arith.constant 0 : index
    %201 = vector.load %arg4[%c2_230, %c1_231, %c0_232, %c0_233] : memref<5x2x1x128xf32, #tpu.memory_space<vmem>>, vector<1x1x1x128xf32>
    %202 = vector.shape_cast %201 : vector<1x1x1x128xf32> to vector<1x128xf32>
    %203 = vector.broadcast %202 : vector<1x128xf32> to vector<4x128xf32>
    %204 = arith.addf %200, %203 : vector<4x128xf32>
    %cst_234 = arith.constant 0.000000e+00 : f32
    %205 = vector.broadcast %cst_234 : f32 to vector<4x128xf32>
    %206 = arith.cmpf oge, %204, %205 : vector<4x128xf32>
    %c2_235 = arith.constant 2 : index
    %c1_236 = arith.constant 1 : index
    %c0_237 = arith.constant 0 : index
    %c0_238 = arith.constant 0 : index
    %207 = vector.load %arg3[%c2_235, %c1_236, %c0_237, %c0_238] : memref<5x2x4x1xf32, #tpu.memory_space<vmem>>, vector<1x1x4x1xf32>
    %208 = vector.shape_cast %207 : vector<1x1x4x1xf32> to vector<4x1xf32>
    %209 = vector.broadcast %208 : vector<4x1xf32> to vector<4x128xf32>
    %210 = arith.mulf %209, %204 : vector<4x128xf32>
    %211 = arith.select %206, %204, %210 : vector<4x128xi1>, vector<4x128xf32>
    %c24 = arith.constant 24 : index
    %c0_239 = arith.constant 0 : index
    %212 = vector.load %arg8[%c24, %c0_239] : memref<40x128xf32, #tpu.memory_space<vmem>>, vector<4x128xf32>
    tpu.vector_store %arg8[%c24, %c0_239], %211 {strides = array<i32>} : memref<40x128xf32, #tpu.memory_space<vmem>>, vector<4x128xf32>,
    %c0_240 = arith.constant 0 : index
    %c0_241 = arith.constant 0 : index
    %213 = vector.load %arg8[%c0_240, %c0_241] : memref<40x128xf32, #tpu.memory_space<vmem>>, vector<40x128xf32>
    %cst_242 = arith.constant 0.000000e+00 : f32
    %214 = vector.broadcast %cst_242 : f32 to vector<4x128xf32>
    %c3_243 = arith.constant 3 : index
    %c0_244 = arith.constant 0 : index
    %c0_245 = arith.constant 0 : index
    %c0_246 = arith.constant 0 : index
    %215 = vector.load %arg2[%c3_243, %c0_244, %c0_245, %c0_246] : memref<5x6x4x40xf32, #tpu.memory_space<vmem>>, vector<1x1x4x40xf32>
    %216 = vector.shape_cast %215 : vector<1x1x4x40xf32> to vector<4x40xf32>
    %cst_247 = arith.constant dense<0.000000e+00> : vector<4x128xf32>
    %217 = tpu.matmul %216, %213, %cst_247 {dimension_numbers = #tpu.dot_dimension_numbers<[1], [0], [0], [1], [0, 0, 1, 1], [], []>} : vector<4x40xf32>, vector<40x128xf32>, vector<4x128xf32> -> vector<4x128xf32>
    %c3_248 = arith.constant 3 : index
    %c0_249 = arith.constant 0 : index
    %c0_250 = arith.constant 0 : index
    %c0_251 = arith.constant 0 : index
    %218 = vector.load %arg5[%c3_248, %c0_249, %c0_250, %c0_251] : memref<5x6x128x128xf32, #tpu.memory_space<vmem>>, vector<1x1x128x128xf32>
    %219 = vector.shape_cast %218 : vector<1x1x128x128xf32> to vector<128x128xf32>
    %cst_252 = arith.constant dense<0.000000e+00> : vector<4x128xf32>
    %220 = tpu.matmul %217, %219, %cst_252 {dimension_numbers = #tpu.dot_dimension_numbers<[1], [0], [0], [1], [0, 0, 1, 1], [], []>} : vector<4x128xf32>, vector<128x128xf32>, vector<4x128xf32> -> vector<4x128xf32>
    %221 = arith.addf %214, %220 : vector<4x128xf32>
    %c3_253 = arith.constant 3 : index
    %c1_254 = arith.constant 1 : index
    %c0_255 = arith.constant 0 : index
    %c0_256 = arith.constant 0 : index
    %222 = vector.load %arg2[%c3_253, %c1_254, %c0_255, %c0_256] : memref<5x6x4x40xf32, #tpu.memory_space<vmem>>, vector<1x1x4x40xf32>
    %223 = vector.shape_cast %222 : vector<1x1x4x40xf32> to vector<4x40xf32>
    %cst_257 = arith.constant dense<0.000000e+00> : vector<4x128xf32>
    %224 = tpu.matmul %223, %213, %cst_257 {dimension_numbers = #tpu.dot_dimension_numbers<[1], [0], [0], [1], [0, 0, 1, 1], [], []>} : vector<4x40xf32>, vector<40x128xf32>, vector<4x128xf32> -> vector<4x128xf32>
    %c3_258 = arith.constant 3 : index
    %c1_259 = arith.constant 1 : index
    %c0_260 = arith.constant 0 : index
    %c0_261 = arith.constant 0 : index
    %225 = vector.load %arg5[%c3_258, %c1_259, %c0_260, %c0_261] : memref<5x6x128x128xf32, #tpu.memory_space<vmem>>, vector<1x1x128x128xf32>
    %226 = vector.shape_cast %225 : vector<1x1x128x128xf32> to vector<128x128xf32>
    %cst_262 = arith.constant dense<0.000000e+00> : vector<4x128xf32>
    %227 = tpu.matmul %224, %226, %cst_262 {dimension_numbers = #tpu.dot_dimension_numbers<[1], [0], [0], [1], [0, 0, 1, 1], [], []>} : vector<4x128xf32>, vector<128x128xf32>, vector<4x128xf32> -> vector<4x128xf32>
    %228 = arith.addf %221, %227 : vector<4x128xf32>
    %c3_263 = arith.constant 3 : index
    %c2_264 = arith.constant 2 : index
    %c0_265 = arith.constant 0 : index
    %c0_266 = arith.constant 0 : index
    %229 = vector.load %arg2[%c3_263, %c2_264, %c0_265, %c0_266] : memref<5x6x4x40xf32, #tpu.memory_space<vmem>>, vector<1x1x4x40xf32>
    %230 = vector.shape_cast %229 : vector<1x1x4x40xf32> to vector<4x40xf32>
    %cst_267 = arith.constant dense<0.000000e+00> : vector<4x128xf32>
    %231 = tpu.matmul %230, %213, %cst_267 {dimension_numbers = #tpu.dot_dimension_numbers<[1], [0], [0], [1], [0, 0, 1, 1], [], []>} : vector<4x40xf32>, vector<40x128xf32>, vector<4x128xf32> -> vector<4x128xf32>
    %c3_268 = arith.constant 3 : index
    %c2_269 = arith.constant 2 : index
    %c0_270 = arith.constant 0 : index
    %c0_271 = arith.constant 0 : index
    %232 = vector.load %arg5[%c3_268, %c2_269, %c0_270, %c0_271] : memref<5x6x128x128xf32, #tpu.memory_space<vmem>>, vector<1x1x128x128xf32>
    %233 = vector.shape_cast %232 : vector<1x1x128x128xf32> to vector<128x128xf32>
    %cst_272 = arith.constant dense<0.000000e+00> : vector<4x128xf32>
    %234 = tpu.matmul %231, %233, %cst_272 {dimension_numbers = #tpu.dot_dimension_numbers<[1], [0], [0], [1], [0, 0, 1, 1], [], []>} : vector<4x128xf32>, vector<128x128xf32>, vector<4x128xf32> -> vector<4x128xf32>
    %235 = arith.addf %228, %234 : vector<4x128xf32>
    %c3_273 = arith.constant 3 : index
    %c3_274 = arith.constant 3 : index
    %c0_275 = arith.constant 0 : index
    %c0_276 = arith.constant 0 : index
    %236 = vector.load %arg2[%c3_273, %c3_274, %c0_275, %c0_276] : memref<5x6x4x40xf32, #tpu.memory_space<vmem>>, vector<1x1x4x40xf32>
    %237 = vector.shape_cast %236 : vector<1x1x4x40xf32> to vector<4x40xf32>
    %cst_277 = arith.constant dense<0.000000e+00> : vector<4x128xf32>
    %238 = tpu.matmul %237, %213, %cst_277 {dimension_numbers = #tpu.dot_dimension_numbers<[1], [0], [0], [1], [0, 0, 1, 1], [], []>} : vector<4x40xf32>, vector<40x128xf32>, vector<4x128xf32> -> vector<4x128xf32>
    %c3_278 = arith.constant 3 : index
    %c3_279 = arith.constant 3 : index
    %c0_280 = arith.constant 0 : index
    %c0_281 = arith.constant 0 : index
    %239 = vector.load %arg5[%c3_278, %c3_279, %c0_280, %c0_281] : memref<5x6x128x128xf32, #tpu.memory_space<vmem>>, vector<1x1x128x128xf32>
    %240 = vector.shape_cast %239 : vector<1x1x128x128xf32> to vector<128x128xf32>
    %cst_282 = arith.constant dense<0.000000e+00> : vector<4x128xf32>
    %241 = tpu.matmul %238, %240, %cst_282 {dimension_numbers = #tpu.dot_dimension_numbers<[1], [0], [0], [1], [0, 0, 1, 1], [], []>} : vector<4x128xf32>, vector<128x128xf32>, vector<4x128xf32> -> vector<4x128xf32>
    %242 = arith.addf %235, %241 : vector<4x128xf32>
    %c3_283 = arith.constant 3 : index
    %c4_284 = arith.constant 4 : index
    %c0_285 = arith.constant 0 : index
    %c0_286 = arith.constant 0 : index
    %243 = vector.load %arg2[%c3_283, %c4_284, %c0_285, %c0_286] : memref<5x6x4x40xf32, #tpu.memory_space<vmem>>, vector<1x1x4x40xf32>
    %244 = vector.shape_cast %243 : vector<1x1x4x40xf32> to vector<4x40xf32>
    %cst_287 = arith.constant dense<0.000000e+00> : vector<4x128xf32>
    %245 = tpu.matmul %244, %213, %cst_287 {dimension_numbers = #tpu.dot_dimension_numbers<[1], [0], [0], [1], [0, 0, 1, 1], [], []>} : vector<4x40xf32>, vector<40x128xf32>, vector<4x128xf32> -> vector<4x128xf32>
    %246 = arith.addf %242, %245 : vector<4x128xf32>
    %c3_288 = arith.constant 3 : index
    %c5_289 = arith.constant 5 : index
    %c0_290 = arith.constant 0 : index
    %c0_291 = arith.constant 0 : index
    %247 = vector.load %arg2[%c3_288, %c5_289, %c0_290, %c0_291] : memref<5x6x4x40xf32, #tpu.memory_space<vmem>>, vector<1x1x4x40xf32>
    %248 = vector.shape_cast %247 : vector<1x1x4x40xf32> to vector<4x40xf32>
    %cst_292 = arith.constant dense<0.000000e+00> : vector<4x128xf32>
    %249 = tpu.matmul %248, %213, %cst_292 {dimension_numbers = #tpu.dot_dimension_numbers<[1], [0], [0], [1], [0, 0, 1, 1], [], []>} : vector<4x40xf32>, vector<40x128xf32>, vector<4x128xf32> -> vector<4x128xf32>
    %c3_293 = arith.constant 3 : index
    %c5_294 = arith.constant 5 : index
    %c0_295 = arith.constant 0 : index
    %c0_296 = arith.constant 0 : index
    %250 = vector.load %arg5[%c3_293, %c5_294, %c0_295, %c0_296] : memref<5x6x128x128xf32, #tpu.memory_space<vmem>>, vector<1x1x128x128xf32>
    %251 = vector.shape_cast %250 : vector<1x1x128x128xf32> to vector<128x128xf32>
    %cst_297 = arith.constant dense<0.000000e+00> : vector<4x128xf32>
    %252 = tpu.matmul %249, %251, %cst_297 {dimension_numbers = #tpu.dot_dimension_numbers<[1], [0], [0], [1], [0, 0, 1, 1], [], []>} : vector<4x128xf32>, vector<128x128xf32>, vector<4x128xf32> -> vector<4x128xf32>
    %253 = arith.addf %246, %252 : vector<4x128xf32>
    %c3_298 = arith.constant 3 : index
    %c0_299 = arith.constant 0 : index
    %c0_300 = arith.constant 0 : index
    %c0_301 = arith.constant 0 : index
    %254 = vector.load %arg3[%c3_298, %c0_299, %c0_300, %c0_301] : memref<5x2x4x1xf32, #tpu.memory_space<vmem>>, vector<1x1x4x1xf32>
    %255 = vector.shape_cast %254 : vector<1x1x4x1xf32> to vector<4x1xf32>
    %256 = vector.broadcast %255 : vector<4x1xf32> to vector<4x128xf32>
    %257 = arith.addf %253, %256 : vector<4x128xf32>
    %cst_302 = arith.constant dense<0.000000e+00> : vector<4x128xf32>
    %258 = tpu.matmul %257, %5, %cst_302 {dimension_numbers = #tpu.dot_dimension_numbers<[1], [0], [0], [1], [0, 0, 1, 1], [], []>} : vector<4x128xf32>, vector<128x128xf32>, vector<4x128xf32> -> vector<4x128xf32>
    %259 = arith.subf %257, %258 : vector<4x128xf32>
    %260 = arith.mulf %259, %259 : vector<4x128xf32>
    %cst_303 = arith.constant dense<0.000000e+00> : vector<4x128xf32>
    %261 = tpu.matmul %260, %5, %cst_303 {dimension_numbers = #tpu.dot_dimension_numbers<[1], [0], [0], [1], [0, 0, 1, 1], [], []>} : vector<4x128xf32>, vector<128x128xf32>, vector<4x128xf32> -> vector<4x128xf32>
    %cst_304 = arith.constant 9.99999974E-6 : f32
    %262 = vector.broadcast %cst_304 : f32 to vector<4x128xf32>
    %263 = arith.addf %261, %262 : vector<4x128xf32>
    %264 = math.rsqrt %263 : vector<4x128xf32>
    %265 = arith.mulf %259, %264 : vector<4x128xf32>
    %c3_305 = arith.constant 3 : index
    %c0_306 = arith.constant 0 : index
    %c0_307 = arith.constant 0 : index
    %c0_308 = arith.constant 0 : index
    %266 = vector.load %arg4[%c3_305, %c0_306, %c0_307, %c0_308] : memref<5x2x1x128xf32, #tpu.memory_space<vmem>>, vector<1x1x1x128xf32>
    %267 = vector.shape_cast %266 : vector<1x1x1x128xf32> to vector<1x128xf32>
    %268 = vector.broadcast %267 : vector<1x128xf32> to vector<4x128xf32>
    %269 = arith.mulf %265, %268 : vector<4x128xf32>
    %c3_309 = arith.constant 3 : index
    %c1_310 = arith.constant 1 : index
    %c0_311 = arith.constant 0 : index
    %c0_312 = arith.constant 0 : index
    %270 = vector.load %arg4[%c3_309, %c1_310, %c0_311, %c0_312] : memref<5x2x1x128xf32, #tpu.memory_space<vmem>>, vector<1x1x1x128xf32>
    %271 = vector.shape_cast %270 : vector<1x1x1x128xf32> to vector<1x128xf32>
    %272 = vector.broadcast %271 : vector<1x128xf32> to vector<4x128xf32>
    %273 = arith.addf %269, %272 : vector<4x128xf32>
    %cst_313 = arith.constant 0.000000e+00 : f32
    %274 = vector.broadcast %cst_313 : f32 to vector<4x128xf32>
    %275 = arith.cmpf oge, %273, %274 : vector<4x128xf32>
    %c3_314 = arith.constant 3 : index
    %c1_315 = arith.constant 1 : index
    %c0_316 = arith.constant 0 : index
    %c0_317 = arith.constant 0 : index
    %276 = vector.load %arg3[%c3_314, %c1_315, %c0_316, %c0_317] : memref<5x2x4x1xf32, #tpu.memory_space<vmem>>, vector<1x1x4x1xf32>
    %277 = vector.shape_cast %276 : vector<1x1x4x1xf32> to vector<4x1xf32>
    %278 = vector.broadcast %277 : vector<4x1xf32> to vector<4x128xf32>
    %279 = arith.mulf %278, %273 : vector<4x128xf32>
    %280 = arith.select %275, %273, %279 : vector<4x128xi1>, vector<4x128xf32>
    %c32 = arith.constant 32 : index
    %c0_318 = arith.constant 0 : index
    %281 = vector.load %arg8[%c32, %c0_318] : memref<40x128xf32, #tpu.memory_space<vmem>>, vector<4x128xf32>
    tpu.vector_store %arg8[%c32, %c0_318], %280 {strides = array<i32>} : memref<40x128xf32, #tpu.memory_space<vmem>>, vector<4x128xf32>,
    %c0_319 = arith.constant 0 : index
    %c0_320 = arith.constant 0 : index
    %282 = vector.load %arg8[%c0_319, %c0_320] : memref<40x128xf32, #tpu.memory_space<vmem>>, vector<40x128xf32>
    %cst_321 = arith.constant 0.000000e+00 : f32
    %283 = vector.broadcast %cst_321 : f32 to vector<4x128xf32>
    %c4_322 = arith.constant 4 : index
    %c0_323 = arith.constant 0 : index
    %c0_324 = arith.constant 0 : index
    %c0_325 = arith.constant 0 : index
    %284 = vector.load %arg2[%c4_322, %c0_323, %c0_324, %c0_325] : memref<5x6x4x40xf32, #tpu.memory_space<vmem>>, vector<1x1x4x40xf32>
    %285 = vector.shape_cast %284 : vector<1x1x4x40xf32> to vector<4x40xf32>
    %cst_326 = arith.constant dense<0.000000e+00> : vector<4x128xf32>
    %286 = tpu.matmul %285, %282, %cst_326 {dimension_numbers = #tpu.dot_dimension_numbers<[1], [0], [0], [1], [0, 0, 1, 1], [], []>} : vector<4x40xf32>, vector<40x128xf32>, vector<4x128xf32> -> vector<4x128xf32>
    %c4_327 = arith.constant 4 : index
    %c0_328 = arith.constant 0 : index
    %c0_329 = arith.constant 0 : index
    %c0_330 = arith.constant 0 : index
    %287 = vector.load %arg5[%c4_327, %c0_328, %c0_329, %c0_330] : memref<5x6x128x128xf32, #tpu.memory_space<vmem>>, vector<1x1x128x128xf32>
    %288 = vector.shape_cast %287 : vector<1x1x128x128xf32> to vector<128x128xf32>
    %cst_331 = arith.constant dense<0.000000e+00> : vector<4x128xf32>
    %289 = tpu.matmul %286, %288, %cst_331 {dimension_numbers = #tpu.dot_dimension_numbers<[1], [0], [0], [1], [0, 0, 1, 1], [], []>} : vector<4x128xf32>, vector<128x128xf32>, vector<4x128xf32> -> vector<4x128xf32>
    %290 = arith.addf %283, %289 : vector<4x128xf32>
    %c4_332 = arith.constant 4 : index
    %c1_333 = arith.constant 1 : index
    %c0_334 = arith.constant 0 : index
    %c0_335 = arith.constant 0 : index
    %291 = vector.load %arg2[%c4_332, %c1_333, %c0_334, %c0_335] : memref<5x6x4x40xf32, #tpu.memory_space<vmem>>, vector<1x1x4x40xf32>
    %292 = vector.shape_cast %291 : vector<1x1x4x40xf32> to vector<4x40xf32>
    %cst_336 = arith.constant dense<0.000000e+00> : vector<4x128xf32>
    %293 = tpu.matmul %292, %282, %cst_336 {dimension_numbers = #tpu.dot_dimension_numbers<[1], [0], [0], [1], [0, 0, 1, 1], [], []>} : vector<4x40xf32>, vector<40x128xf32>, vector<4x128xf32> -> vector<4x128xf32>
    %c4_337 = arith.constant 4 : index
    %c1_338 = arith.constant 1 : index
    %c0_339 = arith.constant 0 : index
    %c0_340 = arith.constant 0 : index
    %294 = vector.load %arg5[%c4_337, %c1_338, %c0_339, %c0_340] : memref<5x6x128x128xf32, #tpu.memory_space<vmem>>, vector<1x1x128x128xf32>
    %295 = vector.shape_cast %294 : vector<1x1x128x128xf32> to vector<128x128xf32>
    %cst_341 = arith.constant dense<0.000000e+00> : vector<4x128xf32>
    %296 = tpu.matmul %293, %295, %cst_341 {dimension_numbers = #tpu.dot_dimension_numbers<[1], [0], [0], [1], [0, 0, 1, 1], [], []>} : vector<4x128xf32>, vector<128x128xf32>, vector<4x128xf32> -> vector<4x128xf32>
    %297 = arith.addf %290, %296 : vector<4x128xf32>
    %c4_342 = arith.constant 4 : index
    %c2_343 = arith.constant 2 : index
    %c0_344 = arith.constant 0 : index
    %c0_345 = arith.constant 0 : index
    %298 = vector.load %arg2[%c4_342, %c2_343, %c0_344, %c0_345] : memref<5x6x4x40xf32, #tpu.memory_space<vmem>>, vector<1x1x4x40xf32>
    %299 = vector.shape_cast %298 : vector<1x1x4x40xf32> to vector<4x40xf32>
    %cst_346 = arith.constant dense<0.000000e+00> : vector<4x128xf32>
    %300 = tpu.matmul %299, %282, %cst_346 {dimension_numbers = #tpu.dot_dimension_numbers<[1], [0], [0], [1], [0, 0, 1, 1], [], []>} : vector<4x40xf32>, vector<40x128xf32>, vector<4x128xf32> -> vector<4x128xf32>
    %c4_347 = arith.constant 4 : index
    %c2_348 = arith.constant 2 : index
    %c0_349 = arith.constant 0 : index
    %c0_350 = arith.constant 0 : index
    %301 = vector.load %arg5[%c4_347, %c2_348, %c0_349, %c0_350] : memref<5x6x128x128xf32, #tpu.memory_space<vmem>>, vector<1x1x128x128xf32>
    %302 = vector.shape_cast %301 : vector<1x1x128x128xf32> to vector<128x128xf32>
    %cst_351 = arith.constant dense<0.000000e+00> : vector<4x128xf32>
    %303 = tpu.matmul %300, %302, %cst_351 {dimension_numbers = #tpu.dot_dimension_numbers<[1], [0], [0], [1], [0, 0, 1, 1], [], []>} : vector<4x128xf32>, vector<128x128xf32>, vector<4x128xf32> -> vector<4x128xf32>
    %304 = arith.addf %297, %303 : vector<4x128xf32>
    %c4_352 = arith.constant 4 : index
    %c3_353 = arith.constant 3 : index
    %c0_354 = arith.constant 0 : index
    %c0_355 = arith.constant 0 : index
    %305 = vector.load %arg2[%c4_352, %c3_353, %c0_354, %c0_355] : memref<5x6x4x40xf32, #tpu.memory_space<vmem>>, vector<1x1x4x40xf32>
    %306 = vector.shape_cast %305 : vector<1x1x4x40xf32> to vector<4x40xf32>
    %cst_356 = arith.constant dense<0.000000e+00> : vector<4x128xf32>
    %307 = tpu.matmul %306, %282, %cst_356 {dimension_numbers = #tpu.dot_dimension_numbers<[1], [0], [0], [1], [0, 0, 1, 1], [], []>} : vector<4x40xf32>, vector<40x128xf32>, vector<4x128xf32> -> vector<4x128xf32>
    %c4_357 = arith.constant 4 : index
    %c3_358 = arith.constant 3 : index
    %c0_359 = arith.constant 0 : index
    %c0_360 = arith.constant 0 : index
    %308 = vector.load %arg5[%c4_357, %c3_358, %c0_359, %c0_360] : memref<5x6x128x128xf32, #tpu.memory_space<vmem>>, vector<1x1x128x128xf32>
    %309 = vector.shape_cast %308 : vector<1x1x128x128xf32> to vector<128x128xf32>
    %cst_361 = arith.constant dense<0.000000e+00> : vector<4x128xf32>
    %310 = tpu.matmul %307, %309, %cst_361 {dimension_numbers = #tpu.dot_dimension_numbers<[1], [0], [0], [1], [0, 0, 1, 1], [], []>} : vector<4x128xf32>, vector<128x128xf32>, vector<4x128xf32> -> vector<4x128xf32>
    %311 = arith.addf %304, %310 : vector<4x128xf32>
    %c4_362 = arith.constant 4 : index
    %c4_363 = arith.constant 4 : index
    %c0_364 = arith.constant 0 : index
    %c0_365 = arith.constant 0 : index
    %312 = vector.load %arg2[%c4_362, %c4_363, %c0_364, %c0_365] : memref<5x6x4x40xf32, #tpu.memory_space<vmem>>, vector<1x1x4x40xf32>
    %313 = vector.shape_cast %312 : vector<1x1x4x40xf32> to vector<4x40xf32>
    %cst_366 = arith.constant dense<0.000000e+00> : vector<4x128xf32>
    %314 = tpu.matmul %313, %282, %cst_366 {dimension_numbers = #tpu.dot_dimension_numbers<[1], [0], [0], [1], [0, 0, 1, 1], [], []>} : vector<4x40xf32>, vector<40x128xf32>, vector<4x128xf32> -> vector<4x128xf32>
    %315 = arith.addf %311, %314 : vector<4x128xf32>
    %c4_367 = arith.constant 4 : index
    %c5_368 = arith.constant 5 : index
    %c0_369 = arith.constant 0 : index
    %c0_370 = arith.constant 0 : index
    %316 = vector.load %arg2[%c4_367, %c5_368, %c0_369, %c0_370] : memref<5x6x4x40xf32, #tpu.memory_space<vmem>>, vector<1x1x4x40xf32>
    %317 = vector.shape_cast %316 : vector<1x1x4x40xf32> to vector<4x40xf32>
    %cst_371 = arith.constant dense<0.000000e+00> : vector<4x128xf32>
    %318 = tpu.matmul %317, %282, %cst_371 {dimension_numbers = #tpu.dot_dimension_numbers<[1], [0], [0], [1], [0, 0, 1, 1], [], []>} : vector<4x40xf32>, vector<40x128xf32>, vector<4x128xf32> -> vector<4x128xf32>
    %c4_372 = arith.constant 4 : index
    %c5_373 = arith.constant 5 : index
    %c0_374 = arith.constant 0 : index
    %c0_375 = arith.constant 0 : index
    %319 = vector.load %arg5[%c4_372, %c5_373, %c0_374, %c0_375] : memref<5x6x128x128xf32, #tpu.memory_space<vmem>>, vector<1x1x128x128xf32>
    %320 = vector.shape_cast %319 : vector<1x1x128x128xf32> to vector<128x128xf32>
    %cst_376 = arith.constant dense<0.000000e+00> : vector<4x128xf32>
    %321 = tpu.matmul %318, %320, %cst_376 {dimension_numbers = #tpu.dot_dimension_numbers<[1], [0], [0], [1], [0, 0, 1, 1], [], []>} : vector<4x128xf32>, vector<128x128xf32>, vector<4x128xf32> -> vector<4x128xf32>
    %322 = arith.addf %315, %321 : vector<4x128xf32>
    %c4_377 = arith.constant 4 : index
    %c0_378 = arith.constant 0 : index
    %c0_379 = arith.constant 0 : index
    %c0_380 = arith.constant 0 : index
    %323 = vector.load %arg3[%c4_377, %c0_378, %c0_379, %c0_380] : memref<5x2x4x1xf32, #tpu.memory_space<vmem>>, vector<1x1x4x1xf32>
    %324 = vector.shape_cast %323 : vector<1x1x4x1xf32> to vector<4x1xf32>
    %325 = vector.broadcast %324 : vector<4x1xf32> to vector<4x128xf32>
    %326 = arith.addf %322, %325 : vector<4x128xf32>
    %cst_381 = arith.constant dense<0.000000e+00> : vector<4x128xf32>
    %327 = tpu.matmul %326, %5, %cst_381 {dimension_numbers = #tpu.dot_dimension_numbers<[1], [0], [0], [1], [0, 0, 1, 1], [], []>} : vector<4x128xf32>, vector<128x128xf32>, vector<4x128xf32> -> vector<4x128xf32>
    %328 = arith.subf %326, %327 : vector<4x128xf32>
    %329 = arith.mulf %328, %328 : vector<4x128xf32>
    %cst_382 = arith.constant dense<0.000000e+00> : vector<4x128xf32>
    %330 = tpu.matmul %329, %5, %cst_382 {dimension_numbers = #tpu.dot_dimension_numbers<[1], [0], [0], [1], [0, 0, 1, 1], [], []>} : vector<4x128xf32>, vector<128x128xf32>, vector<4x128xf32> -> vector<4x128xf32>
    %cst_383 = arith.constant 9.99999974E-6 : f32
    %331 = vector.broadcast %cst_383 : f32 to vector<4x128xf32>
    %332 = arith.addf %330, %331 : vector<4x128xf32>
    %333 = math.rsqrt %332 : vector<4x128xf32>
    %334 = arith.mulf %328, %333 : vector<4x128xf32>
    %c4_384 = arith.constant 4 : index
    %c0_385 = arith.constant 0 : index
    %c0_386 = arith.constant 0 : index
    %c0_387 = arith.constant 0 : index
    %335 = vector.load %arg4[%c4_384, %c0_385, %c0_386, %c0_387] : memref<5x2x1x128xf32, #tpu.memory_space<vmem>>, vector<1x1x1x128xf32>
    %336 = vector.shape_cast %335 : vector<1x1x1x128xf32> to vector<1x128xf32>
    %337 = vector.broadcast %336 : vector<1x128xf32> to vector<4x128xf32>
    %338 = arith.mulf %334, %337 : vector<4x128xf32>
    %c4_388 = arith.constant 4 : index
    %c1_389 = arith.constant 1 : index
    %c0_390 = arith.constant 0 : index
    %c0_391 = arith.constant 0 : index
    %339 = vector.load %arg4[%c4_388, %c1_389, %c0_390, %c0_391] : memref<5x2x1x128xf32, #tpu.memory_space<vmem>>, vector<1x1x1x128xf32>
    %340 = vector.shape_cast %339 : vector<1x1x1x128xf32> to vector<1x128xf32>
    %341 = vector.broadcast %340 : vector<1x128xf32> to vector<4x128xf32>
    %342 = arith.addf %338, %341 : vector<4x128xf32>
    %cst_392 = arith.constant 0.000000e+00 : f32
    %343 = vector.broadcast %cst_392 : f32 to vector<4x128xf32>
    %344 = arith.cmpf oge, %342, %343 : vector<4x128xf32>
    %c4_393 = arith.constant 4 : index
    %c1_394 = arith.constant 1 : index
    %c0_395 = arith.constant 0 : index
    %c0_396 = arith.constant 0 : index
    %345 = vector.load %arg3[%c4_393, %c1_394, %c0_395, %c0_396] : memref<5x2x4x1xf32, #tpu.memory_space<vmem>>, vector<1x1x4x1xf32>
    %346 = vector.shape_cast %345 : vector<1x1x4x1xf32> to vector<4x1xf32>
    %347 = vector.broadcast %346 : vector<4x1xf32> to vector<4x128xf32>
    %348 = arith.mulf %347, %342 : vector<4x128xf32>
    %349 = arith.select %344, %342, %348 : vector<4x128xi1>, vector<4x128xf32>
    %c0_397 = arith.constant 0 : index
    %c0_398 = arith.constant 0 : index
    %c0_399 = arith.constant 0 : index
    %350 = vector.load %arg7[%c0_397, %c0_398, %c0_399] : memref<1x4x128xf32, #tpu.memory_space<vmem>>, vector<1x4x128xf32>
    %351 = vector.shape_cast %350 : vector<1x4x128xf32> to vector<4x128xf32>
    %352 = vector.shape_cast %349 : vector<4x128xf32> to vector<1x4x128xf32>
    tpu.vector_store %arg7[%c0_397, %c0_398, %c0_399], %352 {strides = array<i32>} : memref<1x4x128xf32, #tpu.memory_space<vmem>>, vector<1x4x128xf32>,
    return
  }
  func.func @transform_0(%arg0: i32) -> (i32, i32, i32) {
    %c0_i32 = arith.constant 0 : i32
    %c0_i32_0 = arith.constant 0 : i32
    %c0_i32_1 = arith.constant 0 : i32
    return %arg0, %c0_i32, %c0_i32_0 : i32, i32, i32
  }
  func.func @transform_1(%arg0: i32) -> (i32, i32, i32, i32) {
    %c0_i32 = arith.constant 0 : i32
    %c0_i32_0 = arith.constant 0 : i32
    %c0_i32_1 = arith.constant 0 : i32
    %c0_i32_2 = arith.constant 0 : i32
    %c0_i32_3 = arith.constant 0 : i32
    return %c0_i32, %c0_i32_0, %c0_i32_1, %c0_i32_2 : i32, i32, i32, i32
  }
  func.func @transform_2(%arg0: i32) -> (i32, i32, i32, i32) {
    %c0_i32 = arith.constant 0 : i32
    %c0_i32_0 = arith.constant 0 : i32
    %c0_i32_1 = arith.constant 0 : i32
    %c0_i32_2 = arith.constant 0 : i32
    %c0_i32_3 = arith.constant 0 : i32
    return %c0_i32, %c0_i32_0, %c0_i32_1, %c0_i32_2 : i32, i32, i32, i32
  }
  func.func @transform_3(%arg0: i32) -> (i32, i32, i32, i32) {
    %c0_i32 = arith.constant 0 : i32
    %c0_i32_0 = arith.constant 0 : i32
    %c0_i32_1 = arith.constant 0 : i32
    %c0_i32_2 = arith.constant 0 : i32
    %c0_i32_3 = arith.constant 0 : i32
    return %c0_i32, %c0_i32_0, %c0_i32_1, %c0_i32_2 : i32, i32, i32, i32
  }
  func.func @transform_4(%arg0: i32) -> (i32, i32, i32, i32) {
    %c0_i32 = arith.constant 0 : i32
    %c0_i32_0 = arith.constant 0 : i32
    %c0_i32_1 = arith.constant 0 : i32
    %c0_i32_2 = arith.constant 0 : i32
    %c0_i32_3 = arith.constant 0 : i32
    return %c0_i32, %c0_i32_0, %c0_i32_1, %c0_i32_2 : i32, i32, i32, i32
  }
  func.func @transform_5(%arg0: i32) -> (i32, i32) {
    %c0_i32 = arith.constant 0 : i32
    %c0_i32_0 = arith.constant 0 : i32
    %c0_i32_1 = arith.constant 0 : i32
    return %c0_i32, %c0_i32_0 : i32, i32
  }
  func.func @transform_6(%arg0: i32) -> (i32, i32, i32) {
    %c0_i32 = arith.constant 0 : i32
    %c0_i32_0 = arith.constant 0 : i32
    %c0_i32_1 = arith.constant 0 : i32
    return %arg0, %c0_i32, %c0_i32_0 : i32, i32, i32
  }
}

</mosaic_0001>

<llo_original>
// kernel: tpu_custom_call.1
$region0: #{tpu_custom_call.1}
  #allocation0 [shape = 'u32[]', space=smem, size = 0x4, offset = 0x4, fixed_abs, tag = 'smem constant byte address 0x4 - core index']
  #allocation1 [shape = 'u32[72,128]{1,0:T(1,128)}', space=vmem, size = 0x9000, scoped, tag = 'internal scratch']
  #allocation2 [shape = 'f32[40,128]{1,0:T(8,128)}', space=vmem, size = 0x5000, scoped, tag = 'scratch operand']
  %s0 = inlined_call_operand.hbm [shape: f32[2,4,128], index: 0, kind: input, shape index: {}]
  %s1 = inlined_call_operand.hbm [shape: f32[5,6,4,40], index: 1, kind: input, shape index: {}]
  %s2 = inlined_call_operand.vmem [shape: f32[5,2,4,1], index: 2, kind: input, shape index: {}]
  %s3 = inlined_call_operand.hbm [shape: f32[5,2,1,128], index: 3, kind: input, shape index: {}]
  %s4 = inlined_call_operand.hbm [shape: f32[5,6,128,128], index: 4, kind: input, shape index: {}]
  %s5 = inlined_call_operand.hbm [shape: f32[128,128], index: 5, kind: input, shape index: {}]
  %s6 = inlined_call_operand.hbm [shape: f32[2,4,128], index: 6, kind: output, shape index: {}]
  %s7 = sld [smem:[#allocation0]]
  $region77: #{tpu_custom_call.1} parent=0
    _
  %s9 = ssub.s32 1, %s7
  %s10 = scalar_select 0, %s9, %s7
  $region1: #{tpu_custom_call.1} parent=0
    #allocation3 [shape = 'u8[4096]{0}', space=vmem, size = 0x1000, scoped, tag = 'input window, operand 0']
    #allocation4 [shape = 's32[2]{0}', space=sflag, size = 0x8, scoped, tag = 'scoped memory for tpu_custom_call.1']
    #allocation5 [shape = 's32[2]{0}', space=sflag, size = 0x8, scoped, tag = 'scoped memory for tpu_custom_call.1']
    #allocation6 [shape = 'u8[61440]{0}', space=vmem, size = 0xf000, scoped, tag = 'input window, operand 1, single buffered']
    #allocation7 [shape = 's32[1]{0}', space=sflag, size = 0x4, scoped, tag = 'scoped memory for tpu_custom_call.1']
    #allocation8 [shape = 'u8[5120]{0}', space=vmem, size = 0x1400, scoped, tag = 'input window, operand 3, single buffered']
    #allocation9 [shape = 'u8[1966080]{0}', space=vmem, size = 0x1e0000, scoped, tag = 'input window, operand 4, single buffered']
    #allocation10 [shape = 's32[1]{0}', space=sflag, size = 0x4, scoped, tag = 'scoped memory for tpu_custom_call.1']
    #allocation11 [shape = 'u8[65536]{0}', space=vmem, size = 0x10000, scoped, tag = 'input window, operand 5, single buffered']
    #allocation12 [shape = 'u8[4096]{0}', space=vmem, size = 0x1000, scoped, tag = 'output window, operand 0']
    %11 = vsyncpa [#allocation4], 0
    %s12 = scalar_lea.sflag [#allocation4], 1
    %13 = vsyncpa %s12, 0
    %14 = vsyncpa [#allocation7], 0
    %15 = vsyncpa [#allocation10], 0
    %16 = vsyncpa [#allocation5], 0
    %s17 = scalar_lea.sflag [#allocation5], 1
    %18 = vsyncpa %s17, 0
    loop: start=0, step=1, limit=4
    $region2: #{tpu_custom_call.1} parent=1 // loop_pre_header
      _
    $region3: #{tpu_custom_call.1} parent=1 // loop_header
      %s20 = sphi 0, %s24
      %p21 = scmp.ge.s32.totalorder %s20, 4
      %s30 = sphi 0, %s32
      %s33 = sphi 0, %s30
      %s34 = sphi 0, %s33
      %s50 = sphi 0, %s34
      %s54 = sphi 0, %s54
      %s56 = sphi 0, %s54
      %s57 = sphi 0, %s56
      %s71 = sphi 0, %s57
      %s75 = sphi 0, %s75
      %s77 = sphi 0, %s75
      %s78 = sphi 0, %s77
      %s92 = sphi 0, %s78
      %s96 = sphi 0, %s96
      %s98 = sphi 0, %s96
      %s99 = sphi 0, %s98
      %s113 = sphi 0, %s99
      %s117 = sphi 0, %s117
      %s119 = sphi 0, %s117
      %s120 = sphi 0, %s119
      %s134 = sphi 0, %s120
      %s138 = sphi 0, %s138
      %s140 = sphi 0, %s138
      %s141 = sphi 0, %s140
      %s155 = sphi 0, %s141
      %s161 = sphi 0, %s163
      %s164 = sphi 0, %s161
      %s165 = sphi 0, %s164
      %s181 = sphi 0, %s165
    $region4: #{tpu_custom_call.1} parent=1 // loop_header_branch
      %23 = sbr.rel (%p21) target = $region8
    $region5: #{tpu_custom_call.1} parent=1 // loop_body
      %s25 = ssub.s32 %s20, 1
      %s26 = ssub.s32 %s20, 2
      %s27 = sadd.s32 %s20, 1
      %s28 = ssub.s32 %s20, %s27
      %p29 = scmp.eq.s32.totalorder %s28, 0
      %s31 = sadd.s32 %s30, 1
      %s32 = scalar_select %p29, %s30, %s31
      %p35 = pneg %p29
      %p36 = scmp.eq.s32.totalorder %s20, 1
      %p37 = por %p35, %p36
      %p38 = scmp.ne.s32.totalorder %s30, %s33
      %p39 = scmp.eq.s32.totalorder %s20, 0
      %p40 = por %p38, %p39
      %p41 = scmp.ne.s32.totalorder %s30, %s33
      %p42 = scmp.eq.s32.totalorder %s25, 1
      %p43 = por %p41, %p42
      %p44 = scmp.ne.s32.totalorder %s33, %s34
      %p45 = scmp.eq.s32.totalorder %s25, 0
      %p46 = por %p44, %p45
      %p47 = scmp.ne.s32.totalorder %s33, %s34
      %p48 = scmp.eq.s32.totalorder %s26, 1
      %p49 = por %p47, %p48
      %p51 = scmp.ne.s32.totalorder %s34, %s50
      %p52 = scmp.eq.s32.totalorder %s26, 0
      %p53 = por %p51, %p52
      %s55 = sadd.s32 %s54, 1
      %p58 = scmp.eq.s32.totalorder %s20, 1
      %p59 = scmp.ne.s32.totalorder %s54, %s56
      %p60 = scmp.eq.s32.totalorder %s20, 0
      %p61 = por %p59, %p60
      %p62 = scmp.ne.s32.totalorder %s54, %s56
      %p63 = scmp.eq.s32.totalorder %s25, 1
      %p64 = por %p62, %p63
      %p65 = scmp.ne.s32.totalorder %s56, %s57
      %p66 = scmp.eq.s32.totalorder %s25, 0
      %p67 = por %p65, %p66
      %p68 = scmp.ne.s32.totalorder %s56, %s57
      %p69 = scmp.eq.s32.totalorder %s26, 1
      %p70 = por %p68, %p69
      %p72 = scmp.ne.s32.totalorder %s57, %s71
      %p73 = scmp.eq.s32.totalorder %s26, 0
      %p74 = por %p72, %p73
      %s76 = sadd.s32 %s75, 1
      %p79 = scmp.eq.s32.totalorder %s20, 1
      %p80 = scmp.ne.s32.totalorder %s75, %s77
      %p81 = scmp.eq.s32.totalorder %s20, 0
      %p82 = por %p80, %p81
      %p83 = scmp.ne.s32.totalorder %s75, %s77
      %p84 = scmp.eq.s32.totalorder %s25, 1
      %p85 = por %p83, %p84
      %p86 = scmp.ne.s32.totalorder %s77, %s78
      %p87 = scmp.eq.s32.totalorder %s25, 0
      %p88 = por %p86, %p87
      %p89 = scmp.ne.s32.totalorder %s77, %s78
      %p90 = scmp.eq.s32.totalorder %s26, 1
      %p91 = por %p89, %p90
      %p93 = scmp.ne.s32.totalorder %s78, %s92
      %p94 = scmp.eq.s32.totalorder %s26, 0
      %p95 = por %p93, %p94
      %s97 = sadd.s32 %s96, 1
      %p100 = scmp.eq.s32.totalorder %s20, 1
      %p101 = scmp.ne.s32.totalorder %s96, %s98
      %p102 = scmp.eq.s32.totalorder %s20, 0
      %p103 = por %p101, %p102
      %p104 = scmp.ne.s32.totalorder %s96, %s98
      %p105 = scmp.eq.s32.totalorder %s25, 1
      %p106 = por %p104, %p105
      %p107 = scmp.ne.s32.totalorder %s98, %s99
      %p108 = scmp.eq.s32.totalorder %s25, 0
      %p109 = por %p107, %p108
      %p110 = scmp.ne.s32.totalorder %s98, %s99
      %p111 = scmp.eq.s32.totalorder %s26, 1
      %p112 = por %p110, %p111
      %p114 = scmp.ne.s32.totalorder %s99, %s113
      %p115 = scmp.eq.s32.totalorder %s26, 0
      %p116 = por %p114, %p115
      %s118 = sadd.s32 %s117, 1
      %p121 = scmp.eq.s32.totalorder %s20, 1
      %p122 = scmp.ne.s32.totalorder %s117, %s119
      %p123 = scmp.eq.s32.totalorder %s20, 0
      %p124 = por %p122, %p123
      %p125 = scmp.ne.s32.totalorder %s117, %s119
      %p126 = scmp.eq.s32.totalorder %s25, 1
      %p127 = por %p125, %p126
      %p128 = scmp.ne.s32.totalorder %s119, %s120
      %p129 = scmp.eq.s32.totalorder %s25, 0
      %p130 = por %p128, %p129
      %p131 = scmp.ne.s32.totalorder %s119, %s120
      %p132 = scmp.eq.s32.totalorder %s26, 1
      %p133 = por %p131, %p132
      %p135 = scmp.ne.s32.totalorder %s120, %s134
      %p136 = scmp.eq.s32.totalorder %s26, 0
      %p137 = por %p135, %p136
      %s139 = sadd.s32 %s138, 1
      %p142 = scmp.eq.s32.totalorder %s20, 1
      %p143 = scmp.ne.s32.totalorder %s138, %s140
      %p144 = scmp.eq.s32.totalorder %s20, 0
      %p145 = por %p143, %p144
      %p146 = scmp.ne.s32.totalorder %s138, %s140
      %p147 = scmp.eq.s32.totalorder %s25, 1
      %p148 = por %p146, %p147
      %p149 = scmp.ne.s32.totalorder %s140, %s141
      %p150 = scmp.eq.s32.totalorder %s25, 0
      %p151 = por %p149, %p150
      %p152 = scmp.ne.s32.totalorder %s140, %s141
      %p153 = scmp.eq.s32.totalorder %s26, 1
      %p154 = por %p152, %p153
      %p156 = scmp.ne.s32.totalorder %s141, %s155
      %p157 = scmp.eq.s32.totalorder %s26, 0
      %p158 = por %p156, %p157
      %s159 = ssub.s32 %s20, %s27
      %p160 = scmp.eq.s32.totalorder %s159, 0
      %s162 = sadd.s32 %s161, 1
      %s163 = scalar_select %p160, %s161, %s162
      %p166 = pneg %p160
      %p167 = scmp.eq.s32.totalorder %s20, 1
      %p168 = por %p166, %p167
      %p169 = scmp.ne.s32.totalorder %s161, %s164
      %p170 = scmp.eq.s32.totalorder %s20, 0
      %p171 = por %p169, %p170
      %p172 = scmp.ne.s32.totalorder %s161, %s164
      %p173 = scmp.eq.s32.totalorder %s25, 1
      %p174 = por %p172, %p173
      %p175 = scmp.ne.s32.totalorder %s164, %s165
      %p176 = scmp.eq.s32.totalorder %s25, 0
      %p177 = por %p175, %p176
      %p178 = scmp.ne.s32.totalorder %s164, %s165
      %p179 = scmp.eq.s32.totalorder %s26, 1
      %p180 = por %p178, %p179
      %p182 = scmp.ne.s32.totalorder %s165, %s181
      %p183 = scmp.eq.s32.totalorder %s26, 0
      %p184 = por %p182, %p183
      %p185 = scmp.le.s32.totalorder 1, %s20
      %p186 = scmp.lt.s32.totalorder %s20, 3
      %p187 = pnand %p185, %p186
      %p188 = pneg %p187
      // Predicated region
      $region9: #{tpu_custom_call.1} parent=5 // pred_check
        _
      $region10: #{tpu_custom_call.1} parent=5 // pred_check_branch
        %190 = sbr.rel (%p187) target = $region12
      $region11: #{tpu_custom_call.1} parent=5 // pred_region
        %s191 = ssub.s32 %s20, 1
        // Predicated region
        $region13: #{tpu_custom_call.1} parent=11 // pred_check
          %p192 = pneg %p67
        $region14: #{tpu_custom_call.1} parent=11 // pred_check_branch
          %194 = sbr.rel (%p192) target = $region16
        $region15: #{tpu_custom_call.1} parent=11 // pred_region
          %196 = vsyncadd [#allocation7], 0
          %s197 = sshll.u32 %s1, 4
          %s198 = int_to_ptr.hbm [resolvable:$true] %s197
          %s199 = sshll.u32 [#allocation6], 4
          %s200 = int_to_ptr.vmem [resolvable:$true] %s199
          %205 = dma.hbm_to_vmem [thread:$0]  %s198, 1920, %s200, [#allocation7], 64, 64, 4
        $region16: #{tpu_custom_call.1} parent=11 // pred_fallthru
          _
        // Predicated region
        $region17: #{tpu_custom_call.1} parent=11 // pred_check
          %p206 = pneg %p88
        $region18: #{tpu_custom_call.1} parent=11 // pred_check_branch
          %208 = sbr.rel (%p206) target = $region20
        $region19: #{tpu_custom_call.1} parent=11 // pred_region
          _
        $region20: #{tpu_custom_call.1} parent=11 // pred_fallthru
          _
        // Predicated region
        $region21: #{tpu_custom_call.1} parent=11 // pred_check
          %p209 = pneg %p109
        $region22: #{tpu_custom_call.1} parent=11 // pred_check_branch
          %211 = sbr.rel (%p209) target = $region24
        $region23: #{tpu_custom_call.1} parent=11 // pred_region
          %213 = vsyncadd [#allocation7], 0
          %s214 = sshll.u32 %s3, 4
          %s215 = int_to_ptr.hbm [resolvable:$true] %s214
          %s216 = sshll.u32 [#allocation8], 4
          %s217 = int_to_ptr.vmem [resolvable:$true] %s216
          %222 = dma.hbm_to_vmem [thread:$0]  %s215, 160, %s217, [#allocation7], 16, 16, 1
        $region24: #{tpu_custom_call.1} parent=11 // pred_fallthru
          _
        // Predicated region
        $region25: #{tpu_custom_call.1} parent=11 // pred_check
          %p223 = pneg %p130
        $region26: #{tpu_custom_call.1} parent=11 // pred_check_branch
          %225 = sbr.rel (%p223) target = $region28
        $region27: #{tpu_custom_call.1} parent=11 // pred_region
          %227 = vsyncadd [#allocation10], 0
          %s228 = sshll.u32 %s4, 4
          %s229 = int_to_ptr.hbm [resolvable:$true] %s228
          %s230 = sshll.u32 [#allocation9], 4
          %s231 = int_to_ptr.vmem [resolvable:$true] %s230
          %236 = dma.hbm_to_vmem [thread:$0]  %s229, 61440, %s231, [#allocation10], 128, 128, 8
        $region28: #{tpu_custom_call.1} parent=11 // pred_fallthru
          _
        // Predicated region
        $region29: #{tpu_custom_call.1} parent=11 // pred_check
          %p237 = pneg %p151
        $region30: #{tpu_custom_call.1} parent=11 // pred_check_branch
          %239 = sbr.rel (%p237) target = $region32
        $region31: #{tpu_custom_call.1} parent=11 // pred_region
          %241 = vsyncadd [#allocation10], 0
          %s242 = sshll.u32 %s5, 4
          %s243 = int_to_ptr.hbm [resolvable:$true] %s242
          %s244 = sshll.u32 [#allocation11], 4
          %s245 = int_to_ptr.vmem [resolvable:$true] %s244
          %250 = dma.hbm_to_vmem [thread:$0]  %s243, 2048, %s245, [#allocation10], 128, 128, 8
        $region32: #{tpu_custom_call.1} parent=11 // pred_fallthru
          _
      $region12: #{tpu_custom_call.1} parent=5 // pred_fallthru
        _
      %p251 = scmp.lt.s32.totalorder %s20, 2
      // Predicated region
      $region33: #{tpu_custom_call.1} parent=5 // pred_check
        %p252 = pneg %p251
      $region34: #{tpu_custom_call.1} parent=5 // pred_check_branch
        %254 = sbr.rel (%p252) target = $region36
      $region35: #{tpu_custom_call.1} parent=5 // pred_region
        // Predicated region
        $region37: #{tpu_custom_call.1} parent=35 // pred_check
          %p255 = pneg %p40
        $region38: #{tpu_custom_call.1} parent=35 // pred_check_branch
          %257 = sbr.rel (%p255) target = $region40
        $region39: #{tpu_custom_call.1} parent=35 // pred_region
          %s258 = sand.u32 %s30, 1
          %s259 = scalar_lea.sflag [#allocation4], %s258
          %s260 = sand.u32 %s30, 1
          %s261 = smul.addr %s260, 4
          %s262 = scalar_lea.vmem [#allocation3], %s261
          %264 = vsyncadd %s259, 0
          %s265 = smul.addr %s20, 4
          %s266 = scalar_lea.hbm %s0, %s265
          %s268 = sshll.u32 %s266, 4
          %s269 = int_to_ptr.hbm [resolvable:$true] %s268
          %s270 = sshll.u32 %s262, 4
          %s271 = int_to_ptr.vmem [resolvable:$true] %s270
          %273 = dma.hbm_to_vmem [thread:$0]  %s269, 64, %s271, %s259
        $region40: #{tpu_custom_call.1} parent=35 // pred_fallthru
          _
      $region36: #{tpu_custom_call.1} parent=5 // pred_fallthru
        _
      %p274 = scmp.le.s32.totalorder 1, %s20
      %p275 = scmp.lt.s32.totalorder %s20, 3
      %p276 = pnand %p274, %p275
      %p277 = pneg %p276
      // Predicated region
      $region41: #{tpu_custom_call.1} parent=5 // pred_check
        _
      $region42: #{tpu_custom_call.1} parent=5 // pred_check_branch
        %279 = sbr.rel (%p276) target = $region44
      $region43: #{tpu_custom_call.1} parent=5 // pred_region
        %s280 = ssub.s32 %s20, 1
        %s281 = sand.u32 %s33, 1
        %s282 = scalar_lea.sflag [#allocation4], %s281
        %s283 = sand.u32 %s33, 1
        %s284 = smul.addr %s283, 4
        %s285 = scalar_lea.vmem [#allocation3], %s284
        // Predicated region
        $region45: #{tpu_custom_call.1} parent=43 // pred_check
          %p286 = pneg %p46
        $region46: #{tpu_custom_call.1} parent=43 // pred_check_branch
          %288 = sbr.rel (%p286) target = $region48
        $region47: #{tpu_custom_call.1} parent=43 // pred_region
          %290 = dma.done %s282, 64
        $region48: #{tpu_custom_call.1} parent=43 // pred_fallthru
          _
        // Predicated region
        $region49: #{tpu_custom_call.1} parent=43 // pred_check
          %p291 = pneg %p67
        $region50: #{tpu_custom_call.1} parent=43 // pred_check_branch
          %293 = sbr.rel (%p291) target = $region52
        $region51: #{tpu_custom_call.1} parent=43 // pred_region
          %295 = dma.done [#allocation7], 1920
        $region52: #{tpu_custom_call.1} parent=43 // pred_fallthru
          _
        // Predicated region
        $region53: #{tpu_custom_call.1} parent=43 // pred_check
          %p296 = pneg %p109
        $region54: #{tpu_custom_call.1} parent=43 // pred_check_branch
          %298 = sbr.rel (%p296) target = $region56
        $region55: #{tpu_custom_call.1} parent=43 // pred_region
          %300 = dma.done [#allocation7], 160
        $region56: #{tpu_custom_call.1} parent=43 // pred_fallthru
          _
        // Predicated region
        $region57: #{tpu_custom_call.1} parent=43 // pred_check
          %p301 = pneg %p130
        $region58: #{tpu_custom_call.1} parent=43 // pred_check_branch
          %303 = sbr.rel (%p301) target = $region60
        $region59: #{tpu_custom_call.1} parent=43 // pred_region
          %305 = dma.done [#allocation10], 61440
        $region60: #{tpu_custom_call.1} parent=43 // pred_fallthru
          _
        // Predicated region
        $region61: #{tpu_custom_call.1} parent=43 // pred_check
          %p306 = pneg %p151
        $region62: #{tpu_custom_call.1} parent=43 // pred_check_branch
          %308 = sbr.rel (%p306) target = $region64
        $region63: #{tpu_custom_call.1} parent=43 // pred_region
          %310 = dma.done [#allocation10], 2048
        $region64: #{tpu_custom_call.1} parent=43 // pred_fallthru
          _
        %s311 = sand.u32 %s33, 1
        %s312 = scalar_lea.sflag [#allocation4], %s311
        %s313 = sand.u32 %s33, 1
        %s314 = smul.addr %s313, 4
        %s315 = scalar_lea.vmem [#allocation3], %s314
        %p316 = pneg %p46
        %p317 = pneg %p43
        %p318 = pneg %p67
        %p319 = pneg %p64
        %p320 = pneg %p88
        %p321 = pneg %p85
        %p322 = pneg %p109
        %p323 = pneg %p106
        %p324 = pneg %p130
        %p325 = pneg %p127
        %p326 = pneg %p151
        %p327 = pneg %p148
        %p328 = pneg %p177
        %p329 = pneg %p174
        %s330 = sand.u32 %s164, 1
        %s331 = scalar_lea.sflag [#allocation5], %s330
        %s332 = sand.u32 %s164, 1
        %s333 = smul.addr %s332, 4
        %s334 = scalar_lea.vmem [#allocation12], %s333
        %335 = vst [vmem:[#allocation2] sm:$0xff] 0.0
        %336 = vst [vmem:[#allocation2 + $0x8] sm:$0xff] 0.0
        %337 = vst [vmem:[#allocation2 + $0x10] sm:$0xff] 0.0
        %338 = vst [vmem:[#allocation2 + $0x18] sm:$0xff] 0.0
        %339 = vst [vmem:[#allocation2 + $0x20] sm:$0xff] 0.0
        %v340 = vld [vmem:[%s285] sm:$0xf]
        %341 = vst [vmem:[#allocation2] sm:$0xf] %v340
        %v342 = vld [vmem:[#allocation11] sm:$0xff]
        %v343 = vld [vmem:[#allocation11 + $0x8] sm:$0xff]
        %v344 = vld [vmem:[#allocation11 + $0x10] sm:$0xff]
        %v345 = vld [vmem:[#allocation11 + $0x18] sm:$0xff]
        %v346 = vld [vmem:[#allocation11 + $0x20] sm:$0xff]
        %v347 = vld [vmem:[#allocation11 + $0x28] sm:$0xff]
        %v348 = vld [vmem:[#allocation11 + $0x30] sm:$0xff]
        %v349 = vld [vmem:[#allocation11 + $0x38] sm:$0xff]
        %v350 = vld [vmem:[#allocation11 + $0x40] sm:$0xff]
        %v351 = vld [vmem:[#allocation11 + $0x48] sm:$0xff]
        %v352 = vld [vmem:[#allocation11 + $0x50] sm:$0xff]
        %v353 = vld [vmem:[#allocation11 + $0x58] sm:$0xff]
        %v354 = vld [vmem:[#allocation11 + $0x60] sm:$0xff]
        %v355 = vld [vmem:[#allocation11 + $0x68] sm:$0xff]
        %v356 = vld [vmem:[#allocation11 + $0x70] sm:$0xff]
        %v357 = vld [vmem:[#allocation11 + $0x78] sm:$0xff]
        %v358 = vld [vmem:[#allocation2] sm:$0xff]
        %v359 = vld [vmem:[#allocation2 + $0x8] sm:$0xff]
        %v360 = vld [vmem:[#allocation2 + $0x10] sm:$0xff]
        %v361 = vld [vmem:[#allocation2 + $0x18] sm:$0xff]
        %v362 = vld [vmem:[#allocation2 + $0x20] sm:$0xff]
        %v363 = vld [vmem:[#allocation6] sm:$0xf]
        %vm364 = vcmask 326656
        %v366 = vsel %vm364, %v363, 0
        %368 = vmatpush.msra.mxu0 0.0
        %369 = vmatpush.msra.mxu0 0.0
        %370 = vmatpush.msra.mxu0 0.0
        %371 = vmatpush.msra.mxu0 0.0
        %372 = vmatpush.msra.mxu0 0.0
        %373 = vmatpush.msra.mxu0 0.0
        %374 = vmatpush.msra.mxu0 0.0
        %375 = vmatpush.msra.mxu0 0.0
        %376 = vmatpush.msra.mxu0 0.0
        %377 = vmatpush.msra.mxu0 0.0
        %378 = vmatpush.msra.mxu0 0.0
        %379 = vmatpush.msra.mxu0 %v362
        %380 = vmatpush.msra.mxu0 %v361
        %381 = vmatpush.msra.mxu0 %v360
        %382 = vmatpush.msra.mxu0 %v359
        %383 = vmatpush.msra.mxu0 %v358
        %384 = vmatmul.f32.gmra.mxu0 %v366
        %v385 = vpop.f32.mrf.mxu0
        %v386 = vadd.f32 0.0, %v385
        %387 = vdwg.mxu0
        %v388 = vld [vmem:[#allocation9] sm:$0xff]
        %v389 = vld [vmem:[#allocation9 + $0x8] sm:$0xff]
        %v390 = vld [vmem:[#allocation9 + $0x10] sm:$0xff]
        %v391 = vld [vmem:[#allocation9 + $0x18] sm:$0xff]
        %v392 = vld [vmem:[#allocation9 + $0x20] sm:$0xff]
        %v393 = vld [vmem:[#allocation9 + $0x28] sm:$0xff]
        %v394 = vld [vmem:[#allocation9 + $0x30] sm:$0xff]
        %v395 = vld [vmem:[#allocation9 + $0x38] sm:$0xff]
        %v396 = vld [vmem:[#allocation9 + $0x40] sm:$0xff]
        %v397 = vld [vmem:[#allocation9 + $0x48] sm:$0xff]
        %v398 = vld [vmem:[#allocation9 + $0x50] sm:$0xff]
        %v399 = vld [vmem:[#allocation9 + $0x58] sm:$0xff]
        %v400 = vld [vmem:[#allocation9 + $0x60] sm:$0xff]
        %v401 = vld [vmem:[#allocation9 + $0x68] sm:$0xff]
        %v402 = vld [vmem:[#allocation9 + $0x70] sm:$0xff]
        %v403 = vld [vmem:[#allocation9 + $0x78] sm:$0xff]
        %s404 = scalar_lea.vmem [#allocation6], 4
        %v405 = vld [vmem:[%s404] sm:$0xf]
        %v407 = vsel %vm364, %v405, 0
        %409 = vmatpush.msra.mxu0 0.0
        %410 = vmatpush.msra.mxu0 0.0
        %411 = vmatpush.msra.mxu0 0.0
        %412 = vmatpush.msra.mxu0 0.0
        %413 = vmatpush.msra.mxu0 0.0
        %414 = vmatpush.msra.mxu0 0.0
        %415 = vmatpush.msra.mxu0 0.0
        %416 = vmatpush.msra.mxu0 0.0
        %417 = vmatpush.msra.mxu0 0.0
        %418 = vmatpush.msra.mxu0 0.0
        %419 = vmatpush.msra.mxu0 0.0
        %420 = vmatpush.msra.mxu0 %v362
        %421 = vmatpush.msra.mxu0 %v361
        %422 = vmatpush.msra.mxu0 %v360
        %423 = vmatpush.msra.mxu0 %v359
        %424 = vmatpush.msra.mxu0 %v358
        %425 = vmatmul.f32.gmra.mxu0 %v407
        %v426 = vpop.f32.mrf.mxu0
        %v427 = vadd.f32 0.0, %v426
        %428 = vdwg.mxu0
        %s429 = scalar_lea.vmem [#allocation9], 128
        %v430 = vld [vmem:[%s429] sm:$0xff]
        %v431 = vld [vmem:[%s429 + $0x8] sm:$0xff]
        %v432 = vld [vmem:[%s429 + $0x10] sm:$0xff]
        %v433 = vld [vmem:[%s429 + $0x18] sm:$0xff]
        %v434 = vld [vmem:[%s429 + $0x20] sm:$0xff]
        %v435 = vld [vmem:[%s429 + $0x28] sm:$0xff]
        %v436 = vld [vmem:[%s429 + $0x30] sm:$0xff]
        %v437 = vld [vmem:[%s429 + $0x38] sm:$0xff]
        %v438 = vld [vmem:[%s429 + $0x40] sm:$0xff]
        %v439 = vld [vmem:[%s429 + $0x48] sm:$0xff]
        %v440 = vld [vmem:[%s429 + $0x50] sm:$0xff]
        %v441 = vld [vmem:[%s429 + $0x58] sm:$0xff]
        %v442 = vld [vmem:[%s429 + $0x60] sm:$0xff]
        %v443 = vld [vmem:[%s429 + $0x68] sm:$0xff]
        %v444 = vld [vmem:[%s429 + $0x70] sm:$0xff]
        %v445 = vld [vmem:[%s429 + $0x78] sm:$0xff]
        %446 = vmatpush.msra.mxu0 %v445
        %447 = vmatpush.msra.mxu0 %v444
        %448 = vmatpush.msra.mxu0 %v443
        %449 = vmatpush.msra.mxu0 %v442
        %450 = vmatpush.msra.mxu0 %v441
        %451 = vmatpush.msra.mxu0 %v440
        %452 = vmatpush.msra.mxu0 %v439
        %453 = vmatpush.msra.mxu0 %v438
        %454 = vmatpush.msra.mxu0 %v437
        %455 = vmatpush.msra.mxu0 %v436
        %456 = vmatpush.msra.mxu0 %v435
        %457 = vmatpush.msra.mxu0 %v434
        %458 = vmatpush.msra.mxu0 %v433
        %459 = vmatpush.msra.mxu0 %v432
        %460 = vmatpush.msra.mxu0 %v431
        %461 = vmatpush.msra.mxu0 %v430
        %462 = vmatmul.f32.gmra.mxu0 %v427
        %v463 = vpop.f32.mrf.mxu0
        %v464 = vadd.f32 0.0, %v463
        %465 = vdwg.mxu0
        %466 = vmatpush.msra.mxu0 %v403
        %467 = vmatpush.msra.mxu0 %v402
        %468 = vmatpush.msra.mxu0 %v401
        %469 = vmatpush.msra.mxu0 %v400
        %470 = vmatpush.msra.mxu0 %v399
        %471 = vmatpush.msra.mxu0 %v398
        %472 = vmatpush.msra.mxu0 %v397
        %473 = vmatpush.msra.mxu0 %v396
        %474 = vmatpush.msra.mxu0 %v395
        %475 = vmatpush.msra.mxu0 %v394
        %476 = vmatpush.msra.mxu0 %v393
        %477 = vmatpush.msra.mxu0 %v392
        %478 = vmatpush.msra.mxu0 %v391
        %479 = vmatpush.msra.mxu0 %v390
        %480 = vmatpush.msra.mxu0 %v389
        %481 = vmatpush.msra.mxu0 %v388
        %482 = vmatmul.f32.gmra.mxu0 %v386
        %v483 = vpop.f32.mrf.mxu0
        %v484 = vadd.f32 %v464, %v483
        %485 = vdwg.mxu0
        %s486 = scalar_lea.vmem [#allocation6], 8
        %v487 = vld [vmem:[%s486] sm:$0xf]
        %v489 = vsel %vm364, %v487, 0
        %491 = vmatpush.msra.mxu0 0.0
        %492 = vmatpush.msra.mxu0 0.0
        %493 = vmatpush.msra.mxu0 0.0
        %494 = vmatpush.msra.mxu0 0.0
        %495 = vmatpush.msra.mxu0 0.0
        %496 = vmatpush.msra.mxu0 0.0
        %497 = vmatpush.msra.mxu0 0.0
        %498 = vmatpush.msra.mxu0 0.0
        %499 = vmatpush.msra.mxu0 0.0
        %500 = vmatpush.msra.mxu0 0.0
        %501 = vmatpush.msra.mxu0 0.0
        %502 = vmatpush.msra.mxu0 %v362
        %503 = vmatpush.msra.mxu0 %v361
        %504 = vmatpush.msra.mxu0 %v360
        %505 = vmatpush.msra.mxu0 %v359
        %506 = vmatpush.msra.mxu0 %v358
        %507 = vmatmul.f32.gmra.mxu0 %v489
        %v508 = vpop.f32.mrf.mxu0
        %v509 = vadd.f32 0.0, %v508
        %510 = vdwg.mxu0
        %s511 = scalar_lea.vmem [#allocation9], 256
        %v512 = vld [vmem:[%s511] sm:$0xff]
        %v513 = vld [vmem:[%s511 + $0x8] sm:$0xff]
        %v514 = vld [vmem:[%s511 + $0x10] sm:$0xff]
        %v515 = vld [vmem:[%s511 + $0x18] sm:$0xff]
        %v516 = vld [vmem:[%s511 + $0x20] sm:$0xff]
        %v517 = vld [vmem:[%s511 + $0x28] sm:$0xff]
        %v518 = vld [vmem:[%s511 + $0x30] sm:$0xff]
        %v519 = vld [vmem:[%s511 + $0x38] sm:$0xff]
        %v520 = vld [vmem:[%s511 + $0x40] sm:$0xff]
        %v521 = vld [vmem:[%s511 + $0x48] sm:$0xff]
        %v522 = vld [vmem:[%s511 + $0x50] sm:$0xff]
        %v523 = vld [vmem:[%s511 + $0x58] sm:$0xff]
        %v524 = vld [vmem:[%s511 + $0x60] sm:$0xff]
        %v525 = vld [vmem:[%s511 + $0x68] sm:$0xff]
        %v526 = vld [vmem:[%s511 + $0x70] sm:$0xff]
        %v527 = vld [vmem:[%s511 + $0x78] sm:$0xff]
        %528 = vmatpush.msra.mxu0 %v527
        %529 = vmatpush.msra.mxu0 %v526
        %530 = vmatpush.msra.mxu0 %v525
        %531 = vmatpush.msra.mxu0 %v524
        %532 = vmatpush.msra.mxu0 %v523
        %533 = vmatpush.msra.mxu0 %v522
        %534 = vmatpush.msra.mxu0 %v521
        %535 = vmatpush.msra.mxu0 %v520
        %536 = vmatpush.msra.mxu0 %v519
        %537 = vmatpush.msra.mxu0 %v518
        %538 = vmatpush.msra.mxu0 %v517
        %539 = vmatpush.msra.mxu0 %v516
        %540 = vmatpush.msra.mxu0 %v515
        %541 = vmatpush.msra.mxu0 %v514
        %542 = vmatpush.msra.mxu0 %v513
        %543 = vmatpush.msra.mxu0 %v512
        %544 = vmatmul.f32.gmra.mxu0 %v509
        %v545 = vpop.f32.mrf.mxu0
        %v546 = vadd.f32 0.0, %v545
        %547 = vdwg.mxu0
        %v548 = vadd.f32 %v484, %v546
        %s549 = scalar_lea.vmem [#allocation6], 12
        %v550 = vld [vmem:[%s549] sm:$0xf]
        %v552 = vsel %vm364, %v550, 0
        %554 = vmatpush.msra.mxu0 0.0
        %555 = vmatpush.msra.mxu0 0.0
        %556 = vmatpush.msra.mxu0 0.0
        %557 = vmatpush.msra.mxu0 0.0
        %558 = vmatpush.msra.mxu0 0.0
        %559 = vmatpush.msra.mxu0 0.0
        %560 = vmatpush.msra.mxu0 0.0
        %561 = vmatpush.msra.mxu0 0.0
        %562 = vmatpush.msra.mxu0 0.0
        %563 = vmatpush.msra.mxu0 0.0
        %564 = vmatpush.msra.mxu0 0.0
        %565 = vmatpush.msra.mxu0 %v362
        %566 = vmatpush.msra.mxu0 %v361
        %567 = vmatpush.msra.mxu0 %v360
        %568 = vmatpush.msra.mxu0 %v359
        %569 = vmatpush.msra.mxu0 %v358
        %570 = vmatmul.f32.gmra.mxu0 %v552
        %v571 = vpop.f32.mrf.mxu0
        %v572 = vadd.f32 0.0, %v571
        %573 = vdwg.mxu0
        %s574 = scalar_lea.vmem [#allocation9], 384
        %v575 = vld [vmem:[%s574] sm:$0xff]
        %v576 = vld [vmem:[%s574 + $0x8] sm:$0xff]
        %v577 = vld [vmem:[%s574 + $0x10] sm:$0xff]
        %v578 = vld [vmem:[%s574 + $0x18] sm:$0xff]
        %v579 = vld [vmem:[%s574 + $0x20] sm:$0xff]
        %v580 = vld [vmem:[%s574 + $0x28] sm:$0xff]
        %v581 = vld [vmem:[%s574 + $0x30] sm:$0xff]
        %v582 = vld [vmem:[%s574 + $0x38] sm:$0xff]
        %v583 = vld [vmem:[%s574 + $0x40] sm:$0xff]
        %v584 = vld [vmem:[%s574 + $0x48] sm:$0xff]
        %v585 = vld [vmem:[%s574 + $0x50] sm:$0xff]
        %v586 = vld [vmem:[%s574 + $0x58] sm:$0xff]
        %v587 = vld [vmem:[%s574 + $0x60] sm:$0xff]
        %v588 = vld [vmem:[%s574 + $0x68] sm:$0xff]
        %v589 = vld [vmem:[%s574 + $0x70] sm:$0xff]
        %v590 = vld [vmem:[%s574 + $0x78] sm:$0xff]
        %591 = vmatpush.msra.mxu0 %v590
        %592 = vmatpush.msra.mxu0 %v589
        %593 = vmatpush.msra.mxu0 %v588
        %594 = vmatpush.msra.mxu0 %v587
        %595 = vmatpush.msra.mxu0 %v586
        %596 = vmatpush.msra.mxu0 %v585
        %597 = vmatpush.msra.mxu0 %v584
        %598 = vmatpush.msra.mxu0 %v583
        %599 = vmatpush.msra.mxu0 %v582
        %600 = vmatpush.msra.mxu0 %v581
        %601 = vmatpush.msra.mxu0 %v580
        %602 = vmatpush.msra.mxu0 %v579
        %603 = vmatpush.msra.mxu0 %v578
        %604 = vmatpush.msra.mxu0 %v577
        %605 = vmatpush.msra.mxu0 %v576
        %606 = vmatpush.msra.mxu0 %v575
        %607 = vmatmul.f32.gmra.mxu0 %v572
        %v608 = vpop.f32.mrf.mxu0
        %v609 = vadd.f32 0.0, %v608
        %610 = vdwg.mxu0
        %v611 = vadd.f32 %v548, %v609
        %s612 = scalar_lea.vmem [#allocation6], 16
        %v613 = vld [vmem:[%s612] sm:$0xf]
        %v615 = vsel %vm364, %v613, 0
        %617 = vmatpush.msra.mxu0 0.0
        %618 = vmatpush.msra.mxu0 0.0
        %619 = vmatpush.msra.mxu0 0.0
        %620 = vmatpush.msra.mxu0 0.0
        %621 = vmatpush.msra.mxu0 0.0
        %622 = vmatpush.msra.mxu0 0.0
        %623 = vmatpush.msra.mxu0 0.0
        %624 = vmatpush.msra.mxu0 0.0
        %625 = vmatpush.msra.mxu0 0.0
        %626 = vmatpush.msra.mxu0 0.0
        %627 = vmatpush.msra.mxu0 0.0
        %628 = vmatpush.msra.mxu0 %v362
        %629 = vmatpush.msra.mxu0 %v361
        %630 = vmatpush.msra.mxu0 %v360
        %631 = vmatpush.msra.mxu0 %v359
        %632 = vmatpush.msra.mxu0 %v358
        %633 = vmatmul.f32.gmra.mxu0 %v615
        %v634 = vpop.f32.mrf.mxu0
        %v635 = vadd.f32 0.0, %v634
        %636 = vdwg.mxu0
        %v637 = vadd.f32 %v611, %v635
        %s638 = scalar_lea.vmem [#allocation6], 20
        %v639 = vld [vmem:[%s638] sm:$0xf]
        %v641 = vsel %vm364, %v639, 0
        %643 = vmatpush.msra.mxu0 0.0
        %644 = vmatpush.msra.mxu0 0.0
        %645 = vmatpush.msra.mxu0 0.0
        %646 = vmatpush.msra.mxu0 0.0
        %647 = vmatpush.msra.mxu0 0.0
        %648 = vmatpush.msra.mxu0 0.0
        %649 = vmatpush.msra.mxu0 0.0
        %650 = vmatpush.msra.mxu0 0.0
        %651 = vmatpush.msra.mxu0 0.0
        %652 = vmatpush.msra.mxu0 0.0
        %653 = vmatpush.msra.mxu0 0.0
        %654 = vmatpush.msra.mxu0 %v362
        %655 = vmatpush.msra.mxu0 %v361
        %656 = vmatpush.msra.mxu0 %v360
        %657 = vmatpush.msra.mxu0 %v359
        %658 = vmatpush.msra.mxu0 %v358
        %659 = vmatmul.f32.gmra.mxu0 %v641
        %v660 = vpop.f32.mrf.mxu0
        %v661 = vadd.f32 0.0, %v660
        %662 = vdwg.mxu0
        %s663 = scalar_lea.vmem [#allocation9], 640
        %v664 = vld [vmem:[%s663] sm:$0xff]
        %v665 = vld [vmem:[%s663 + $0x8] sm:$0xff]
        %v666 = vld [vmem:[%s663 + $0x10] sm:$0xff]
        %v667 = vld [vmem:[%s663 + $0x18] sm:$0xff]
        %v668 = vld [vmem:[%s663 + $0x20] sm:$0xff]
        %v669 = vld [vmem:[%s663 + $0x28] sm:$0xff]
        %v670 = vld [vmem:[%s663 + $0x30] sm:$0xff]
        %v671 = vld [vmem:[%s663 + $0x38] sm:$0xff]
        %v672 = vld [vmem:[%s663 + $0x40] sm:$0xff]
        %v673 = vld [vmem:[%s663 + $0x48] sm:$0xff]
        %v674 = vld [vmem:[%s663 + $0x50] sm:$0xff]
        %v675 = vld [vmem:[%s663 + $0x58] sm:$0xff]
        %v676 = vld [vmem:[%s663 + $0x60] sm:$0xff]
        %v677 = vld [vmem:[%s663 + $0x68] sm:$0xff]
        %v678 = vld [vmem:[%s663 + $0x70] sm:$0xff]
        %v679 = vld [vmem:[%s663 + $0x78] sm:$0xff]
        %680 = vmatpush.msra.mxu0 %v679
        %681 = vmatpush.msra.mxu0 %v678
        %682 = vmatpush.msra.mxu0 %v677
        %683 = vmatpush.msra.mxu0 %v676
        %684 = vmatpush.msra.mxu0 %v675
        %685 = vmatpush.msra.mxu0 %v674
        %686 = vmatpush.msra.mxu0 %v673
        %687 = vmatpush.msra.mxu0 %v672
        %688 = vmatpush.msra.mxu0 %v671
        %689 = vmatpush.msra.mxu0 %v670
        %690 = vmatpush.msra.mxu0 %v669
        %691 = vmatpush.msra.mxu0 %v668
        %692 = vmatpush.msra.mxu0 %v667
        %693 = vmatpush.msra.mxu0 %v666
        %694 = vmatpush.msra.mxu0 %v665
        %695 = vmatpush.msra.mxu0 %v664
        %696 = vmatmul.f32.gmra.mxu0 %v661
        %v697 = vpop.f32.mrf.mxu0
        %v698 = vadd.f32 0.0, %v697
        %699 = vdwg.mxu0
        %v700 = vadd.f32 %v637, %v698
        %v701 = vld [vmem:[%s2] sm:$0xf]
        %703 = vset.pattern.permute.xlu0 0
        %704 = vperm.xlu0 %703, %v701
        %v705 = vpop.permute.xlu0 %704
        %v707 = vadd.f32 %v700, %v705
        %708 = vmatpush.msra.mxu0 %v357
        %709 = vmatpush.msra.mxu0 %v356
        %710 = vmatpush.msra.mxu0 %v355
        %711 = vmatpush.msra.mxu0 %v354
        %712 = vmatpush.msra.mxu0 %v353
        %713 = vmatpush.msra.mxu0 %v352
        %714 = vmatpush.msra.mxu0 %v351
        %715 = vmatpush.msra.mxu0 %v350
        %716 = vmatpush.msra.mxu0 %v349
        %717 = vmatpush.msra.mxu0 %v348
        %718 = vmatpush.msra.mxu0 %v347
        %719 = vmatpush.msra.mxu0 %v346
        %720 = vmatpush.msra.mxu0 %v345
        %721 = vmatpush.msra.mxu0 %v344
        %722 = vmatpush.msra.mxu0 %v343
        %723 = vmatpush.msra.mxu0 %v342
        %724 = vmatmul.f32.gmra.mxu0 %v707
        %v725 = vpop.f32.mrf.mxu0
        %v726 = vadd.f32 0.0, %v725
        %727 = vdwg.mxu0
        %v728 = vsub.f32 %v707, %v726
        %v729 = vmul.f32 %v728, %v728
        %730 = vmatpush.msra.mxu0 %v357
        %731 = vmatpush.msra.mxu0 %v356
        %732 = vmatpush.msra.mxu0 %v355
        %733 = vmatpush.msra.mxu0 %v354
        %734 = vmatpush.msra.mxu0 %v353
        %735 = vmatpush.msra.mxu0 %v352
        %736 = vmatpush.msra.mxu0 %v351
        %737 = vmatpush.msra.mxu0 %v350
        %738 = vmatpush.msra.mxu0 %v349
        %739 = vmatpush.msra.mxu0 %v348
        %740 = vmatpush.msra.mxu0 %v347
        %741 = vmatpush.msra.mxu0 %v346
        %742 = vmatpush.msra.mxu0 %v345
        %743 = vmatpush.msra.mxu0 %v344
        %744 = vmatpush.msra.mxu0 %v343
        %745 = vmatpush.msra.mxu0 %v342
        %746 = vmatmul.f32.gmra.mxu0 %v729
        %v747 = vpop.f32.mrf.mxu0
        %v748 = vadd.f32 1e-05, %v747
        %749 = vdwg.mxu0
        %v750 = vrsqrt.pop %v748
        %v751 = vmul.f32 %v750, %v748
        %v752 = vmul.f32 %v751, %v750
        %v753 = vmul.f32 0.5, %v752
        %v754 = vsub.f32 1.5, %v753
        %v755 = vmul.f32 %v750, %v754
        %vm756 = vweird.f32 %v748
        %vm757 = vweird.f32 %v750
        %vm758 = vmor %vm756, %vm757
        %v759 = vsel %vm758, %v750, %v755
        %v760 = vmul.f32 %v728, %v759
        %v761 = vld [vmem:[#allocation8] sm:$0x1]
        %v763 = vperm.slane %v761, 0
        %v765 = vmul.f32 %v760, %v763
        %s766 = scalar_lea.vmem [#allocation8], 1
        %v767 = vld [vmem:[%s766] sm:$0x1]
        %v769 = vperm.slane %v767, 0
        %v771 = vadd.f32 %v765, %v769
        %vm772 = vcmp.ge.f32.partialorder %v771, 0.0
        %s773 = scalar_lea.vmem %s2, 4
        %v774 = vld [vmem:[%s773] sm:$0xf]
        %776 = vset.pattern.permute.xlu0 0
        %777 = vperm.xlu0 %776, %v774
        %v778 = vpop.permute.xlu0 %777
        %v780 = vmul.f32 %v778, %v771
        %v781 = vsel %vm772, %v771, %v780
        %782 = vst [vmem:[#allocation2 + $0x8] sm:$0xf] %v781
        %v783 = vld [vmem:[#allocation2] sm:$0xff]
        %v784 = vld [vmem:[#allocation2 + $0x8] sm:$0xff]
        %v785 = vld [vmem:[#allocation2 + $0x10] sm:$0xff]
        %v786 = vld [vmem:[#allocation2 + $0x18] sm:$0xff]
        %v787 = vld [vmem:[#allocation2 + $0x20] sm:$0xff]
        %s788 = scalar_lea.vmem [#allocation6], 24
        %v789 = vld [vmem:[%s788] sm:$0xf]
        %v791 = vsel %vm364, %v789, 0
        %793 = vmatpush.msra.mxu0 0.0
        %794 = vmatpush.msra.mxu0 0.0
        %795 = vmatpush.msra.mxu0 0.0
        %796 = vmatpush.msra.mxu0 0.0
        %797 = vmatpush.msra.mxu0 0.0
        %798 = vmatpush.msra.mxu0 0.0
        %799 = vmatpush.msra.mxu0 0.0
        %800 = vmatpush.msra.mxu0 0.0
        %801 = vmatpush.msra.mxu0 0.0
        %802 = vmatpush.msra.mxu0 0.0
        %803 = vmatpush.msra.mxu0 0.0
        %804 = vmatpush.msra.mxu0 %v787
        %805 = vmatpush.msra.mxu0 %v786
        %806 = vmatpush.msra.mxu0 %v785
        %807 = vmatpush.msra.mxu0 %v784
        %808 = vmatpush.msra.mxu0 %v783
        %809 = vmatmul.f32.gmra.mxu0 %v791
        %v810 = vpop.f32.mrf.mxu0
        %v811 = vadd.f32 0.0, %v810
        %812 = vdwg.mxu0
        %s813 = scalar_lea.vmem [#allocation9], 768
        %v814 = vld [vmem:[%s813] sm:$0xff]
        %v815 = vld [vmem:[%s813 + $0x8] sm:$0xff]
        %v816 = vld [vmem:[%s813 + $0x10] sm:$0xff]
        %v817 = vld [vmem:[%s813 + $0x18] sm:$0xff]
        %v818 = vld [vmem:[%s813 + $0x20] sm:$0xff]
        %v819 = vld [vmem:[%s813 + $0x28] sm:$0xff]
        %v820 = vld [vmem:[%s813 + $0x30] sm:$0xff]
        %v821 = vld [vmem:[%s813 + $0x38] sm:$0xff]
        %v822 = vld [vmem:[%s813 + $0x40] sm:$0xff]
        %v823 = vld [vmem:[%s813 + $0x48] sm:$0xff]
        %v824 = vld [vmem:[%s813 + $0x50] sm:$0xff]
        %v825 = vld [vmem:[%s813 + $0x58] sm:$0xff]
        %v826 = vld [vmem:[%s813 + $0x60] sm:$0xff]
        %v827 = vld [vmem:[%s813 + $0x68] sm:$0xff]
        %v828 = vld [vmem:[%s813 + $0x70] sm:$0xff]
        %v829 = vld [vmem:[%s813 + $0x78] sm:$0xff]
        %s830 = scalar_lea.vmem [#allocation6], 28
        %v831 = vld [vmem:[%s830] sm:$0xf]
        %v833 = vsel %vm364, %v831, 0
        %835 = vmatpush.msra.mxu0 0.0
        %836 = vmatpush.msra.mxu0 0.0
        %837 = vmatpush.msra.mxu0 0.0
        %838 = vmatpush.msra.mxu0 0.0
        %839 = vmatpush.msra.mxu0 0.0
        %840 = vmatpush.msra.mxu0 0.0
        %841 = vmatpush.msra.mxu0 0.0
        %842 = vmatpush.msra.mxu0 0.0
        %843 = vmatpush.msra.mxu0 0.0
        %844 = vmatpush.msra.mxu0 0.0
        %845 = vmatpush.msra.mxu0 0.0
        %846 = vmatpush.msra.mxu0 %v787
        %847 = vmatpush.msra.mxu0 %v786
        %848 = vmatpush.msra.mxu0 %v785
        %849 = vmatpush.msra.mxu0 %v784
        %850 = vmatpush.msra.mxu0 %v783
        %851 = vmatmul.f32.gmra.mxu0 %v833
        %v852 = vpop.f32.mrf.mxu0
        %v853 = vadd.f32 0.0, %v852
        %854 = vdwg.mxu0
        %s855 = scalar_lea.vmem [#allocation9], 896
        %v856 = vld [vmem:[%s855] sm:$0xff]
        %v857 = vld [vmem:[%s855 + $0x8] sm:$0xff]
        %v858 = vld [vmem:[%s855 + $0x10] sm:$0xff]
        %v859 = vld [vmem:[%s855 + $0x18] sm:$0xff]
        %v860 = vld [vmem:[%s855 + $0x20] sm:$0xff]
        %v861 = vld [vmem:[%s855 + $0x28] sm:$0xff]
        %v862 = vld [vmem:[%s855 + $0x30] sm:$0xff]
        %v863 = vld [vmem:[%s855 + $0x38] sm:$0xff]
        %v864 = vld [vmem:[%s855 + $0x40] sm:$0xff]
        %v865 = vld [vmem:[%s855 + $0x48] sm:$0xff]
        %v866 = vld [vmem:[%s855 + $0x50] sm:$0xff]
        %v867 = vld [vmem:[%s855 + $0x58] sm:$0xff]
        %v868 = vld [vmem:[%s855 + $0x60] sm:$0xff]
        %v869 = vld [vmem:[%s855 + $0x68] sm:$0xff]
        %v870 = vld [vmem:[%s855 + $0x70] sm:$0xff]
        %v871 = vld [vmem:[%s855 + $0x78] sm:$0xff]
        %872 = vmatpush.msra.mxu0 %v871
        %873 = vmatpush.msra.mxu0 %v870
        %874 = vmatpush.msra.mxu0 %v869
        %875 = vmatpush.msra.mxu0 %v868
        %876 = vmatpush.msra.mxu0 %v867
        %877 = vmatpush.msra.mxu0 %v866
        %878 = vmatpush.msra.mxu0 %v865
        %879 = vmatpush.msra.mxu0 %v864
        %880 = vmatpush.msra.mxu0 %v863
        %881 = vmatpush.msra.mxu0 %v862
        %882 = vmatpush.msra.mxu0 %v861
        %883 = vmatpush.msra.mxu0 %v860
        %884 = vmatpush.msra.mxu0 %v859
        %885 = vmatpush.msra.mxu0 %v858
        %886 = vmatpush.msra.mxu0 %v857
        %887 = vmatpush.msra.mxu0 %v856
        %888 = vmatmul.f32.gmra.mxu0 %v853
        %v889 = vpop.f32.mrf.mxu0
        %v890 = vadd.f32 0.0, %v889
        %891 = vdwg.mxu0
        %892 = vmatpush.msra.mxu0 %v829
        %893 = vmatpush.msra.mxu0 %v828
        %894 = vmatpush.msra.mxu0 %v827
        %895 = vmatpush.msra.mxu0 %v826
        %896 = vmatpush.msra.mxu0 %v825
        %897 = vmatpush.msra.mxu0 %v824
        %898 = vmatpush.msra.mxu0 %v823
        %899 = vmatpush.msra.mxu0 %v822
        %900 = vmatpush.msra.mxu0 %v821
        %901 = vmatpush.msra.mxu0 %v820
        %902 = vmatpush.msra.mxu0 %v819
        %903 = vmatpush.msra.mxu0 %v818
        %904 = vmatpush.msra.mxu0 %v817
        %905 = vmatpush.msra.mxu0 %v816
        %906 = vmatpush.msra.mxu0 %v815
        %907 = vmatpush.msra.mxu0 %v814
        %908 = vmatmul.f32.gmra.mxu0 %v811
        %v909 = vpop.f32.mrf.mxu0
        %v910 = vadd.f32 %v890, %v909
        %911 = vdwg.mxu0
        %s912 = scalar_lea.vmem [#allocation6], 32
        %v913 = vld [vmem:[%s912] sm:$0xf]
        %v915 = vsel %vm364, %v913, 0
        %917 = vmatpush.msra.mxu0 0.0
        %918 = vmatpush.msra.mxu0 0.0
        %919 = vmatpush.msra.mxu0 0.0
        %920 = vmatpush.msra.mxu0 0.0
        %921 = vmatpush.msra.mxu0 0.0
        %922 = vmatpush.msra.mxu0 0.0
        %923 = vmatpush.msra.mxu0 0.0
        %924 = vmatpush.msra.mxu0 0.0
        %925 = vmatpush.msra.mxu0 0.0
        %926 = vmatpush.msra.mxu0 0.0
        %927 = vmatpush.msra.mxu0 0.0
        %928 = vmatpush.msra.mxu0 %v787
        %929 = vmatpush.msra.mxu0 %v786
        %930 = vmatpush.msra.mxu0 %v785
        %931 = vmatpush.msra.mxu0 %v784
        %932 = vmatpush.msra.mxu0 %v783
        %933 = vmatmul.f32.gmra.mxu0 %v915
        %v934 = vpop.f32.mrf.mxu0
        %v935 = vadd.f32 0.0, %v934
        %936 = vdwg.mxu0
        %s937 = scalar_lea.vmem [#allocation9], 1024
        %v938 = vld [vmem:[%s937] sm:$0xff]
        %v939 = vld [vmem:[%s937 + $0x8] sm:$0xff]
        %v940 = vld [vmem:[%s937 + $0x10] sm:$0xff]
        %v941 = vld [vmem:[%s937 + $0x18] sm:$0xff]
        %v942 = vld [vmem:[%s937 + $0x20] sm:$0xff]
        %v943 = vld [vmem:[%s937 + $0x28] sm:$0xff]
        %v944 = vld [vmem:[%s937 + $0x30] sm:$0xff]
        %v945 = vld [vmem:[%s937 + $0x38] sm:$0xff]
        %v946 = vld [vmem:[%s937 + $0x40] sm:$0xff]
        %v947 = vld [vmem:[%s937 + $0x48] sm:$0xff]
        %v948 = vld [vmem:[%s937 + $0x50] sm:$0xff]
        %v949 = vld [vmem:[%s937 + $0x58] sm:$0xff]
        %v950 = vld [vmem:[%s937 + $0x60] sm:$0xff]
        %v951 = vld [vmem:[%s937 + $0x68] sm:$0xff]
        %v952 = vld [vmem:[%s937 + $0x70] sm:$0xff]
        %v953 = vld [vmem:[%s937 + $0x78] sm:$0xff]
        %954 = vmatpush.msra.mxu0 %v953
        %955 = vmatpush.msra.mxu0 %v952
        %956 = vmatpush.msra.mxu0 %v951
        %957 = vmatpush.msra.mxu0 %v950
        %958 = vmatpush.msra.mxu0 %v949
        %959 = vmatpush.msra.mxu0 %v948
        %960 = vmatpush.msra.mxu0 %v947
        %961 = vmatpush.msra.mxu0 %v946
        %962 = vmatpush.msra.mxu0 %v945
        %963 = vmatpush.msra.mxu0 %v944
        %964 = vmatpush.msra.mxu0 %v943
        %965 = vmatpush.msra.mxu0 %v942
        %966 = vmatpush.msra.mxu0 %v941
        %967 = vmatpush.msra.mxu0 %v940
        %968 = vmatpush.msra.mxu0 %v939
        %969 = vmatpush.msra.mxu0 %v938
        %970 = vmatmul.f32.gmra.mxu0 %v935
        %v971 = vpop.f32.mrf.mxu0
        %v972 = vadd.f32 0.0, %v971
        %973 = vdwg.mxu0
        %v974 = vadd.f32 %v910, %v972
        %s975 = scalar_lea.vmem [#allocation6], 36
        %v976 = vld [vmem:[%s975] sm:$0xf]
        %v978 = vsel %vm364, %v976, 0
        %980 = vmatpush.msra.mxu0 0.0
        %981 = vmatpush.msra.mxu0 0.0
        %982 = vmatpush.msra.mxu0 0.0
        %983 = vmatpush.msra.mxu0 0.0
        %984 = vmatpush.msra.mxu0 0.0
        %985 = vmatpush.msra.mxu0 0.0
        %986 = vmatpush.msra.mxu0 0.0
        %987 = vmatpush.msra.mxu0 0.0
        %988 = vmatpush.msra.mxu0 0.0
        %989 = vmatpush.msra.mxu0 0.0
        %990 = vmatpush.msra.mxu0 0.0
        %991 = vmatpush.msra.mxu0 %v787
        %992 = vmatpush.msra.mxu0 %v786
        %993 = vmatpush.msra.mxu0 %v785
        %994 = vmatpush.msra.mxu0 %v784
        %995 = vmatpush.msra.mxu0 %v783
        %996 = vmatmul.f32.gmra.mxu0 %v978
        %v997 = vpop.f32.mrf.mxu0
        %v998 = vadd.f32 0.0, %v997
        %999 = vdwg.mxu0
        %s1000 = scalar_lea.vmem [#allocation9], 1152
        %v1001 = vld [vmem:[%s1000] sm:$0xff]
        %v1002 = vld [vmem:[%s1000 + $0x8] sm:$0xff]
        %v1003 = vld [vmem:[%s1000 + $0x10] sm:$0xff]
        %v1004 = vld [vmem:[%s1000 + $0x18] sm:$0xff]
        %v1005 = vld [vmem:[%s1000 + $0x20] sm:$0xff]
        %v1006 = vld [vmem:[%s1000 + $0x28] sm:$0xff]
        %v1007 = vld [vmem:[%s1000 + $0x30] sm:$0xff]
        %v1008 = vld [vmem:[%s1000 + $0x38] sm:$0xff]
        %v1009 = vld [vmem:[%s1000 + $0x40] sm:$0xff]
        %v1010 = vld [vmem:[%s1000 + $0x48] sm:$0xff]
        %v1011 = vld [vmem:[%s1000 + $0x50] sm:$0xff]
        %v1012 = vld [vmem:[%s1000 + $0x58] sm:$0xff]
        %v1013 = vld [vmem:[%s1000 + $0x60] sm:$0xff]
        %v1014 = vld [vmem:[%s1000 + $0x68] sm:$0xff]
        %v1015 = vld [vmem:[%s1000 + $0x70] sm:$0xff]
        %v1016 = vld [vmem:[%s1000 + $0x78] sm:$0xff]
        %1017 = vmatpush.msra.mxu0 %v1016
        %1018 = vmatpush.msra.mxu0 %v1015
        %1019 = vmatpush.msra.mxu0 %v1014
        %1020 = vmatpush.msra.mxu0 %v1013
        %1021 = vmatpush.msra.mxu0 %v1012
        %1022 = vmatpush.msra.mxu0 %v1011
        %1023 = vmatpush.msra.mxu0 %v1010
        %1024 = vmatpush.msra.mxu0 %v1009
        %1025 = vmatpush.msra.mxu0 %v1008
        %1026 = vmatpush.msra.mxu0 %v1007
        %1027 = vmatpush.msra.mxu0 %v1006
        %1028 = vmatpush.msra.mxu0 %v1005
        %1029 = vmatpush.msra.mxu0 %v1004
        %1030 = vmatpush.msra.mxu0 %v1003
        %1031 = vmatpush.msra.mxu0 %v1002
        %1032 = vmatpush.msra.mxu0 %v1001
        %1033 = vmatmul.f32.gmra.mxu0 %v998
        %v1034 = vpop.f32.mrf.mxu0
        %v1035 = vadd.f32 0.0, %v1034
        %1036 = vdwg.mxu0
        %v1037 = vadd.f32 %v974, %v1035
        %s1038 = scalar_lea.vmem [#allocation6], 40
        %v1039 = vld [vmem:[%s1038] sm:$0xf]
        %v1041 = vsel %vm364, %v1039, 0
        %1043 = vmatpush.msra.mxu0 0.0
        %1044 = vmatpush.msra.mxu0 0.0
        %1045 = vmatpush.msra.mxu0 0.0
        %1046 = vmatpush.msra.mxu0 0.0
        %1047 = vmatpush.msra.mxu0 0.0
        %1048 = vmatpush.msra.mxu0 0.0
        %1049 = vmatpush.msra.mxu0 0.0
        %1050 = vmatpush.msra.mxu0 0.0
        %1051 = vmatpush.msra.mxu0 0.0
        %1052 = vmatpush.msra.mxu0 0.0
        %1053 = vmatpush.msra.mxu0 0.0
        %1054 = vmatpush.msra.mxu0 %v787
        %1055 = vmatpush.msra.mxu0 %v786
        %1056 = vmatpush.msra.mxu0 %v785
        %1057 = vmatpush.msra.mxu0 %v784
        %1058 = vmatpush.msra.mxu0 %v783
        %1059 = vmatmul.f32.gmra.mxu0 %v1041
        %v1060 = vpop.f32.mrf.mxu0
        %v1061 = vadd.f32 0.0, %v1060
        %1062 = vdwg.mxu0
        %v1063 = vadd.f32 %v1037, %v1061
        %s1064 = scalar_lea.vmem [#allocation6], 44
        %v1065 = vld [vmem:[%s1064] sm:$0xf]
        %v1067 = vsel %vm364, %v1065, 0
        %1069 = vmatpush.msra.mxu0 0.0
        %1070 = vmatpush.msra.mxu0 0.0
        %1071 = vmatpush.msra.mxu0 0.0
        %1072 = vmatpush.msra.mxu0 0.0
        %1073 = vmatpush.msra.mxu0 0.0
        %1074 = vmatpush.msra.mxu0 0.0
        %1075 = vmatpush.msra.mxu0 0.0
        %1076 = vmatpush.msra.mxu0 0.0
        %1077 = vmatpush.msra.mxu0 0.0
        %1078 = vmatpush.msra.mxu0 0.0
        %1079 = vmatpush.msra.mxu0 0.0
        %1080 = vmatpush.msra.mxu0 %v787
        %1081 = vmatpush.msra.mxu0 %v786
        %1082 = vmatpush.msra.mxu0 %v785
        %1083 = vmatpush.msra.mxu0 %v784
        %1084 = vmatpush.msra.mxu0 %v783
        %1085 = vmatmul.f32.gmra.mxu0 %v1067
        %v1086 = vpop.f32.mrf.mxu0
        %v1087 = vadd.f32 0.0, %v1086
        %1088 = vdwg.mxu0
        %s1089 = scalar_lea.vmem [#allocation9], 1408
        %v1090 = vld [vmem:[%s1089] sm:$0xff]
        %v1091 = vld [vmem:[%s1089 + $0x8] sm:$0xff]
        %v1092 = vld [vmem:[%s1089 + $0x10] sm:$0xff]
        %v1093 = vld [vmem:[%s1089 + $0x18] sm:$0xff]
        %v1094 = vld [vmem:[%s1089 + $0x20] sm:$0xff]
        %v1095 = vld [vmem:[%s1089 + $0x28] sm:$0xff]
        %v1096 = vld [vmem:[%s1089 + $0x30] sm:$0xff]
        %v1097 = vld [vmem:[%s1089 + $0x38] sm:$0xff]
        %v1098 = vld [vmem:[%s1089 + $0x40] sm:$0xff]
        %v1099 = vld [vmem:[%s1089 + $0x48] sm:$0xff]
        %v1100 = vld [vmem:[%s1089 + $0x50] sm:$0xff]
        %v1101 = vld [vmem:[%s1089 + $0x58] sm:$0xff]
        %v1102 = vld [vmem:[%s1089 + $0x60] sm:$0xff]
        %v1103 = vld [vmem:[%s1089 + $0x68] sm:$0xff]
        %v1104 = vld [vmem:[%s1089 + $0x70] sm:$0xff]
        %v1105 = vld [vmem:[%s1089 + $0x78] sm:$0xff]
        %1106 = vmatpush.msra.mxu0 %v1105
        %1107 = vmatpush.msra.mxu0 %v1104
        %1108 = vmatpush.msra.mxu0 %v1103
        %1109 = vmatpush.msra.mxu0 %v1102
        %1110 = vmatpush.msra.mxu0 %v1101
        %1111 = vmatpush.msra.mxu0 %v1100
        %1112 = vmatpush.msra.mxu0 %v1099
        %1113 = vmatpush.msra.mxu0 %v1098
        %1114 = vmatpush.msra.mxu0 %v1097
        %1115 = vmatpush.msra.mxu0 %v1096
        %1116 = vmatpush.msra.mxu0 %v1095
        %1117 = vmatpush.msra.mxu0 %v1094
        %1118 = vmatpush.msra.mxu0 %v1093
        %1119 = vmatpush.msra.mxu0 %v1092
        %1120 = vmatpush.msra.mxu0 %v1091
        %1121 = vmatpush.msra.mxu0 %v1090
        %1122 = vmatmul.f32.gmra.mxu0 %v1087
        %v1123 = vpop.f32.mrf.mxu0
        %v1124 = vadd.f32 0.0, %v1123
        %1125 = vdwg.mxu0
        %v1126 = vadd.f32 %v1063, %v1124
        %s1127 = scalar_lea.vmem %s2, 8
        %v1128 = vld [vmem:[%s1127] sm:$0xf]
        %1130 = vset.pattern.permute.xlu0 0
        %1131 = vperm.xlu0 %1130, %v1128
        %v1132 = vpop.permute.xlu0 %1131
        %v1134 = vadd.f32 %v1126, %v1132
        %1135 = vmatpush.msra.mxu0 %v357
        %1136 = vmatpush.msra.mxu0 %v356
        %1137 = vmatpush.msra.mxu0 %v355
        %1138 = vmatpush.msra.mxu0 %v354
        %1139 = vmatpush.msra.mxu0 %v353
        %1140 = vmatpush.msra.mxu0 %v352
        %1141 = vmatpush.msra.mxu0 %v351
        %1142 = vmatpush.msra.mxu0 %v350
        %1143 = vmatpush.msra.mxu0 %v349
        %1144 = vmatpush.msra.mxu0 %v348
        %1145 = vmatpush.msra.mxu0 %v347
        %1146 = vmatpush.msra.mxu0 %v346
        %1147 = vmatpush.msra.mxu0 %v345
        %1148 = vmatpush.msra.mxu0 %v344
        %1149 = vmatpush.msra.mxu0 %v343
        %1150 = vmatpush.msra.mxu0 %v342
        %1151 = vmatmul.f32.gmra.mxu0 %v1134
        %v1152 = vpop.f32.mrf.mxu0
        %v1153 = vadd.f32 0.0, %v1152
        %1154 = vdwg.mxu0
        %v1155 = vsub.f32 %v1134, %v1153
        %v1156 = vmul.f32 %v1155, %v1155
        %1157 = vmatpush.msra.mxu0 %v357
        %1158 = vmatpush.msra.mxu0 %v356
        %1159 = vmatpush.msra.mxu0 %v355
        %1160 = vmatpush.msra.mxu0 %v354
        %1161 = vmatpush.msra.mxu0 %v353
        %1162 = vmatpush.msra.mxu0 %v352
        %1163 = vmatpush.msra.mxu0 %v351
        %1164 = vmatpush.msra.mxu0 %v350
        %1165 = vmatpush.msra.mxu0 %v349
        %1166 = vmatpush.msra.mxu0 %v348
        %1167 = vmatpush.msra.mxu0 %v347
        %1168 = vmatpush.msra.mxu0 %v346
        %1169 = vmatpush.msra.mxu0 %v345
        %1170 = vmatpush.msra.mxu0 %v344
        %1171 = vmatpush.msra.mxu0 %v343
        %1172 = vmatpush.msra.mxu0 %v342
        %1173 = vmatmul.f32.gmra.mxu0 %v1156
        %v1174 = vpop.f32.mrf.mxu0
        %v1175 = vadd.f32 1e-05, %v1174
        %1176 = vdwg.mxu0
        %v1177 = vrsqrt.pop %v1175
        %v1178 = vmul.f32 %v1177, %v1175
        %v1179 = vmul.f32 %v1178, %v1177
        %v1180 = vmul.f32 0.5, %v1179
        %v1181 = vsub.f32 1.5, %v1180
        %v1182 = vmul.f32 %v1177, %v1181
        %vm1183 = vweird.f32 %v1175
        %vm1184 = vweird.f32 %v1177
        %vm1185 = vmor %vm1183, %vm1184
        %v1186 = vsel %vm1185, %v1177, %v1182
        %v1187 = vmul.f32 %v1155, %v1186
        %s1188 = scalar_lea.vmem [#allocation8], 2
        %v1189 = vld [vmem:[%s1188] sm:$0x1]
        %v1191 = vperm.slane %v1189, 0
        %v1193 = vmul.f32 %v1187, %v1191
        %s1194 = scalar_lea.vmem [#allocation8], 3
        %v1195 = vld [vmem:[%s1194] sm:$0x1]
        %v1197 = vperm.slane %v1195, 0
        %v1199 = vadd.f32 %v1193, %v1197
        %vm1200 = vcmp.ge.f32.partialorder %v1199, 0.0
        %s1201 = scalar_lea.vmem %s2, 12
        %v1202 = vld [vmem:[%s1201] sm:$0xf]
        %1204 = vset.pattern.permute.xlu0 0
        %1205 = vperm.xlu0 %1204, %v1202
        %v1206 = vpop.permute.xlu0 %1205
        %v1208 = vmul.f32 %v1206, %v1199
        %v1209 = vsel %vm1200, %v1199, %v1208
        %1210 = vst [vmem:[#allocation2 + $0x10] sm:$0xf] %v1209
        %v1211 = vld [vmem:[#allocation2] sm:$0xff]
        %v1212 = vld [vmem:[#allocation2 + $0x8] sm:$0xff]
        %v1213 = vld [vmem:[#allocation2 + $0x10] sm:$0xff]
        %v1214 = vld [vmem:[#allocation2 + $0x18] sm:$0xff]
        %v1215 = vld [vmem:[#allocation2 + $0x20] sm:$0xff]
        %s1216 = scalar_lea.vmem [#allocation6], 48
        %v1217 = vld [vmem:[%s1216] sm:$0xf]
        %v1219 = vsel %vm364, %v1217, 0
        %1221 = vmatpush.msra.mxu0 0.0
        %1222 = vmatpush.msra.mxu0 0.0
        %1223 = vmatpush.msra.mxu0 0.0
        %1224 = vmatpush.msra.mxu0 0.0
        %1225 = vmatpush.msra.mxu0 0.0
        %1226 = vmatpush.msra.mxu0 0.0
        %1227 = vmatpush.msra.mxu0 0.0
        %1228 = vmatpush.msra.mxu0 0.0
        %1229 = vmatpush.msra.mxu0 0.0
        %1230 = vmatpush.msra.mxu0 0.0
        %1231 = vmatpush.msra.mxu0 0.0
        %1232 = vmatpush.msra.mxu0 %v1215
        %1233 = vmatpush.msra.mxu0 %v1214
        %1234 = vmatpush.msra.mxu0 %v1213
        %1235 = vmatpush.msra.mxu0 %v1212
        %1236 = vmatpush.msra.mxu0 %v1211
        %1237 = vmatmul.f32.gmra.mxu0 %v1219
        %v1238 = vpop.f32.mrf.mxu0
        %v1239 = vadd.f32 0.0, %v1238
        %1240 = vdwg.mxu0
        %s1241 = scalar_lea.vmem [#allocation9], 1536
        %v1242 = vld [vmem:[%s1241] sm:$0xff]
        %v1243 = vld [vmem:[%s1241 + $0x8] sm:$0xff]
        %v1244 = vld [vmem:[%s1241 + $0x10] sm:$0xff]
        %v1245 = vld [vmem:[%s1241 + $0x18] sm:$0xff]
        %v1246 = vld [vmem:[%s1241 + $0x20] sm:$0xff]
        %v1247 = vld [vmem:[%s1241 + $0x28] sm:$0xff]
        %v1248 = vld [vmem:[%s1241 + $0x30] sm:$0xff]
        %v1249 = vld [vmem:[%s1241 + $0x38] sm:$0xff]
        %v1250 = vld [vmem:[%s1241 + $0x40] sm:$0xff]
        %v1251 = vld [vmem:[%s1241 + $0x48] sm:$0xff]
        %v1252 = vld [vmem:[%s1241 + $0x50] sm:$0xff]
        %v1253 = vld [vmem:[%s1241 + $0x58] sm:$0xff]
        %v1254 = vld [vmem:[%s1241 + $0x60] sm:$0xff]
        %v1255 = vld [vmem:[%s1241 + $0x68] sm:$0xff]
        %v1256 = vld [vmem:[%s1241 + $0x70] sm:$0xff]
        %v1257 = vld [vmem:[%s1241 + $0x78] sm:$0xff]
        %s1258 = scalar_lea.vmem [#allocation6], 52
        %v1259 = vld [vmem:[%s1258] sm:$0xf]
        %v1261 = vsel %vm364, %v1259, 0
        %1263 = vmatpush.msra.mxu0 0.0
        %1264 = vmatpush.msra.mxu0 0.0
        %1265 = vmatpush.msra.mxu0 0.0
        %1266 = vmatpush.msra.mxu0 0.0
        %1267 = vmatpush.msra.mxu0 0.0
        %1268 = vmatpush.msra.mxu0 0.0
        %1269 = vmatpush.msra.mxu0 0.0
        %1270 = vmatpush.msra.mxu0 0.0
        %1271 = vmatpush.msra.mxu0 0.0
        %1272 = vmatpush.msra.mxu0 0.0
        %1273 = vmatpush.msra.mxu0 0.0
        %1274 = vmatpush.msra.mxu0 %v1215
        %1275 = vmatpush.msra.mxu0 %v1214
        %1276 = vmatpush.msra.mxu0 %v1213
        %1277 = vmatpush.msra.mxu0 %v1212
        %1278 = vmatpush.msra.mxu0 %v1211
        %1279 = vmatmul.f32.gmra.mxu0 %v1261
        %v1280 = vpop.f32.mrf.mxu0
        %v1281 = vadd.f32 0.0, %v1280
        %1282 = vdwg.mxu0
        %s1283 = scalar_lea.vmem [#allocation9], 1664
        %v1284 = vld [vmem:[%s1283] sm:$0xff]
        %v1285 = vld [vmem:[%s1283 + $0x8] sm:$0xff]
        %v1286 = vld [vmem:[%s1283 + $0x10] sm:$0xff]
        %v1287 = vld [vmem:[%s1283 + $0x18] sm:$0xff]
        %v1288 = vld [vmem:[%s1283 + $0x20] sm:$0xff]
        %v1289 = vld [vmem:[%s1283 + $0x28] sm:$0xff]
        %v1290 = vld [vmem:[%s1283 + $0x30] sm:$0xff]
        %v1291 = vld [vmem:[%s1283 + $0x38] sm:$0xff]
        %v1292 = vld [vmem:[%s1283 + $0x40] sm:$0xff]
        %v1293 = vld [vmem:[%s1283 + $0x48] sm:$0xff]
        %v1294 = vld [vmem:[%s1283 + $0x50] sm:$0xff]
        %v1295 = vld [vmem:[%s1283 + $0x58] sm:$0xff]
        %v1296 = vld [vmem:[%s1283 + $0x60] sm:$0xff]
        %v1297 = vld [vmem:[%s1283 + $0x68] sm:$0xff]
        %v1298 = vld [vmem:[%s1283 + $0x70] sm:$0xff]
        %v1299 = vld [vmem:[%s1283 + $0x78] sm:$0xff]
        %1300 = vmatpush.msra.mxu0 %v1299
        %1301 = vmatpush.msra.mxu0 %v1298
        %1302 = vmatpush.msra.mxu0 %v1297
        %1303 = vmatpush.msra.mxu0 %v1296
        %1304 = vmatpush.msra.mxu0 %v1295
        %1305 = vmatpush.msra.mxu0 %v1294
        %1306 = vmatpush.msra.mxu0 %v1293
        %1307 = vmatpush.msra.mxu0 %v1292
        %1308 = vmatpush.msra.mxu0 %v1291
        %1309 = vmatpush.msra.mxu0 %v1290
        %1310 = vmatpush.msra.mxu0 %v1289
        %1311 = vmatpush.msra.mxu0 %v1288
        %1312 = vmatpush.msra.mxu0 %v1287
        %1313 = vmatpush.msra.mxu0 %v1286
        %1314 = vmatpush.msra.mxu0 %v1285
        %1315 = vmatpush.msra.mxu0 %v1284
        %1316 = vmatmul.f32.gmra.mxu0 %v1281
        %v1317 = vpop.f32.mrf.mxu0
        %v1318 = vadd.f32 0.0, %v1317
        %1319 = vdwg.mxu0
        %1320 = vmatpush.msra.mxu0 %v1257
        %1321 = vmatpush.msra.mxu0 %v1256
        %1322 = vmatpush.msra.mxu0 %v1255
        %1323 = vmatpush.msra.mxu0 %v1254
        %1324 = vmatpush.msra.mxu0 %v1253
        %1325 = vmatpush.msra.mxu0 %v1252
        %1326 = vmatpush.msra.mxu0 %v1251
        %1327 = vmatpush.msra.mxu0 %v1250
        %1328 = vmatpush.msra.mxu0 %v1249
        %1329 = vmatpush.msra.mxu0 %v1248
        %1330 = vmatpush.msra.mxu0 %v1247
        %1331 = vmatpush.msra.mxu0 %v1246
        %1332 = vmatpush.msra.mxu0 %v1245
        %1333 = vmatpush.msra.mxu0 %v1244
        %1334 = vmatpush.msra.mxu0 %v1243
        %1335 = vmatpush.msra.mxu0 %v1242
        %1336 = vmatmul.f32.gmra.mxu0 %v1239
        %v1337 = vpop.f32.mrf.mxu0
        %v1338 = vadd.f32 %v1318, %v1337
        %1339 = vdwg.mxu0
        %s1340 = scalar_lea.vmem [#allocation6], 56
        %v1341 = vld [vmem:[%s1340] sm:$0xf]
        %v1343 = vsel %vm364, %v1341, 0
        %1345 = vmatpush.msra.mxu0 0.0
        %1346 = vmatpush.msra.mxu0 0.0
        %1347 = vmatpush.msra.mxu0 0.0
        %1348 = vmatpush.msra.mxu0 0.0
        %1349 = vmatpush.msra.mxu0 0.0
        %1350 = vmatpush.msra.mxu0 0.0
        %1351 = vmatpush.msra.mxu0 0.0
        %1352 = vmatpush.msra.mxu0 0.0
        %1353 = vmatpush.msra.mxu0 0.0
        %1354 = vmatpush.msra.mxu0 0.0
        %1355 = vmatpush.msra.mxu0 0.0
        %1356 = vmatpush.msra.mxu0 %v1215
        %1357 = vmatpush.msra.mxu0 %v1214
        %1358 = vmatpush.msra.mxu0 %v1213
        %1359 = vmatpush.msra.mxu0 %v1212
        %1360 = vmatpush.msra.mxu0 %v1211
        %1361 = vmatmul.f32.gmra.mxu0 %v1343
        %v1362 = vpop.f32.mrf.mxu0
        %v1363 = vadd.f32 0.0, %v1362
        %1364 = vdwg.mxu0
        %s1365 = scalar_lea.vmem [#allocation9], 1792
        %v1366 = vld [vmem:[%s1365] sm:$0xff]
        %v1367 = vld [vmem:[%s1365 + $0x8] sm:$0xff]
        %v1368 = vld [vmem:[%s1365 + $0x10] sm:$0xff]
        %v1369 = vld [vmem:[%s1365 + $0x18] sm:$0xff]
        %v1370 = vld [vmem:[%s1365 + $0x20] sm:$0xff]
        %v1371 = vld [vmem:[%s1365 + $0x28] sm:$0xff]
        %v1372 = vld [vmem:[%s1365 + $0x30] sm:$0xff]
        %v1373 = vld [vmem:[%s1365 + $0x38] sm:$0xff]
        %v1374 = vld [vmem:[%s1365 + $0x40] sm:$0xff]
        %v1375 = vld [vmem:[%s1365 + $0x48] sm:$0xff]
        %v1376 = vld [vmem:[%s1365 + $0x50] sm:$0xff]
        %v1377 = vld [vmem:[%s1365 + $0x58] sm:$0xff]
        %v1378 = vld [vmem:[%s1365 + $0x60] sm:$0xff]
        %v1379 = vld [vmem:[%s1365 + $0x68] sm:$0xff]
        %v1380 = vld [vmem:[%s1365 + $0x70] sm:$0xff]
        %v1381 = vld [vmem:[%s1365 + $0x78] sm:$0xff]
        %1382 = vmatpush.msra.mxu0 %v1381
        %1383 = vmatpush.msra.mxu0 %v1380
        %1384 = vmatpush.msra.mxu0 %v1379
        %1385 = vmatpush.msra.mxu0 %v1378
        %1386 = vmatpush.msra.mxu0 %v1377
        %1387 = vmatpush.msra.mxu0 %v1376
        %1388 = vmatpush.msra.mxu0 %v1375
        %1389 = vmatpush.msra.mxu0 %v1374
        %1390 = vmatpush.msra.mxu0 %v1373
        %1391 = vmatpush.msra.mxu0 %v1372
        %1392 = vmatpush.msra.mxu0 %v1371
        %1393 = vmatpush.msra.mxu0 %v1370
        %1394 = vmatpush.msra.mxu0 %v1369
        %1395 = vmatpush.msra.mxu0 %v1368
        %1396 = vmatpush.msra.mxu0 %v1367
        %1397 = vmatpush.msra.mxu0 %v1366
        %1398 = vmatmul.f32.gmra.mxu0 %v1363
        %v1399 = vpop.f32.mrf.mxu0
        %v1400 = vadd.f32 0.0, %v1399
        %1401 = vdwg.mxu0
        %v1402 = vadd.f32 %v1338, %v1400
        %s1403 = scalar_lea.vmem [#allocation6], 60
        %v1404 = vld [vmem:[%s1403] sm:$0xf]
        %v1406 = vsel %vm364, %v1404, 0
        %1408 = vmatpush.msra.mxu0 0.0
        %1409 = vmatpush.msra.mxu0 0.0
        %1410 = vmatpush.msra.mxu0 0.0
        %1411 = vmatpush.msra.mxu0 0.0
        %1412 = vmatpush.msra.mxu0 0.0
        %1413 = vmatpush.msra.mxu0 0.0
        %1414 = vmatpush.msra.mxu0 0.0
        %1415 = vmatpush.msra.mxu0 0.0
        %1416 = vmatpush.msra.mxu0 0.0
        %1417 = vmatpush.msra.mxu0 0.0
        %1418 = vmatpush.msra.mxu0 0.0
        %1419 = vmatpush.msra.mxu0 %v1215
        %1420 = vmatpush.msra.mxu0 %v1214
        %1421 = vmatpush.msra.mxu0 %v1213
        %1422 = vmatpush.msra.mxu0 %v1212
        %1423 = vmatpush.msra.mxu0 %v1211
        %1424 = vmatmul.f32.gmra.mxu0 %v1406
        %v1425 = vpop.f32.mrf.mxu0
        %v1426 = vadd.f32 0.0, %v1425
        %1427 = vdwg.mxu0
        %s1428 = scalar_lea.vmem [#allocation9], 1920
        %v1429 = vld [vmem:[%s1428] sm:$0xff]
        %v1430 = vld [vmem:[%s1428 + $0x8] sm:$0xff]
        %v1431 = vld [vmem:[%s1428 + $0x10] sm:$0xff]
        %v1432 = vld [vmem:[%s1428 + $0x18] sm:$0xff]
        %v1433 = vld [vmem:[%s1428 + $0x20] sm:$0xff]
        %v1434 = vld [vmem:[%s1428 + $0x28] sm:$0xff]
        %v1435 = vld [vmem:[%s1428 + $0x30] sm:$0xff]
        %v1436 = vld [vmem:[%s1428 + $0x38] sm:$0xff]
        %v1437 = vld [vmem:[%s1428 + $0x40] sm:$0xff]
        %v1438 = vld [vmem:[%s1428 + $0x48] sm:$0xff]
        %v1439 = vld [vmem:[%s1428 + $0x50] sm:$0xff]
        %v1440 = vld [vmem:[%s1428 + $0x58] sm:$0xff]
        %v1441 = vld [vmem:[%s1428 + $0x60] sm:$0xff]
        %v1442 = vld [vmem:[%s1428 + $0x68] sm:$0xff]
        %v1443 = vld [vmem:[%s1428 + $0x70] sm:$0xff]
        %v1444 = vld [vmem:[%s1428 + $0x78] sm:$0xff]
        %1445 = vmatpush.msra.mxu0 %v1444
        %1446 = vmatpush.msra.mxu0 %v1443
        %1447 = vmatpush.msra.mxu0 %v1442
        %1448 = vmatpush.msra.mxu0 %v1441
        %1449 = vmatpush.msra.mxu0 %v1440
        %1450 = vmatpush.msra.mxu0 %v1439
        %1451 = vmatpush.msra.mxu0 %v1438
        %1452 = vmatpush.msra.mxu0 %v1437
        %1453 = vmatpush.msra.mxu0 %v1436
        %1454 = vmatpush.msra.mxu0 %v1435
        %1455 = vmatpush.msra.mxu0 %v1434
        %1456 = vmatpush.msra.mxu0 %v1433
        %1457 = vmatpush.msra.mxu0 %v1432
        %1458 = vmatpush.msra.mxu0 %v1431
        %1459 = vmatpush.msra.mxu0 %v1430
        %1460 = vmatpush.msra.mxu0 %v1429
        %1461 = vmatmul.f32.gmra.mxu0 %v1426
        %v1462 = vpop.f32.mrf.mxu0
        %v1463 = vadd.f32 0.0, %v1462
        %1464 = vdwg.mxu0
        %v1465 = vadd.f32 %v1402, %v1463
        %s1466 = scalar_lea.vmem [#allocation6], 64
        %v1467 = vld [vmem:[%s1466] sm:$0xf]
        %v1469 = vsel %vm364, %v1467, 0
        %1471 = vmatpush.msra.mxu0 0.0
        %1472 = vmatpush.msra.mxu0 0.0
        %1473 = vmatpush.msra.mxu0 0.0
        %1474 = vmatpush.msra.mxu0 0.0
        %1475 = vmatpush.msra.mxu0 0.0
        %1476 = vmatpush.msra.mxu0 0.0
        %1477 = vmatpush.msra.mxu0 0.0
        %1478 = vmatpush.msra.mxu0 0.0
        %1479 = vmatpush.msra.mxu0 0.0
        %1480 = vmatpush.msra.mxu0 0.0
        %1481 = vmatpush.msra.mxu0 0.0
        %1482 = vmatpush.msra.mxu0 %v1215
        %1483 = vmatpush.msra.mxu0 %v1214
        %1484 = vmatpush.msra.mxu0 %v1213
        %1485 = vmatpush.msra.mxu0 %v1212
        %1486 = vmatpush.msra.mxu0 %v1211
        %1487 = vmatmul.f32.gmra.mxu0 %v1469
        %v1488 = vpop.f32.mrf.mxu0
        %v1489 = vadd.f32 0.0, %v1488
        %1490 = vdwg.mxu0
        %v1491 = vadd.f32 %v1465, %v1489
        %s1492 = scalar_lea.vmem [#allocation6], 68
        %v1493 = vld [vmem:[%s1492] sm:$0xf]
        %v1495 = vsel %vm364, %v1493, 0
        %1497 = vmatpush.msra.mxu0 0.0
        %1498 = vmatpush.msra.mxu0 0.0
        %1499 = vmatpush.msra.mxu0 0.0
        %1500 = vmatpush.msra.mxu0 0.0
        %1501 = vmatpush.msra.mxu0 0.0
        %1502 = vmatpush.msra.mxu0 0.0
        %1503 = vmatpush.msra.mxu0 0.0
        %1504 = vmatpush.msra.mxu0 0.0
        %1505 = vmatpush.msra.mxu0 0.0
        %1506 = vmatpush.msra.mxu0 0.0
        %1507 = vmatpush.msra.mxu0 0.0
        %1508 = vmatpush.msra.mxu0 %v1215
        %1509 = vmatpush.msra.mxu0 %v1214
        %1510 = vmatpush.msra.mxu0 %v1213
        %1511 = vmatpush.msra.mxu0 %v1212
        %1512 = vmatpush.msra.mxu0 %v1211
        %1513 = vmatmul.f32.gmra.mxu0 %v1495
        %v1514 = vpop.f32.mrf.mxu0
        %v1515 = vadd.f32 0.0, %v1514
        %1516 = vdwg.mxu0
        %s1517 = scalar_lea.vmem [#allocation9], 2176
        %v1518 = vld [vmem:[%s1517] sm:$0xff]
        %v1519 = vld [vmem:[%s1517 + $0x8] sm:$0xff]
        %v1520 = vld [vmem:[%s1517 + $0x10] sm:$0xff]
        %v1521 = vld [vmem:[%s1517 + $0x18] sm:$0xff]
        %v1522 = vld [vmem:[%s1517 + $0x20] sm:$0xff]
        %v1523 = vld [vmem:[%s1517 + $0x28] sm:$0xff]
        %v1524 = vld [vmem:[%s1517 + $0x30] sm:$0xff]
        %v1525 = vld [vmem:[%s1517 + $0x38] sm:$0xff]
        %v1526 = vld [vmem:[%s1517 + $0x40] sm:$0xff]
        %v1527 = vld [vmem:[%s1517 + $0x48] sm:$0xff]
        %v1528 = vld [vmem:[%s1517 + $0x50] sm:$0xff]
        %v1529 = vld [vmem:[%s1517 + $0x58] sm:$0xff]
        %v1530 = vld [vmem:[%s1517 + $0x60] sm:$0xff]
        %v1531 = vld [vmem:[%s1517 + $0x68] sm:$0xff]
        %v1532 = vld [vmem:[%s1517 + $0x70] sm:$0xff]
        %v1533 = vld [vmem:[%s1517 + $0x78] sm:$0xff]
        %1534 = vmatpush.msra.mxu0 %v1533
        %1535 = vmatpush.msra.mxu0 %v1532
        %1536 = vmatpush.msra.mxu0 %v1531
        %1537 = vmatpush.msra.mxu0 %v1530
        %1538 = vmatpush.msra.mxu0 %v1529
        %1539 = vmatpush.msra.mxu0 %v1528
        %1540 = vmatpush.msra.mxu0 %v1527
        %1541 = vmatpush.msra.mxu0 %v1526
        %1542 = vmatpush.msra.mxu0 %v1525
        %1543 = vmatpush.msra.mxu0 %v1524
        %1544 = vmatpush.msra.mxu0 %v1523
        %1545 = vmatpush.msra.mxu0 %v1522
        %1546 = vmatpush.msra.mxu0 %v1521
        %1547 = vmatpush.msra.mxu0 %v1520
        %1548 = vmatpush.msra.mxu0 %v1519
        %1549 = vmatpush.msra.mxu0 %v1518
        %1550 = vmatmul.f32.gmra.mxu0 %v1515
        %v1551 = vpop.f32.mrf.mxu0
        %v1552 = vadd.f32 0.0, %v1551
        %1553 = vdwg.mxu0
        %v1554 = vadd.f32 %v1491, %v1552
        %s1555 = scalar_lea.vmem %s2, 16
        %v1556 = vld [vmem:[%s1555] sm:$0xf]
        %1558 = vset.pattern.permute.xlu0 0
        %1559 = vperm.xlu0 %1558, %v1556
        %v1560 = vpop.permute.xlu0 %1559
        %v1562 = vadd.f32 %v1554, %v1560
        %1563 = vmatpush.msra.mxu0 %v357
        %1564 = vmatpush.msra.mxu0 %v356
        %1565 = vmatpush.msra.mxu0 %v355
        %1566 = vmatpush.msra.mxu0 %v354
        %1567 = vmatpush.msra.mxu0 %v353
        %1568 = vmatpush.msra.mxu0 %v352
        %1569 = vmatpush.msra.mxu0 %v351
        %1570 = vmatpush.msra.mxu0 %v350
        %1571 = vmatpush.msra.mxu0 %v349
        %1572 = vmatpush.msra.mxu0 %v348
        %1573 = vmatpush.msra.mxu0 %v347
        %1574 = vmatpush.msra.mxu0 %v346
        %1575 = vmatpush.msra.mxu0 %v345
        %1576 = vmatpush.msra.mxu0 %v344
        %1577 = vmatpush.msra.mxu0 %v343
        %1578 = vmatpush.msra.mxu0 %v342
        %1579 = vmatmul.f32.gmra.mxu0 %v1562
        %v1580 = vpop.f32.mrf.mxu0
        %v1581 = vadd.f32 0.0, %v1580
        %1582 = vdwg.mxu0
        %v1583 = vsub.f32 %v1562, %v1581
        %v1584 = vmul.f32 %v1583, %v1583
        %1585 = vmatpush.msra.mxu0 %v357
        %1586 = vmatpush.msra.mxu0 %v356
        %1587 = vmatpush.msra.mxu0 %v355
        %1588 = vmatpush.msra.mxu0 %v354
        %1589 = vmatpush.msra.mxu0 %v353
        %1590 = vmatpush.msra.mxu0 %v352
        %1591 = vmatpush.msra.mxu0 %v351
        %1592 = vmatpush.msra.mxu0 %v350
        %1593 = vmatpush.msra.mxu0 %v349
        %1594 = vmatpush.msra.mxu0 %v348
        %1595 = vmatpush.msra.mxu0 %v347
        %1596 = vmatpush.msra.mxu0 %v346
        %1597 = vmatpush.msra.mxu0 %v345
        %1598 = vmatpush.msra.mxu0 %v344
        %1599 = vmatpush.msra.mxu0 %v343
        %1600 = vmatpush.msra.mxu0 %v342
        %1601 = vmatmul.f32.gmra.mxu0 %v1584
        %v1602 = vpop.f32.mrf.mxu0
        %v1603 = vadd.f32 1e-05, %v1602
        %1604 = vdwg.mxu0
        %v1605 = vrsqrt.pop %v1603
        %v1606 = vmul.f32 %v1605, %v1603
        %v1607 = vmul.f32 %v1606, %v1605
        %v1608 = vmul.f32 0.5, %v1607
        %v1609 = vsub.f32 1.5, %v1608
        %v1610 = vmul.f32 %v1605, %v1609
        %vm1611 = vweird.f32 %v1603
        %vm1612 = vweird.f32 %v1605
        %vm1613 = vmor %vm1611, %vm1612
        %v1614 = vsel %vm1613, %v1605, %v1610
        %v1615 = vmul.f32 %v1583, %v1614
        %s1616 = scalar_lea.vmem [#allocation8], 4
        %v1617 = vld [vmem:[%s1616] sm:$0x1]
        %v1619 = vperm.slane %v1617, 0
        %v1621 = vmul.f32 %v1615, %v1619
        %s1622 = scalar_lea.vmem [#allocation8], 5
        %v1623 = vld [vmem:[%s1622] sm:$0x1]
        %v1625 = vperm.slane %v1623, 0
        %v1627 = vadd.f32 %v1621, %v1625
        %vm1628 = vcmp.ge.f32.partialorder %v1627, 0.0
        %s1629 = scalar_lea.vmem %s2, 20
        %v1630 = vld [vmem:[%s1629] sm:$0xf]
        %1632 = vset.pattern.permute.xlu0 0
        %1633 = vperm.xlu0 %1632, %v1630
        %v1634 = vpop.permute.xlu0 %1633
        %v1636 = vmul.f32 %v1634, %v1627
        %v1637 = vsel %vm1628, %v1627, %v1636
        %1638 = vst [vmem:[#allocation2 + $0x18] sm:$0xf] %v1637
        %v1639 = vld [vmem:[#allocation2] sm:$0xff]
        %v1640 = vld [vmem:[#allocation2 + $0x8] sm:$0xff]
        %v1641 = vld [vmem:[#allocation2 + $0x10] sm:$0xff]
        %v1642 = vld [vmem:[#allocation2 + $0x18] sm:$0xff]
        %v1643 = vld [vmem:[#allocation2 + $0x20] sm:$0xff]
        %s1644 = scalar_lea.vmem [#allocation6], 72
        %v1645 = vld [vmem:[%s1644] sm:$0xf]
        %v1647 = vsel %vm364, %v1645, 0
        %1649 = vmatpush.msra.mxu0 0.0
        %1650 = vmatpush.msra.mxu0 0.0
        %1651 = vmatpush.msra.mxu0 0.0
        %1652 = vmatpush.msra.mxu0 0.0
        %1653 = vmatpush.msra.mxu0 0.0
        %1654 = vmatpush.msra.mxu0 0.0
        %1655 = vmatpush.msra.mxu0 0.0
        %1656 = vmatpush.msra.mxu0 0.0
        %1657 = vmatpush.msra.mxu0 0.0
        %1658 = vmatpush.msra.mxu0 0.0
        %1659 = vmatpush.msra.mxu0 0.0
        %1660 = vmatpush.msra.mxu0 %v1643
        %1661 = vmatpush.msra.mxu0 %v1642
        %1662 = vmatpush.msra.mxu0 %v1641
        %1663 = vmatpush.msra.mxu0 %v1640
        %1664 = vmatpush.msra.mxu0 %v1639
        %1665 = vmatmul.f32.gmra.mxu0 %v1647
        %v1666 = vpop.f32.mrf.mxu0
        %v1667 = vadd.f32 0.0, %v1666
        %1668 = vdwg.mxu0
        %s1669 = scalar_lea.vmem [#allocation9], 2304
        %v1670 = vld [vmem:[%s1669] sm:$0xff]
        %v1671 = vld [vmem:[%s1669 + $0x8] sm:$0xff]
        %v1672 = vld [vmem:[%s1669 + $0x10] sm:$0xff]
        %v1673 = vld [vmem:[%s1669 + $0x18] sm:$0xff]
        %v1674 = vld [vmem:[%s1669 + $0x20] sm:$0xff]
        %v1675 = vld [vmem:[%s1669 + $0x28] sm:$0xff]
        %v1676 = vld [vmem:[%s1669 + $0x30] sm:$0xff]
        %v1677 = vld [vmem:[%s1669 + $0x38] sm:$0xff]
        %v1678 = vld [vmem:[%s1669 + $0x40] sm:$0xff]
        %v1679 = vld [vmem:[%s1669 + $0x48] sm:$0xff]
        %v1680 = vld [vmem:[%s1669 + $0x50] sm:$0xff]
        %v1681 = vld [vmem:[%s1669 + $0x58] sm:$0xff]
        %v1682 = vld [vmem:[%s1669 + $0x60] sm:$0xff]
        %v1683 = vld [vmem:[%s1669 + $0x68] sm:$0xff]
        %v1684 = vld [vmem:[%s1669 + $0x70] sm:$0xff]
        %v1685 = vld [vmem:[%s1669 + $0x78] sm:$0xff]
        %s1686 = scalar_lea.vmem [#allocation6], 76
        %v1687 = vld [vmem:[%s1686] sm:$0xf]
        %v1689 = vsel %vm364, %v1687, 0
        %1691 = vmatpush.msra.mxu0 0.0
        %1692 = vmatpush.msra.mxu0 0.0
        %1693 = vmatpush.msra.mxu0 0.0
        %1694 = vmatpush.msra.mxu0 0.0
        %1695 = vmatpush.msra.mxu0 0.0
        %1696 = vmatpush.msra.mxu0 0.0
        %1697 = vmatpush.msra.mxu0 0.0
        %1698 = vmatpush.msra.mxu0 0.0
        %1699 = vmatpush.msra.mxu0 0.0
        %1700 = vmatpush.msra.mxu0 0.0
        %1701 = vmatpush.msra.mxu0 0.0
        %1702 = vmatpush.msra.mxu0 %v1643
        %1703 = vmatpush.msra.mxu0 %v1642
        %1704 = vmatpush.msra.mxu0 %v1641
        %1705 = vmatpush.msra.mxu0 %v1640
        %1706 = vmatpush.msra.mxu0 %v1639
        %1707 = vmatmul.f32.gmra.mxu0 %v1689
        %v1708 = vpop.f32.mrf.mxu0
        %v1709 = vadd.f32 0.0, %v1708
        %1710 = vdwg.mxu0
        %s1711 = scalar_lea.vmem [#allocation9], 2432
        %v1712 = vld [vmem:[%s1711] sm:$0xff]
        %v1713 = vld [vmem:[%s1711 + $0x8] sm:$0xff]
        %v1714 = vld [vmem:[%s1711 + $0x10] sm:$0xff]
        %v1715 = vld [vmem:[%s1711 + $0x18] sm:$0xff]
        %v1716 = vld [vmem:[%s1711 + $0x20] sm:$0xff]
        %v1717 = vld [vmem:[%s1711 + $0x28] sm:$0xff]
        %v1718 = vld [vmem:[%s1711 + $0x30] sm:$0xff]
        %v1719 = vld [vmem:[%s1711 + $0x38] sm:$0xff]
        %v1720 = vld [vmem:[%s1711 + $0x40] sm:$0xff]
        %v1721 = vld [vmem:[%s1711 + $0x48] sm:$0xff]
        %v1722 = vld [vmem:[%s1711 + $0x50] sm:$0xff]
        %v1723 = vld [vmem:[%s1711 + $0x58] sm:$0xff]
        %v1724 = vld [vmem:[%s1711 + $0x60] sm:$0xff]
        %v1725 = vld [vmem:[%s1711 + $0x68] sm:$0xff]
        %v1726 = vld [vmem:[%s1711 + $0x70] sm:$0xff]
        %v1727 = vld [vmem:[%s1711 + $0x78] sm:$0xff]
        %1728 = vmatpush.msra.mxu0 %v1727
        %1729 = vmatpush.msra.mxu0 %v1726
        %1730 = vmatpush.msra.mxu0 %v1725
        %1731 = vmatpush.msra.mxu0 %v1724
        %1732 = vmatpush.msra.mxu0 %v1723
        %1733 = vmatpush.msra.mxu0 %v1722
        %1734 = vmatpush.msra.mxu0 %v1721
        %1735 = vmatpush.msra.mxu0 %v1720
        %1736 = vmatpush.msra.mxu0 %v1719
        %1737 = vmatpush.msra.mxu0 %v1718
        %1738 = vmatpush.msra.mxu0 %v1717
        %1739 = vmatpush.msra.mxu0 %v1716
        %1740 = vmatpush.msra.mxu0 %v1715
        %1741 = vmatpush.msra.mxu0 %v1714
        %1742 = vmatpush.msra.mxu0 %v1713
        %1743 = vmatpush.msra.mxu0 %v1712
        %1744 = vmatmul.f32.gmra.mxu0 %v1709
        %v1745 = vpop.f32.mrf.mxu0
        %v1746 = vadd.f32 0.0, %v1745
        %1747 = vdwg.mxu0
        %1748 = vmatpush.msra.mxu0 %v1685
        %1749 = vmatpush.msra.mxu0 %v1684
        %1750 = vmatpush.msra.mxu0 %v1683
        %1751 = vmatpush.msra.mxu0 %v1682
        %1752 = vmatpush.msra.mxu0 %v1681
        %1753 = vmatpush.msra.mxu0 %v1680
        %1754 = vmatpush.msra.mxu0 %v1679
        %1755 = vmatpush.msra.mxu0 %v1678
        %1756 = vmatpush.msra.mxu0 %v1677
        %1757 = vmatpush.msra.mxu0 %v1676
        %1758 = vmatpush.msra.mxu0 %v1675
        %1759 = vmatpush.msra.mxu0 %v1674
        %1760 = vmatpush.msra.mxu0 %v1673
        %1761 = vmatpush.msra.mxu0 %v1672
        %1762 = vmatpush.msra.mxu0 %v1671
        %1763 = vmatpush.msra.mxu0 %v1670
        %1764 = vmatmul.f32.gmra.mxu0 %v1667
        %v1765 = vpop.f32.mrf.mxu0
        %v1766 = vadd.f32 %v1746, %v1765
        %1767 = vdwg.mxu0
        %s1768 = scalar_lea.vmem [#allocation6], 80
        %v1769 = vld [vmem:[%s1768] sm:$0xf]
        %v1771 = vsel %vm364, %v1769, 0
        %1773 = vmatpush.msra.mxu0 0.0
        %1774 = vmatpush.msra.mxu0 0.0
        %1775 = vmatpush.msra.mxu0 0.0
        %1776 = vmatpush.msra.mxu0 0.0
        %1777 = vmatpush.msra.mxu0 0.0
        %1778 = vmatpush.msra.mxu0 0.0
        %1779 = vmatpush.msra.mxu0 0.0
        %1780 = vmatpush.msra.mxu0 0.0
        %1781 = vmatpush.msra.mxu0 0.0
        %1782 = vmatpush.msra.mxu0 0.0
        %1783 = vmatpush.msra.mxu0 0.0
        %1784 = vmatpush.msra.mxu0 %v1643
        %1785 = vmatpush.msra.mxu0 %v1642
        %1786 = vmatpush.msra.mxu0 %v1641
        %1787 = vmatpush.msra.mxu0 %v1640
        %1788 = vmatpush.msra.mxu0 %v1639
        %1789 = vmatmul.f32.gmra.mxu0 %v1771
        %v1790 = vpop.f32.mrf.mxu0
        %v1791 = vadd.f32 0.0, %v1790
        %1792 = vdwg.mxu0
        %s1793 = scalar_lea.vmem [#allocation9], 2560
        %v1794 = vld [vmem:[%s1793] sm:$0xff]
        %v1795 = vld [vmem:[%s1793 + $0x8] sm:$0xff]
        %v1796 = vld [vmem:[%s1793 + $0x10] sm:$0xff]
        %v1797 = vld [vmem:[%s1793 + $0x18] sm:$0xff]
        %v1798 = vld [vmem:[%s1793 + $0x20] sm:$0xff]
        %v1799 = vld [vmem:[%s1793 + $0x28] sm:$0xff]
        %v1800 = vld [vmem:[%s1793 + $0x30] sm:$0xff]
        %v1801 = vld [vmem:[%s1793 + $0x38] sm:$0xff]
        %v1802 = vld [vmem:[%s1793 + $0x40] sm:$0xff]
        %v1803 = vld [vmem:[%s1793 + $0x48] sm:$0xff]
        %v1804 = vld [vmem:[%s1793 + $0x50] sm:$0xff]
        %v1805 = vld [vmem:[%s1793 + $0x58] sm:$0xff]
        %v1806 = vld [vmem:[%s1793 + $0x60] sm:$0xff]
        %v1807 = vld [vmem:[%s1793 + $0x68] sm:$0xff]
        %v1808 = vld [vmem:[%s1793 + $0x70] sm:$0xff]
        %v1809 = vld [vmem:[%s1793 + $0x78] sm:$0xff]
        %1810 = vmatpush.msra.mxu0 %v1809
        %1811 = vmatpush.msra.mxu0 %v1808
        %1812 = vmatpush.msra.mxu0 %v1807
        %1813 = vmatpush.msra.mxu0 %v1806
        %1814 = vmatpush.msra.mxu0 %v1805
        %1815 = vmatpush.msra.mxu0 %v1804
        %1816 = vmatpush.msra.mxu0 %v1803
        %1817 = vmatpush.msra.mxu0 %v1802
        %1818 = vmatpush.msra.mxu0 %v1801
        %1819 = vmatpush.msra.mxu0 %v1800
        %1820 = vmatpush.msra.mxu0 %v1799
        %1821 = vmatpush.msra.mxu0 %v1798
        %1822 = vmatpush.msra.mxu0 %v1797
        %1823 = vmatpush.msra.mxu0 %v1796
        %1824 = vmatpush.msra.mxu0 %v1795
        %1825 = vmatpush.msra.mxu0 %v1794
        %1826 = vmatmul.f32.gmra.mxu0 %v1791
        %v1827 = vpop.f32.mrf.mxu0
        %v1828 = vadd.f32 0.0, %v1827
        %1829 = vdwg.mxu0
        %v1830 = vadd.f32 %v1766, %v1828
        %s1831 = scalar_lea.vmem [#allocation6], 84
        %v1832 = vld [vmem:[%s1831] sm:$0xf]
        %v1834 = vsel %vm364, %v1832, 0
        %1836 = vmatpush.msra.mxu0 0.0
        %1837 = vmatpush.msra.mxu0 0.0
        %1838 = vmatpush.msra.mxu0 0.0
        %1839 = vmatpush.msra.mxu0 0.0
        %1840 = vmatpush.msra.mxu0 0.0
        %1841 = vmatpush.msra.mxu0 0.0
        %1842 = vmatpush.msra.mxu0 0.0
        %1843 = vmatpush.msra.mxu0 0.0
        %1844 = vmatpush.msra.mxu0 0.0
        %1845 = vmatpush.msra.mxu0 0.0
        %1846 = vmatpush.msra.mxu0 0.0
        %1847 = vmatpush.msra.mxu0 %v1643
        %1848 = vmatpush.msra.mxu0 %v1642
        %1849 = vmatpush.msra.mxu0 %v1641
        %1850 = vmatpush.msra.mxu0 %v1640
        %1851 = vmatpush.msra.mxu0 %v1639
        %1852 = vmatmul.f32.gmra.mxu0 %v1834
        %v1853 = vpop.f32.mrf.mxu0
        %v1854 = vadd.f32 0.0, %v1853
        %1855 = vdwg.mxu0
        %s1856 = scalar_lea.vmem [#allocation9], 2688
        %v1857 = vld [vmem:[%s1856] sm:$0xff]
        %v1858 = vld [vmem:[%s1856 + $0x8] sm:$0xff]
        %v1859 = vld [vmem:[%s1856 + $0x10] sm:$0xff]
        %v1860 = vld [vmem:[%s1856 + $0x18] sm:$0xff]
        %v1861 = vld [vmem:[%s1856 + $0x20] sm:$0xff]
        %v1862 = vld [vmem:[%s1856 + $0x28] sm:$0xff]
        %v1863 = vld [vmem:[%s1856 + $0x30] sm:$0xff]
        %v1864 = vld [vmem:[%s1856 + $0x38] sm:$0xff]
        %v1865 = vld [vmem:[%s1856 + $0x40] sm:$0xff]
        %v1866 = vld [vmem:[%s1856 + $0x48] sm:$0xff]
        %v1867 = vld [vmem:[%s1856 + $0x50] sm:$0xff]
        %v1868 = vld [vmem:[%s1856 + $0x58] sm:$0xff]
        %v1869 = vld [vmem:[%s1856 + $0x60] sm:$0xff]
        %v1870 = vld [vmem:[%s1856 + $0x68] sm:$0xff]
        %v1871 = vld [vmem:[%s1856 + $0x70] sm:$0xff]
        %v1872 = vld [vmem:[%s1856 + $0x78] sm:$0xff]
        %1873 = vmatpush.msra.mxu0 %v1872
        %1874 = vmatpush.msra.mxu0 %v1871
        %1875 = vmatpush.msra.mxu0 %v1870
        %1876 = vmatpush.msra.mxu0 %v1869
        %1877 = vmatpush.msra.mxu0 %v1868
        %1878 = vmatpush.msra.mxu0 %v1867
        %1879 = vmatpush.msra.mxu0 %v1866
        %1880 = vmatpush.msra.mxu0 %v1865
        %1881 = vmatpush.msra.mxu0 %v1864
        %1882 = vmatpush.msra.mxu0 %v1863
        %1883 = vmatpush.msra.mxu0 %v1862
        %1884 = vmatpush.msra.mxu0 %v1861
        %1885 = vmatpush.msra.mxu0 %v1860
        %1886 = vmatpush.msra.mxu0 %v1859
        %1887 = vmatpush.msra.mxu0 %v1858
        %1888 = vmatpush.msra.mxu0 %v1857
        %1889 = vmatmul.f32.gmra.mxu0 %v1854
        %v1890 = vpop.f32.mrf.mxu0
        %v1891 = vadd.f32 0.0, %v1890
        %1892 = vdwg.mxu0
        %v1893 = vadd.f32 %v1830, %v1891
        %s1894 = scalar_lea.vmem [#allocation6], 88
        %v1895 = vld [vmem:[%s1894] sm:$0xf]
        %v1897 = vsel %vm364, %v1895, 0
        %1899 = vmatpush.msra.mxu0 0.0
        %1900 = vmatpush.msra.mxu0 0.0
        %1901 = vmatpush.msra.mxu0 0.0
        %1902 = vmatpush.msra.mxu0 0.0
        %1903 = vmatpush.msra.mxu0 0.0
        %1904 = vmatpush.msra.mxu0 0.0
        %1905 = vmatpush.msra.mxu0 0.0
        %1906 = vmatpush.msra.mxu0 0.0
        %1907 = vmatpush.msra.mxu0 0.0
        %1908 = vmatpush.msra.mxu0 0.0
        %1909 = vmatpush.msra.mxu0 0.0
        %1910 = vmatpush.msra.mxu0 %v1643
        %1911 = vmatpush.msra.mxu0 %v1642
        %1912 = vmatpush.msra.mxu0 %v1641
        %1913 = vmatpush.msra.mxu0 %v1640
        %1914 = vmatpush.msra.mxu0 %v1639
        %1915 = vmatmul.f32.gmra.mxu0 %v1897
        %v1916 = vpop.f32.mrf.mxu0
        %v1917 = vadd.f32 0.0, %v1916
        %1918 = vdwg.mxu0
        %v1919 = vadd.f32 %v1893, %v1917
        %s1920 = scalar_lea.vmem [#allocation6], 92
        %v1921 = vld [vmem:[%s1920] sm:$0xf]
        %v1923 = vsel %vm364, %v1921, 0
        %1925 = vmatpush.msra.mxu0 0.0
        %1926 = vmatpush.msra.mxu0 0.0
        %1927 = vmatpush.msra.mxu0 0.0
        %1928 = vmatpush.msra.mxu0 0.0
        %1929 = vmatpush.msra.mxu0 0.0
        %1930 = vmatpush.msra.mxu0 0.0
        %1931 = vmatpush.msra.mxu0 0.0
        %1932 = vmatpush.msra.mxu0 0.0
        %1933 = vmatpush.msra.mxu0 0.0
        %1934 = vmatpush.msra.mxu0 0.0
        %1935 = vmatpush.msra.mxu0 0.0
        %1936 = vmatpush.msra.mxu0 %v1643
        %1937 = vmatpush.msra.mxu0 %v1642
        %1938 = vmatpush.msra.mxu0 %v1641
        %1939 = vmatpush.msra.mxu0 %v1640
        %1940 = vmatpush.msra.mxu0 %v1639
        %1941 = vmatmul.f32.gmra.mxu0 %v1923
        %v1942 = vpop.f32.mrf.mxu0
        %v1943 = vadd.f32 0.0, %v1942
        %1944 = vdwg.mxu0
        %s1945 = scalar_lea.vmem [#allocation9], 2944
        %v1946 = vld [vmem:[%s1945] sm:$0xff]
        %v1947 = vld [vmem:[%s1945 + $0x8] sm:$0xff]
        %v1948 = vld [vmem:[%s1945 + $0x10] sm:$0xff]
        %v1949 = vld [vmem:[%s1945 + $0x18] sm:$0xff]
        %v1950 = vld [vmem:[%s1945 + $0x20] sm:$0xff]
        %v1951 = vld [vmem:[%s1945 + $0x28] sm:$0xff]
        %v1952 = vld [vmem:[%s1945 + $0x30] sm:$0xff]
        %v1953 = vld [vmem:[%s1945 + $0x38] sm:$0xff]
        %v1954 = vld [vmem:[%s1945 + $0x40] sm:$0xff]
        %v1955 = vld [vmem:[%s1945 + $0x48] sm:$0xff]
        %v1956 = vld [vmem:[%s1945 + $0x50] sm:$0xff]
        %v1957 = vld [vmem:[%s1945 + $0x58] sm:$0xff]
        %v1958 = vld [vmem:[%s1945 + $0x60] sm:$0xff]
        %v1959 = vld [vmem:[%s1945 + $0x68] sm:$0xff]
        %v1960 = vld [vmem:[%s1945 + $0x70] sm:$0xff]
        %v1961 = vld [vmem:[%s1945 + $0x78] sm:$0xff]
        %1962 = vmatpush.msra.mxu0 %v1961
        %1963 = vmatpush.msra.mxu0 %v1960
        %1964 = vmatpush.msra.mxu0 %v1959
        %1965 = vmatpush.msra.mxu0 %v1958
        %1966 = vmatpush.msra.mxu0 %v1957
        %1967 = vmatpush.msra.mxu0 %v1956
        %1968 = vmatpush.msra.mxu0 %v1955
        %1969 = vmatpush.msra.mxu0 %v1954
        %1970 = vmatpush.msra.mxu0 %v1953
        %1971 = vmatpush.msra.mxu0 %v1952
        %1972 = vmatpush.msra.mxu0 %v1951
        %1973 = vmatpush.msra.mxu0 %v1950
        %1974 = vmatpush.msra.mxu0 %v1949
        %1975 = vmatpush.msra.mxu0 %v1948
        %1976 = vmatpush.msra.mxu0 %v1947
        %1977 = vmatpush.msra.mxu0 %v1946
        %1978 = vmatmul.f32.gmra.mxu0 %v1943
        %v1979 = vpop.f32.mrf.mxu0
        %v1980 = vadd.f32 0.0, %v1979
        %1981 = vdwg.mxu0
        %v1982 = vadd.f32 %v1919, %v1980
        %s1983 = scalar_lea.vmem %s2, 24
        %v1984 = vld [vmem:[%s1983] sm:$0xf]
        %1986 = vset.pattern.permute.xlu0 0
        %1987 = vperm.xlu0 %1986, %v1984
        %v1988 = vpop.permute.xlu0 %1987
        %v1990 = vadd.f32 %v1982, %v1988
        %1991 = vmatpush.msra.mxu0 %v357
        %1992 = vmatpush.msra.mxu0 %v356
        %1993 = vmatpush.msra.mxu0 %v355
        %1994 = vmatpush.msra.mxu0 %v354
        %1995 = vmatpush.msra.mxu0 %v353
        %1996 = vmatpush.msra.mxu0 %v352
        %1997 = vmatpush.msra.mxu0 %v351
        %1998 = vmatpush.msra.mxu0 %v350
        %1999 = vmatpush.msra.mxu0 %v349
        %2000 = vmatpush.msra.mxu0 %v348
        %2001 = vmatpush.msra.mxu0 %v347
        %2002 = vmatpush.msra.mxu0 %v346
        %2003 = vmatpush.msra.mxu0 %v345
        %2004 = vmatpush.msra.mxu0 %v344
        %2005 = vmatpush.msra.mxu0 %v343
        %2006 = vmatpush.msra.mxu0 %v342
        %2007 = vmatmul.f32.gmra.mxu0 %v1990
        %v2008 = vpop.f32.mrf.mxu0
        %v2009 = vadd.f32 0.0, %v2008
        %2010 = vdwg.mxu0
        %v2011 = vsub.f32 %v1990, %v2009
        %v2012 = vmul.f32 %v2011, %v2011
        %2013 = vmatpush.msra.mxu0 %v357
        %2014 = vmatpush.msra.mxu0 %v356
        %2015 = vmatpush.msra.mxu0 %v355
        %2016 = vmatpush.msra.mxu0 %v354
        %2017 = vmatpush.msra.mxu0 %v353
        %2018 = vmatpush.msra.mxu0 %v352
        %2019 = vmatpush.msra.mxu0 %v351
        %2020 = vmatpush.msra.mxu0 %v350
        %2021 = vmatpush.msra.mxu0 %v349
        %2022 = vmatpush.msra.mxu0 %v348
        %2023 = vmatpush.msra.mxu0 %v347
        %2024 = vmatpush.msra.mxu0 %v346
        %2025 = vmatpush.msra.mxu0 %v345
        %2026 = vmatpush.msra.mxu0 %v344
        %2027 = vmatpush.msra.mxu0 %v343
        %2028 = vmatpush.msra.mxu0 %v342
        %2029 = vmatmul.f32.gmra.mxu0 %v2012
        %v2030 = vpop.f32.mrf.mxu0
        %v2031 = vadd.f32 1e-05, %v2030
        %2032 = vdwg.mxu0
        %v2033 = vrsqrt.pop %v2031
        %v2034 = vmul.f32 %v2033, %v2031
        %v2035 = vmul.f32 %v2034, %v2033
        %v2036 = vmul.f32 0.5, %v2035
        %v2037 = vsub.f32 1.5, %v2036
        %v2038 = vmul.f32 %v2033, %v2037
        %vm2039 = vweird.f32 %v2031
        %vm2040 = vweird.f32 %v2033
        %vm2041 = vmor %vm2039, %vm2040
        %v2042 = vsel %vm2041, %v2033, %v2038
        %v2043 = vmul.f32 %v2011, %v2042
        %s2044 = scalar_lea.vmem [#allocation8], 6
        %v2045 = vld [vmem:[%s2044] sm:$0x1]
        %v2047 = vperm.slane %v2045, 0
        %v2049 = vmul.f32 %v2043, %v2047
        %s2050 = scalar_lea.vmem [#allocation8], 7
        %v2051 = vld [vmem:[%s2050] sm:$0x1]
        %v2053 = vperm.slane %v2051, 0
        %v2055 = vadd.f32 %v2049, %v2053
        %vm2056 = vcmp.ge.f32.partialorder %v2055, 0.0
        %s2057 = scalar_lea.vmem %s2, 28
        %v2058 = vld [vmem:[%s2057] sm:$0xf]
        %2060 = vset.pattern.permute.xlu0 0
        %2061 = vperm.xlu0 %2060, %v2058
        %v2062 = vpop.permute.xlu0 %2061
        %v2064 = vmul.f32 %v2062, %v2055
        %v2065 = vsel %vm2056, %v2055, %v2064
        %2066 = vst [vmem:[#allocation2 + $0x20] sm:$0xf] %v2065
        %v2067 = vld [vmem:[#allocation2] sm:$0xff]
        %v2068 = vld [vmem:[#allocation2 + $0x8] sm:$0xff]
        %v2069 = vld [vmem:[#allocation2 + $0x10] sm:$0xff]
        %v2070 = vld [vmem:[#allocation2 + $0x18] sm:$0xff]
        %v2071 = vld [vmem:[#allocation2 + $0x20] sm:$0xff]
        %s2072 = scalar_lea.vmem [#allocation6], 96
        %v2073 = vld [vmem:[%s2072] sm:$0xf]
        %v2075 = vsel %vm364, %v2073, 0
        %2077 = vmatpush.msra.mxu0 0.0
        %2078 = vmatpush.msra.mxu0 0.0
        %2079 = vmatpush.msra.mxu0 0.0
        %2080 = vmatpush.msra.mxu0 0.0
        %2081 = vmatpush.msra.mxu0 0.0
        %2082 = vmatpush.msra.mxu0 0.0
        %2083 = vmatpush.msra.mxu0 0.0
        %2084 = vmatpush.msra.mxu0 0.0
        %2085 = vmatpush.msra.mxu0 0.0
        %2086 = vmatpush.msra.mxu0 0.0
        %2087 = vmatpush.msra.mxu0 0.0
        %2088 = vmatpush.msra.mxu0 %v2071
        %2089 = vmatpush.msra.mxu0 %v2070
        %2090 = vmatpush.msra.mxu0 %v2069
        %2091 = vmatpush.msra.mxu0 %v2068
        %2092 = vmatpush.msra.mxu0 %v2067
        %2093 = vmatmul.f32.gmra.mxu0 %v2075
        %v2094 = vpop.f32.mrf.mxu0
        %v2095 = vadd.f32 0.0, %v2094
        %2096 = vdwg.mxu0
        %s2097 = scalar_lea.vmem [#allocation9], 3072
        %v2098 = vld [vmem:[%s2097] sm:$0xff]
        %v2099 = vld [vmem:[%s2097 + $0x8] sm:$0xff]
        %v2100 = vld [vmem:[%s2097 + $0x10] sm:$0xff]
        %v2101 = vld [vmem:[%s2097 + $0x18] sm:$0xff]
        %v2102 = vld [vmem:[%s2097 + $0x20] sm:$0xff]
        %v2103 = vld [vmem:[%s2097 + $0x28] sm:$0xff]
        %v2104 = vld [vmem:[%s2097 + $0x30] sm:$0xff]
        %v2105 = vld [vmem:[%s2097 + $0x38] sm:$0xff]
        %v2106 = vld [vmem:[%s2097 + $0x40] sm:$0xff]
        %v2107 = vld [vmem:[%s2097 + $0x48] sm:$0xff]
        %v2108 = vld [vmem:[%s2097 + $0x50] sm:$0xff]
        %v2109 = vld [vmem:[%s2097 + $0x58] sm:$0xff]
        %v2110 = vld [vmem:[%s2097 + $0x60] sm:$0xff]
        %v2111 = vld [vmem:[%s2097 + $0x68] sm:$0xff]
        %v2112 = vld [vmem:[%s2097 + $0x70] sm:$0xff]
        %v2113 = vld [vmem:[%s2097 + $0x78] sm:$0xff]
        %s2114 = scalar_lea.vmem [#allocation6], 100
        %v2115 = vld [vmem:[%s2114] sm:$0xf]
        %v2117 = vsel %vm364, %v2115, 0
        %2119 = vmatpush.msra.mxu0 0.0
        %2120 = vmatpush.msra.mxu0 0.0
        %2121 = vmatpush.msra.mxu0 0.0
        %2122 = vmatpush.msra.mxu0 0.0
        %2123 = vmatpush.msra.mxu0 0.0
        %2124 = vmatpush.msra.mxu0 0.0
        %2125 = vmatpush.msra.mxu0 0.0
        %2126 = vmatpush.msra.mxu0 0.0
        %2127 = vmatpush.msra.mxu0 0.0
        %2128 = vmatpush.msra.mxu0 0.0
        %2129 = vmatpush.msra.mxu0 0.0
        %2130 = vmatpush.msra.mxu0 %v2071
        %2131 = vmatpush.msra.mxu0 %v2070
        %2132 = vmatpush.msra.mxu0 %v2069
        %2133 = vmatpush.msra.mxu0 %v2068
        %2134 = vmatpush.msra.mxu0 %v2067
        %2135 = vmatmul.f32.gmra.mxu0 %v2117
        %v2136 = vpop.f32.mrf.mxu0
        %v2137 = vadd.f32 0.0, %v2136
        %2138 = vdwg.mxu0
        %s2139 = scalar_lea.vmem [#allocation9], 3200
        %v2140 = vld [vmem:[%s2139] sm:$0xff]
        %v2141 = vld [vmem:[%s2139 + $0x8] sm:$0xff]
        %v2142 = vld [vmem:[%s2139 + $0x10] sm:$0xff]
        %v2143 = vld [vmem:[%s2139 + $0x18] sm:$0xff]
        %v2144 = vld [vmem:[%s2139 + $0x20] sm:$0xff]
        %v2145 = vld [vmem:[%s2139 + $0x28] sm:$0xff]
        %v2146 = vld [vmem:[%s2139 + $0x30] sm:$0xff]
        %v2147 = vld [vmem:[%s2139 + $0x38] sm:$0xff]
        %v2148 = vld [vmem:[%s2139 + $0x40] sm:$0xff]
        %v2149 = vld [vmem:[%s2139 + $0x48] sm:$0xff]
        %v2150 = vld [vmem:[%s2139 + $0x50] sm:$0xff]
        %v2151 = vld [vmem:[%s2139 + $0x58] sm:$0xff]
        %v2152 = vld [vmem:[%s2139 + $0x60] sm:$0xff]
        %v2153 = vld [vmem:[%s2139 + $0x68] sm:$0xff]
        %v2154 = vld [vmem:[%s2139 + $0x70] sm:$0xff]
        %v2155 = vld [vmem:[%s2139 + $0x78] sm:$0xff]
        %2156 = vmatpush.msra.mxu0 %v2155
        %2157 = vmatpush.msra.mxu0 %v2154
        %2158 = vmatpush.msra.mxu0 %v2153
        %2159 = vmatpush.msra.mxu0 %v2152
        %2160 = vmatpush.msra.mxu0 %v2151
        %2161 = vmatpush.msra.mxu0 %v2150
        %2162 = vmatpush.msra.mxu0 %v2149
        %2163 = vmatpush.msra.mxu0 %v2148
        %2164 = vmatpush.msra.mxu0 %v2147
        %2165 = vmatpush.msra.mxu0 %v2146
        %2166 = vmatpush.msra.mxu0 %v2145
        %2167 = vmatpush.msra.mxu0 %v2144
        %2168 = vmatpush.msra.mxu0 %v2143
        %2169 = vmatpush.msra.mxu0 %v2142
        %2170 = vmatpush.msra.mxu0 %v2141
        %2171 = vmatpush.msra.mxu0 %v2140
        %2172 = vmatmul.f32.gmra.mxu0 %v2137
        %v2173 = vpop.f32.mrf.mxu0
        %v2174 = vadd.f32 0.0, %v2173
        %2175 = vdwg.mxu0
        %2176 = vmatpush.msra.mxu0 %v2113
        %2177 = vmatpush.msra.mxu0 %v2112
        %2178 = vmatpush.msra.mxu0 %v2111
        %2179 = vmatpush.msra.mxu0 %v2110
        %2180 = vmatpush.msra.mxu0 %v2109
        %2181 = vmatpush.msra.mxu0 %v2108
        %2182 = vmatpush.msra.mxu0 %v2107
        %2183 = vmatpush.msra.mxu0 %v2106
        %2184 = vmatpush.msra.mxu0 %v2105
        %2185 = vmatpush.msra.mxu0 %v2104
        %2186 = vmatpush.msra.mxu0 %v2103
        %2187 = vmatpush.msra.mxu0 %v2102
        %2188 = vmatpush.msra.mxu0 %v2101
        %2189 = vmatpush.msra.mxu0 %v2100
        %2190 = vmatpush.msra.mxu0 %v2099
        %2191 = vmatpush.msra.mxu0 %v2098
        %2192 = vmatmul.f32.gmra.mxu0 %v2095
        %v2193 = vpop.f32.mrf.mxu0
        %v2194 = vadd.f32 %v2174, %v2193
        %2195 = vdwg.mxu0
        %s2196 = scalar_lea.vmem [#allocation6], 104
        %v2197 = vld [vmem:[%s2196] sm:$0xf]
        %v2199 = vsel %vm364, %v2197, 0
        %2201 = vmatpush.msra.mxu0 0.0
        %2202 = vmatpush.msra.mxu0 0.0
        %2203 = vmatpush.msra.mxu0 0.0
        %2204 = vmatpush.msra.mxu0 0.0
        %2205 = vmatpush.msra.mxu0 0.0
        %2206 = vmatpush.msra.mxu0 0.0
        %2207 = vmatpush.msra.mxu0 0.0
        %2208 = vmatpush.msra.mxu0 0.0
        %2209 = vmatpush.msra.mxu0 0.0
        %2210 = vmatpush.msra.mxu0 0.0
        %2211 = vmatpush.msra.mxu0 0.0
        %2212 = vmatpush.msra.mxu0 %v2071
        %2213 = vmatpush.msra.mxu0 %v2070
        %2214 = vmatpush.msra.mxu0 %v2069
        %2215 = vmatpush.msra.mxu0 %v2068
        %2216 = vmatpush.msra.mxu0 %v2067
        %2217 = vmatmul.f32.gmra.mxu0 %v2199
        %v2218 = vpop.f32.mrf.mxu0
        %v2219 = vadd.f32 0.0, %v2218
        %2220 = vdwg.mxu0
        %s2221 = scalar_lea.vmem [#allocation9], 3328
        %v2222 = vld [vmem:[%s2221] sm:$0xff]
        %v2223 = vld [vmem:[%s2221 + $0x8] sm:$0xff]
        %v2224 = vld [vmem:[%s2221 + $0x10] sm:$0xff]
        %v2225 = vld [vmem:[%s2221 + $0x18] sm:$0xff]
        %v2226 = vld [vmem:[%s2221 + $0x20] sm:$0xff]
        %v2227 = vld [vmem:[%s2221 + $0x28] sm:$0xff]
        %v2228 = vld [vmem:[%s2221 + $0x30] sm:$0xff]
        %v2229 = vld [vmem:[%s2221 + $0x38] sm:$0xff]
        %v2230 = vld [vmem:[%s2221 + $0x40] sm:$0xff]
        %v2231 = vld [vmem:[%s2221 + $0x48] sm:$0xff]
        %v2232 = vld [vmem:[%s2221 + $0x50] sm:$0xff]
        %v2233 = vld [vmem:[%s2221 + $0x58] sm:$0xff]
        %v2234 = vld [vmem:[%s2221 + $0x60] sm:$0xff]
        %v2235 = vld [vmem:[%s2221 + $0x68] sm:$0xff]
        %v2236 = vld [vmem:[%s2221 + $0x70] sm:$0xff]
        %v2237 = vld [vmem:[%s2221 + $0x78] sm:$0xff]
        %2238 = vmatpush.msra.mxu0 %v2237
        %2239 = vmatpush.msra.mxu0 %v2236
        %2240 = vmatpush.msra.mxu0 %v2235
        %2241 = vmatpush.msra.mxu0 %v2234
        %2242 = vmatpush.msra.mxu0 %v2233
        %2243 = vmatpush.msra.mxu0 %v2232
        %2244 = vmatpush.msra.mxu0 %v2231
        %2245 = vmatpush.msra.mxu0 %v2230
        %2246 = vmatpush.msra.mxu0 %v2229
        %2247 = vmatpush.msra.mxu0 %v2228
        %2248 = vmatpush.msra.mxu0 %v2227
        %2249 = vmatpush.msra.mxu0 %v2226
        %2250 = vmatpush.msra.mxu0 %v2225
        %2251 = vmatpush.msra.mxu0 %v2224
        %2252 = vmatpush.msra.mxu0 %v2223
        %2253 = vmatpush.msra.mxu0 %v2222
        %2254 = vmatmul.f32.gmra.mxu0 %v2219
        %v2255 = vpop.f32.mrf.mxu0
        %v2256 = vadd.f32 0.0, %v2255
        %2257 = vdwg.mxu0
        %v2258 = vadd.f32 %v2194, %v2256
        %s2259 = scalar_lea.vmem [#allocation6], 108
        %v2260 = vld [vmem:[%s2259] sm:$0xf]
        %v2262 = vsel %vm364, %v2260, 0
        %2264 = vmatpush.msra.mxu0 0.0
        %2265 = vmatpush.msra.mxu0 0.0
        %2266 = vmatpush.msra.mxu0 0.0
        %2267 = vmatpush.msra.mxu0 0.0
        %2268 = vmatpush.msra.mxu0 0.0
        %2269 = vmatpush.msra.mxu0 0.0
        %2270 = vmatpush.msra.mxu0 0.0
        %2271 = vmatpush.msra.mxu0 0.0
        %2272 = vmatpush.msra.mxu0 0.0
        %2273 = vmatpush.msra.mxu0 0.0
        %2274 = vmatpush.msra.mxu0 0.0
        %2275 = vmatpush.msra.mxu0 %v2071
        %2276 = vmatpush.msra.mxu0 %v2070
        %2277 = vmatpush.msra.mxu0 %v2069
        %2278 = vmatpush.msra.mxu0 %v2068
        %2279 = vmatpush.msra.mxu0 %v2067
        %2280 = vmatmul.f32.gmra.mxu0 %v2262
        %v2281 = vpop.f32.mrf.mxu0
        %v2282 = vadd.f32 0.0, %v2281
        %2283 = vdwg.mxu0
        %s2284 = scalar_lea.vmem [#allocation9], 3456
        %v2285 = vld [vmem:[%s2284] sm:$0xff]
        %v2286 = vld [vmem:[%s2284 + $0x8] sm:$0xff]
        %v2287 = vld [vmem:[%s2284 + $0x10] sm:$0xff]
        %v2288 = vld [vmem:[%s2284 + $0x18] sm:$0xff]
        %v2289 = vld [vmem:[%s2284 + $0x20] sm:$0xff]
        %v2290 = vld [vmem:[%s2284 + $0x28] sm:$0xff]
        %v2291 = vld [vmem:[%s2284 + $0x30] sm:$0xff]
        %v2292 = vld [vmem:[%s2284 + $0x38] sm:$0xff]
        %v2293 = vld [vmem:[%s2284 + $0x40] sm:$0xff]
        %v2294 = vld [vmem:[%s2284 + $0x48] sm:$0xff]
        %v2295 = vld [vmem:[%s2284 + $0x50] sm:$0xff]
        %v2296 = vld [vmem:[%s2284 + $0x58] sm:$0xff]
        %v2297 = vld [vmem:[%s2284 + $0x60] sm:$0xff]
        %v2298 = vld [vmem:[%s2284 + $0x68] sm:$0xff]
        %v2299 = vld [vmem:[%s2284 + $0x70] sm:$0xff]
        %v2300 = vld [vmem:[%s2284 + $0x78] sm:$0xff]
        %2301 = vmatpush.msra.mxu0 %v2300
        %2302 = vmatpush.msra.mxu0 %v2299
        %2303 = vmatpush.msra.mxu0 %v2298
        %2304 = vmatpush.msra.mxu0 %v2297
        %2305 = vmatpush.msra.mxu0 %v2296
        %2306 = vmatpush.msra.mxu0 %v2295
        %2307 = vmatpush.msra.mxu0 %v2294
        %2308 = vmatpush.msra.mxu0 %v2293
        %2309 = vmatpush.msra.mxu0 %v2292
        %2310 = vmatpush.msra.mxu0 %v2291
        %2311 = vmatpush.msra.mxu0 %v2290
        %2312 = vmatpush.msra.mxu0 %v2289
        %2313 = vmatpush.msra.mxu0 %v2288
        %2314 = vmatpush.msra.mxu0 %v2287
        %2315 = vmatpush.msra.mxu0 %v2286
        %2316 = vmatpush.msra.mxu0 %v2285
        %2317 = vmatmul.f32.gmra.mxu0 %v2282
        %v2318 = vpop.f32.mrf.mxu0
        %v2319 = vadd.f32 0.0, %v2318
        %2320 = vdwg.mxu0
        %v2321 = vadd.f32 %v2258, %v2319
        %s2322 = scalar_lea.vmem [#allocation6], 112
        %v2323 = vld [vmem:[%s2322] sm:$0xf]
        %v2325 = vsel %vm364, %v2323, 0
        %2327 = vmatpush.msra.mxu0 0.0
        %2328 = vmatpush.msra.mxu0 0.0
        %2329 = vmatpush.msra.mxu0 0.0
        %2330 = vmatpush.msra.mxu0 0.0
        %2331 = vmatpush.msra.mxu0 0.0
        %2332 = vmatpush.msra.mxu0 0.0
        %2333 = vmatpush.msra.mxu0 0.0
        %2334 = vmatpush.msra.mxu0 0.0
        %2335 = vmatpush.msra.mxu0 0.0
        %2336 = vmatpush.msra.mxu0 0.0
        %2337 = vmatpush.msra.mxu0 0.0
        %2338 = vmatpush.msra.mxu0 %v2071
        %2339 = vmatpush.msra.mxu0 %v2070
        %2340 = vmatpush.msra.mxu0 %v2069
        %2341 = vmatpush.msra.mxu0 %v2068
        %2342 = vmatpush.msra.mxu0 %v2067
        %2343 = vmatmul.f32.gmra.mxu0 %v2325
        %v2344 = vpop.f32.mrf.mxu0
        %v2345 = vadd.f32 0.0, %v2344
        %2346 = vdwg.mxu0
        %v2347 = vadd.f32 %v2321, %v2345
        %s2348 = scalar_lea.vmem [#allocation6], 116
        %v2349 = vld [vmem:[%s2348] sm:$0xf]
        %v2351 = vsel %vm364, %v2349, 0
        %2353 = vmatpush.msra.mxu0 0.0
        %2354 = vmatpush.msra.mxu0 0.0
        %2355 = vmatpush.msra.mxu0 0.0
        %2356 = vmatpush.msra.mxu0 0.0
        %2357 = vmatpush.msra.mxu0 0.0
        %2358 = vmatpush.msra.mxu0 0.0
        %2359 = vmatpush.msra.mxu0 0.0
        %2360 = vmatpush.msra.mxu0 0.0
        %2361 = vmatpush.msra.mxu0 0.0
        %2362 = vmatpush.msra.mxu0 0.0
        %2363 = vmatpush.msra.mxu0 0.0
        %2364 = vmatpush.msra.mxu0 %v2071
        %2365 = vmatpush.msra.mxu0 %v2070
        %2366 = vmatpush.msra.mxu0 %v2069
        %2367 = vmatpush.msra.mxu0 %v2068
        %2368 = vmatpush.msra.mxu0 %v2067
        %2369 = vmatmul.f32.gmra.mxu0 %v2351
        %v2370 = vpop.f32.mrf.mxu0
        %v2371 = vadd.f32 0.0, %v2370
        %2372 = vdwg.mxu0
        %s2373 = scalar_lea.vmem [#allocation9], 3712
        %v2374 = vld [vmem:[%s2373] sm:$0xff]
        %v2375 = vld [vmem:[%s2373 + $0x8] sm:$0xff]
        %v2376 = vld [vmem:[%s2373 + $0x10] sm:$0xff]
        %v2377 = vld [vmem:[%s2373 + $0x18] sm:$0xff]
        %v2378 = vld [vmem:[%s2373 + $0x20] sm:$0xff]
        %v2379 = vld [vmem:[%s2373 + $0x28] sm:$0xff]
        %v2380 = vld [vmem:[%s2373 + $0x30] sm:$0xff]
        %v2381 = vld [vmem:[%s2373 + $0x38] sm:$0xff]
        %v2382 = vld [vmem:[%s2373 + $0x40] sm:$0xff]
        %v2383 = vld [vmem:[%s2373 + $0x48] sm:$0xff]
        %v2384 = vld [vmem:[%s2373 + $0x50] sm:$0xff]
        %v2385 = vld [vmem:[%s2373 + $0x58] sm:$0xff]
        %v2386 = vld [vmem:[%s2373 + $0x60] sm:$0xff]
        %v2387 = vld [vmem:[%s2373 + $0x68] sm:$0xff]
        %v2388 = vld [vmem:[%s2373 + $0x70] sm:$0xff]
        %v2389 = vld [vmem:[%s2373 + $0x78] sm:$0xff]
        %2390 = vmatpush.msra.mxu0 %v2389
        %2391 = vmatpush.msra.mxu0 %v2388
        %2392 = vmatpush.msra.mxu0 %v2387
        %2393 = vmatpush.msra.mxu0 %v2386
        %2394 = vmatpush.msra.mxu0 %v2385
        %2395 = vmatpush.msra.mxu0 %v2384
        %2396 = vmatpush.msra.mxu0 %v2383
        %2397 = vmatpush.msra.mxu0 %v2382
        %2398 = vmatpush.msra.mxu0 %v2381
        %2399 = vmatpush.msra.mxu0 %v2380
        %2400 = vmatpush.msra.mxu0 %v2379
        %2401 = vmatpush.msra.mxu0 %v2378
        %2402 = vmatpush.msra.mxu0 %v2377
        %2403 = vmatpush.msra.mxu0 %v2376
        %2404 = vmatpush.msra.mxu0 %v2375
        %2405 = vmatpush.msra.mxu0 %v2374
        %2406 = vmatmul.f32.gmra.mxu0 %v2371
        %v2407 = vpop.f32.mrf.mxu0
        %v2408 = vadd.f32 0.0, %v2407
        %2409 = vdwg.mxu0
        %v2410 = vadd.f32 %v2347, %v2408
        %s2411 = scalar_lea.vmem %s2, 32
        %v2412 = vld [vmem:[%s2411] sm:$0xf]
        %2414 = vset.pattern.permute.xlu0 0
        %2415 = vperm.xlu0 %2414, %v2412
        %v2416 = vpop.permute.xlu0 %2415
        %v2418 = vadd.f32 %v2410, %v2416
        %2419 = vmatpush.msra.mxu0 %v357
        %2420 = vmatpush.msra.mxu0 %v356
        %2421 = vmatpush.msra.mxu0 %v355
        %2422 = vmatpush.msra.mxu0 %v354
        %2423 = vmatpush.msra.mxu0 %v353
        %2424 = vmatpush.msra.mxu0 %v352
        %2425 = vmatpush.msra.mxu0 %v351
        %2426 = vmatpush.msra.mxu0 %v350
        %2427 = vmatpush.msra.mxu0 %v349
        %2428 = vmatpush.msra.mxu0 %v348
        %2429 = vmatpush.msra.mxu0 %v347
        %2430 = vmatpush.msra.mxu0 %v346
        %2431 = vmatpush.msra.mxu0 %v345
        %2432 = vmatpush.msra.mxu0 %v344
        %2433 = vmatpush.msra.mxu0 %v343
        %2434 = vmatpush.msra.mxu0 %v342
        %2435 = vmatmul.f32.gmra.mxu0 %v2418
        %v2436 = vpop.f32.mrf.mxu0
        %v2437 = vadd.f32 0.0, %v2436
        %2438 = vdwg.mxu0
        %v2439 = vsub.f32 %v2418, %v2437
        %v2440 = vmul.f32 %v2439, %v2439
        %2441 = vmatpush.msra.mxu0 %v357
        %2442 = vmatpush.msra.mxu0 %v356
        %2443 = vmatpush.msra.mxu0 %v355
        %2444 = vmatpush.msra.mxu0 %v354
        %2445 = vmatpush.msra.mxu0 %v353
        %2446 = vmatpush.msra.mxu0 %v352
        %2447 = vmatpush.msra.mxu0 %v351
        %2448 = vmatpush.msra.mxu0 %v350
        %2449 = vmatpush.msra.mxu0 %v349
        %2450 = vmatpush.msra.mxu0 %v348
        %2451 = vmatpush.msra.mxu0 %v347
        %2452 = vmatpush.msra.mxu0 %v346
        %2453 = vmatpush.msra.mxu0 %v345
        %2454 = vmatpush.msra.mxu0 %v344
        %2455 = vmatpush.msra.mxu0 %v343
        %2456 = vmatpush.msra.mxu0 %v342
        %2457 = vmatmul.f32.gmra.mxu0 %v2440
        %v2458 = vpop.f32.mrf.mxu0
        %v2459 = vadd.f32 1e-05, %v2458
        %2460 = vdwg.mxu0
        %v2461 = vrsqrt.pop %v2459
        %v2462 = vmul.f32 %v2461, %v2459
        %v2463 = vmul.f32 %v2462, %v2461
        %v2464 = vmul.f32 0.5, %v2463
        %v2465 = vsub.f32 1.5, %v2464
        %v2466 = vmul.f32 %v2461, %v2465
        %vm2467 = vweird.f32 %v2459
        %vm2468 = vweird.f32 %v2461
        %vm2469 = vmor %vm2467, %vm2468
        %v2470 = vsel %vm2469, %v2461, %v2466
        %v2471 = vmul.f32 %v2439, %v2470
        %s2472 = scalar_lea.vmem [#allocation8], 8
        %v2473 = vld [vmem:[%s2472] sm:$0x1]
        %v2475 = vperm.slane %v2473, 0
        %v2477 = vmul.f32 %v2471, %v2475
        %s2478 = scalar_lea.vmem [#allocation8], 9
        %v2479 = vld [vmem:[%s2478] sm:$0x1]
        %v2481 = vperm.slane %v2479, 0
        %v2483 = vadd.f32 %v2477, %v2481
        %vm2484 = vcmp.ge.f32.partialorder %v2483, 0.0
        %s2485 = scalar_lea.vmem %s2, 36
        %v2486 = vld [vmem:[%s2485] sm:$0xf]
        %2488 = vset.pattern.permute.xlu0 0
        %2489 = vperm.xlu0 %2488, %v2486
        %v2490 = vpop.permute.xlu0 %2489
        %v2492 = vmul.f32 %v2490, %v2483
        %v2493 = vsel %vm2484, %v2483, %v2492
        %2494 = vst [vmem:[%s334] sm:$0xf] %v2493
        %s2495 = sand.u32 %s164, 1
        %s2496 = scalar_lea.sflag [#allocation5], %s2495
        %s2497 = sand.u32 %s164, 1
        %s2498 = smul.addr %s2497, 4
        %s2499 = scalar_lea.vmem [#allocation12], %s2498
        // Predicated region
        $region65: #{tpu_custom_call.1} parent=43 // pred_check
          %p2500 = pneg %p174
        $region66: #{tpu_custom_call.1} parent=43 // pred_check_branch
          %2502 = sbr.rel (%p2500) target = $region68
        $region67: #{tpu_custom_call.1} parent=43 // pred_region
          %2504 = vsyncadd %s2496, 0
          %s2505 = smul.addr %s25, 4
          %s2506 = scalar_lea.hbm %s6, %s2505
          %s2508 = sshll.u32 %s2499, 4
          %s2509 = int_to_ptr.vmem [resolvable:$true] %s2508
          %s2510 = sshll.u32 %s2506, 4
          %s2511 = int_to_ptr.hbm [resolvable:$true] %s2510
          %2513 = dma.vmem_to_hbm [thread:$0]  %s2509, 64, %s2511, %s2496
        $region68: #{tpu_custom_call.1} parent=43 // pred_fallthru
          _
      $region44: #{tpu_custom_call.1} parent=5 // pred_fallthru
        _
      %p2514 = scmp.le.s32.totalorder 2, %s20
      // Predicated region
      $region69: #{tpu_custom_call.1} parent=5 // pred_check
        %p2515 = pneg %p2514
      $region70: #{tpu_custom_call.1} parent=5 // pred_check_branch
        %2517 = sbr.rel (%p2515) target = $region72
      $region71: #{tpu_custom_call.1} parent=5 // pred_region
        %s2518 = ssub.s32 %s20, 2
        // Predicated region
        $region73: #{tpu_custom_call.1} parent=71 // pred_check
          %p2519 = pneg %p180
        $region74: #{tpu_custom_call.1} parent=71 // pred_check_branch
          %2521 = sbr.rel (%p2519) target = $region76
        $region75: #{tpu_custom_call.1} parent=71 // pred_region
          %s2522 = sand.u32 %s165, 1
          %s2523 = scalar_lea.sflag [#allocation5], %s2522
          %s2524 = sand.u32 %s165, 1
          %s2525 = smul.addr %s2524, 4
          %s2526 = scalar_lea.vmem [#allocation12], %s2525
          %2528 = dma.done %s2523, 64
        $region76: #{tpu_custom_call.1} parent=71 // pred_fallthru
          _
      $region72: #{tpu_custom_call.1} parent=5 // pred_fallthru
        _
    $region6: #{tpu_custom_call.1} parent=1 // loop_footer
      %s24 = sadd.s32 1, %s20
    $region7: #{tpu_custom_call.1} parent=1 // loop_footer_branch
      %19 = sbr.rel target = $region3
    $region8: #{tpu_custom_call.1} parent=1 // loop_exit
      _
    %2529 = vsyncpa [#allocation4], 1
    %s2530 = scalar_lea.sflag [#allocation4], 1
    %2531 = vsyncpa %s2530, 1
    %2532 = vsyncpa [#allocation7], 1
    %2533 = vsyncpa [#allocation10], 1
    %2534 = vsyncpa [#allocation5], 1
    %s2535 = scalar_lea.sflag [#allocation5], 1
    %2536 = vsyncpa %s2535, 1

</llo_original>
